<compile_context>
chip_gen: v5e
topology: v5e:2x2
jax: 0.10.0
libtpu: 0.0.40
codegen_flags: <defaults>
</compile_context>

<pallas_src>
import functools

import jax
import jax.numpy as jnp
from jax import lax
from jax.experimental import pallas as pl
from jax.experimental.pallas import tpu as pltpu

BF16 = jnp.bfloat16
F32 = jnp.float32


def _layer_norm(x, g, b, eps):
    mu = jnp.mean(x, axis=-1, keepdims=True)
    var = jnp.mean((x - mu) ** 2, axis=-1, keepdims=True)
    return (x - mu) * lax.rsqrt(var + eps) * g + b


def _sigmoid(x):
    return 1.0 / (1.0 + jnp.exp(-x))


def _seq_model_kernel(L, H, NH, NL,
                      x_ref, amask_ref,
                      emb_w_ref, emb_v_ref,
                      qkv_w_ref, qkv_b_ref, wo_ref, vecs_ref,
                      ff_w1_ref, ff_w2_ref, b4h_ref,
                      lstm_wih_ref, lstm_whh_ref,
                      pred_w_ref, pred_b_ref,
                      out_ref,
                      seq_ref):
    """One grid program processes one sequence (batch row)."""
    DH = H // NH
    inv_sqrt_dh = 1.0 / (float(DH) ** 0.5)

    # ---- self.emb: fused Linear over pre-gathered embeddings + LayerNorm(eps=1e-6) ----
    ev = emb_v_ref[...]                                   # (3, H): emb_b, ln_g, ln_b
    x = jnp.dot(x_ref[...], emb_w_ref[...],
                preferred_element_type=F32) + ev[0:1, :]  # (L, H) f32
    x = _layer_norm(x, ev[1:2, :], ev[2:3, :], 1e-6)

    amask = amask_ref[...]                                # (L, L) additive mask (0 / -1e9)

    # ---- transformer blocks (assumed post-LN Block, see TODO) ----
    for blk in range(NL):
        vb = vecs_ref[blk]                                # (6, H): bo, ln1_g, ln1_b, ff_b2, ln2_g, ln2_b
        qkv = jnp.dot(x.astype(BF16), qkv_w_ref[blk],
                      preferred_element_type=F32) + qkv_b_ref[blk]   # (L, 3H) fused QKV
        q = (qkv[:, 0:H] * inv_sqrt_dh).astype(BF16)      # scale folded into q
        k = qkv[:, H:2 * H].astype(BF16)
        v = qkv[:, 2 * H:3 * H].astype(BF16)

        attn_out = jnp.zeros((L, H), F32)
        for hd in range(NH):                              # static head unroll, 2-D matmuls
            qh = q[:, hd * DH:(hd + 1) * DH]
            kh = k[:, hd * DH:(hd + 1) * DH]
            vh = v[:, hd * DH:(hd + 1) * DH]
            s = jnp.einsum('qd,kd->qk', qh, kh,
                           preferred_element_type=F32) + amask
            s = s - jnp.max(s, axis=-1, keepdims=True)
            p = jnp.exp(s)
            p = p * pl.reciprocal(jnp.sum(p, axis=-1, keepdims=True), approx=True)
            ctx = jnp.dot(p.astype(BF16), vh, preferred_element_type=F32)   # (L, DH)
            # accumulate ctx_h @ wo[head] instead of concatenating heads
            attn_out = attn_out + jnp.dot(ctx.astype(BF16), wo_ref[blk, hd],
                                          preferred_element_type=F32)
        attn_out = attn_out + vb[0:1, :]
        x = _layer_norm(x + attn_out, vb[1:2, :], vb[2:3, :], 1e-5)

        ff = jnp.dot(x.astype(BF16), ff_w1_ref[blk],
                     preferred_element_type=F32) + b4h_ref[blk][0:1, :]
        ff = jnp.maximum(ff, 0.0)
        ff = jnp.dot(ff.astype(BF16), ff_w2_ref[blk],
                     preferred_element_type=F32) + vb[3:4, :]
        x = _layer_norm(x + ff, vb[4:5, :], vb[5:6, :], 1e-5)

    # ---- stacked unidirectional LSTM (input projection hoisted, time loop unrolled) ----
    # TODO(synk): if production H is not a multiple of 128, pre-permute gate columns so
    # each gate slice is lane-aligned (or move gates to the sublane axis).
    h_t = jnp.zeros((1, H), F32)
    for layer in range(NL):
        wih = lstm_wih_ref[layer]                         # (H, 4H) bf16
        whh = lstm_whh_ref[layer]                         # (H, 4H) bf16
        lstm_b = b4h_ref[layer][1:2, :]                   # (1, 4H) = b_ih + b_hh
        gx = jnp.dot(x.astype(BF16), wih,
                     preferred_element_type=F32) + lstm_b  # (L, 4H), once per layer
        h_t = jnp.zeros((1, H), F32)
        c_t = jnp.zeros((1, H), F32)
        for t in range(L):                                # fully unrolled (static L)
            g = gx[t:t + 1, :] + jnp.dot(h_t.astype(BF16), whh,
                                         preferred_element_type=F32)
            i_g = _sigmoid(g[:, 0:H])                     # PyTorch gate order i,f,g,o
            f_g = _sigmoid(g[:, H:2 * H])
            g_g = jnp.tanh(g[:, 2 * H:3 * H])
            o_g = _sigmoid(g[:, 3 * H:4 * H])
            c_t = f_g * c_t + i_g * g_g
            h_t = o_g * jnp.tanh(c_t)
            if layer < NL - 1:                            # time-major, leading-axis store
                seq_ref[pl.ds(t, 1), :] = h_t
        if layer < NL - 1:
            x = seq_ref[...]                              # (L, H) input to next layer

    # ---- predict_layer on last timestep (lane-padded, sliced in wrapper) ----
    out_ref[...] = (jnp.dot(h_t.astype(BF16), pred_w_ref[...],
                            preferred_element_type=F32) + pred_b_ref[...])


def seq_model_forward(problems, params, *, num_heads, num_layers):
    B, L = problems.shape
    NEMB, Vp1, H = params['emb_tables'].shape
    V = Vp1 - 1
    NH, NL = num_heads, num_layers
    DH = H // NH
    VPAD = ((V + 127) // 128) * 128                       # lane-dense output store

    problems = problems.astype(jnp.int32)
    bf = lambda a: a.astype(jnp.bfloat16)

    # ---- embedding gather + concat done once in XLA (no in-kernel serial gather) ----
    emb_x = jnp.concatenate(
        [jnp.take(params['emb_tables'][e], problems, axis=0) for e in range(NEMB)],
        axis=-1).astype(jnp.bfloat16)                     # (B, L, NEMB*H)

    # ---- additive attention mask (key padding & causal) ----
    pad_mask = problems > 0                               # (B, L)
    causal = jnp.tril(jnp.ones((L, L), dtype=bool))
    amask = jnp.where(pad_mask[:, None, :] & causal[None], 0.0, -1e9).astype(jnp.float32)

    # ---- pack weights (fused QKV, head-split wo, stacked bias/LN vectors) ----
    qkv_w = bf(jnp.concatenate([params['wq'], params['wk'], params['wv']], axis=-1))   # (NL,H,3H)
    qkv_b = jnp.concatenate([params['bq'], params['bk'], params['bv']], axis=-1)[:, None, :]
    wo_heads = bf(params['wo'].reshape(NL, NH, DH, H))
    vecs = jnp.stack([params['bo'], params['ln1_g'], params['ln1_b'],
                      params['ff_b2'], params['ln2_g'], params['ln2_b']], axis=1)      # (NL,6,H)
    b4h = jnp.stack([params['ff_b1'],
                     params['lstm_bih'] + params['lstm_bhh']], axis=1)                 # (NL,2,4H)
    emb_v = jnp.concatenate([params['emb_b'], params['ln_g'], params['ln_b']], axis=0) # (3,H)
    pred_w = bf(jnp.pad(params['pred_w'], ((0, 0), (0, VPAD - V))))
    pred_b = jnp.pad(params['pred_b'], ((0, 0), (0, VPAD - V)))

    weight_args = [
        bf(params['emb_w']), emb_v,
        qkv_w, qkv_b, wo_heads, vecs,
        bf(params['ff_w1']), bf(params['ff_w2']), b4h,
        bf(params['lstm_wih']), bf(params['lstm_whh']),
        pred_w, pred_b,
    ]

    def _seq_spec(arr):                                   # batch-sliced input, leading dim squeezed
        rest = tuple(arr.shape[1:])
        zeros = (0,) * len(rest)
        return pl.BlockSpec((None,) + rest, lambda b: (b,) + zeros)

    def _rep_spec(arr):                                   # replicated (whole-array) weight block
        zeros = (0,) * arr.ndim
        return pl.BlockSpec(tuple(arr.shape), lambda b: zeros)

    kern = functools.partial(_seq_model_kernel, L, H, NH, NL)

    out = pl.pallas_call(
        kern,
        grid=(B,),                                        # one sequence per program; parallel on v7x
        out_shape=jax.ShapeDtypeStruct((B, 1, VPAD), jnp.float32),
        in_specs=[_seq_spec(emb_x), _seq_spec(amask)] + [_rep_spec(a) for a in weight_args],
        out_specs=pl.BlockSpec((None, 1, VPAD), lambda b: (b, 0, 0)),
        scratch_shapes=[pltpu.VMEM((L, H), jnp.float32)], # time-major LSTM layer output
        compiler_params=pltpu.CompilerParams(
            dimension_semantics=("parallel",)),
    )(emb_x, amask, *weight_args)
    return out.reshape(B, VPAD)[:, :V]


def init_params(key, *, num_problem_id, hidden_units, num_layers, num_emb_cols):
    V, H, NL, NEMB = num_problem_id, hidden_units, num_layers, num_emb_cols
    F = 4 * H
    keys = jax.random.split(key, 12)

    def nrm(k, shape, scale=0.05):
        return (scale * jax.random.normal(k, shape)).astype(jnp.float32)

    emb_tables = nrm(keys[0], (NEMB, V + 1, H), 0.1)
    emb_tables = emb_tables.at[:, 0, :].set(0.0)          # padding_idx=0
    zeros = lambda s: jnp.zeros(s, jnp.float32)
    ones = lambda s: jnp.ones(s, jnp.float32)
    return dict(
        emb_tables=emb_tables,
        emb_w=nrm(keys[1], (NEMB * H, H)), emb_b=zeros((1, H)),
        ln_g=ones((1, H)), ln_b=zeros((1, H)),
        wq=nrm(keys[2], (NL, H, H)), bq=zeros((NL, H)),
        wk=nrm(keys[3], (NL, H, H)), bk=zeros((NL, H)),
        wv=nrm(keys[4], (NL, H, H)), bv=zeros((NL, H)),
        wo=nrm(keys[5], (NL, H, H)), bo=zeros((NL, H)),
        ln1_g=ones((NL, H)), ln1_b=zeros((NL, H)),
        ff_w1=nrm(keys[6], (NL, H, F)), ff_b1=zeros((NL, F)),
        ff_w2=nrm(keys[7], (NL, F, H)), ff_b2=zeros((NL, H)),
        ln2_g=ones((NL, H)), ln2_b=zeros((NL, H)),
        lstm_wih=nrm(keys[8], (NL, H, 4 * H)),
        lstm_whh=nrm(keys[9], (NL, H, 4 * H)),
        lstm_bih=zeros((NL, 4 * H)), lstm_bhh=zeros((NL, 4 * H)),
        pred_w=nrm(keys[10], (H, V)), pred_b=zeros((1, V)),
    )


if __name__ == "__main__":
    B, L = 2, 8
    num_problem_id, H, NH, NL = 50, 32, 2, 2
    emb_cols = ("problem_id", "skill_id")

    key = jax.random.PRNGKey(0)
    kp, kd = jax.random.split(key)
    params = init_params(kp, num_problem_id=num_problem_id, hidden_units=H,
                         num_layers=NL, num_emb_cols=len(emb_cols))
    problems = jax.random.randint(kd, (B, L), 0, num_problem_id + 1,
                                  dtype=jnp.int32)
    problems = problems.at[0, 0].set(0)                   # ensure some padding

    out = seq_model_forward(problems, params, num_heads=NH, num_layers=NL)
    out = jax.block_until_ready(out)
    assert out.shape == (B, num_problem_id), out.shape
    assert bool(jnp.all(jnp.isfinite(out)))
    print("KERNEL_OK")
</pallas_src>

<mosaic_0001>
module attributes {stable_mosaic.version = 11 : i64} {
  func.func @_seq_model_kernel(%arg0: i32, %arg1: memref<1x8x64xbf16, #tpu.memory_space<vmem>>, %arg2: memref<1x8x8xf32, #tpu.memory_space<vmem>>, %arg3: memref<64x32xbf16, #tpu.memory_space<vmem>>, %arg4: memref<3x32xf32, #tpu.memory_space<vmem>>, %arg5: memref<2x32x96xbf16, #tpu.memory_space<vmem>>, %arg6: memref<2x1x96xf32, #tpu.memory_space<vmem>>, %arg7: memref<2x2x16x32xbf16, #tpu.memory_space<vmem>>, %arg8: memref<2x6x32xf32, #tpu.memory_space<vmem>>, %arg9: memref<2x32x128xbf16, #tpu.memory_space<vmem>>, %arg10: memref<2x128x32xbf16, #tpu.memory_space<vmem>>, %arg11: memref<2x2x128xf32, #tpu.memory_space<vmem>>, %arg12: memref<2x32x128xbf16, #tpu.memory_space<vmem>>, %arg13: memref<2x32x128xbf16, #tpu.memory_space<vmem>>, %arg14: memref<32x128xbf16, #tpu.memory_space<vmem>>, %arg15: memref<1x128xf32, #tpu.memory_space<vmem>>, %arg16: memref<1x1x128xf32, #tpu.memory_space<vmem>>, %arg17: memref<8x32xf32, #tpu.memory_space<vmem>>) attributes {dimension_semantics = [#tpu.dimension_semantics<parallel>], iteration_bounds = array<i64: 2>, scalar_prefetch = 0 : i64, scratch_operands = 1 : i64, tpu.core_type = #tpu.core_type<tc>, window_params = [{transform_indices = @transform_0, window_bounds = array<i64: 1, 8, 64>}, {transform_indices = @transform_1, window_bounds = array<i64: 1, 8, 8>}, {pipeline_mode = #tpu.pipeline_mode<synchronous>, transform_indices = @transform_2, window_bounds = array<i64: 64, 32>}, {pipeline_mode = #tpu.pipeline_mode<synchronous>, transform_indices = @transform_3, window_bounds = array<i64: 3, 32>}, {pipeline_mode = #tpu.pipeline_mode<synchronous>, transform_indices = @transform_4, window_bounds = array<i64: 2, 32, 96>}, {pipeline_mode = #tpu.pipeline_mode<synchronous>, transform_indices = @transform_5, window_bounds = array<i64: 2, 1, 96>}, {pipeline_mode = #tpu.pipeline_mode<synchronous>, transform_indices = @transform_6, window_bounds = array<i64: 2, 2, 16, 32>}, {pipeline_mode = #tpu.pipeline_mode<synchronous>, transform_indices = @transform_7, window_bounds = array<i64: 2, 6, 32>}, {pipeline_mode = #tpu.pipeline_mode<synchronous>, transform_indices = @transform_8, window_bounds = array<i64: 2, 32, 128>}, {pipeline_mode = #tpu.pipeline_mode<synchronous>, transform_indices = @transform_9, window_bounds = array<i64: 2, 128, 32>}, {pipeline_mode = #tpu.pipeline_mode<synchronous>, transform_indices = @transform_10, window_bounds = array<i64: 2, 2, 128>}, {pipeline_mode = #tpu.pipeline_mode<synchronous>, transform_indices = @transform_11, window_bounds = array<i64: 2, 32, 128>}, {pipeline_mode = #tpu.pipeline_mode<synchronous>, transform_indices = @transform_12, window_bounds = array<i64: 2, 32, 128>}, {pipeline_mode = #tpu.pipeline_mode<synchronous>, transform_indices = @transform_13, window_bounds = array<i64: 32, 128>}, {pipeline_mode = #tpu.pipeline_mode<synchronous>, transform_indices = @transform_14, window_bounds = array<i64: 1, 128>}, {transform_indices = @transform_15, window_bounds = array<i64: 1, 1, 128>}]} {
    %c0 = arith.constant 0 : index
    %c0_0 = arith.constant 0 : index
    %0 = vector.load %arg4[%c0, %c0_0] : memref<3x32xf32, #tpu.memory_space<vmem>>, vector<3x32xf32>
    %c0_1 = arith.constant 0 : index
    %c0_2 = arith.constant 0 : index
    %c0_3 = arith.constant 0 : index
    %1 = vector.load %arg1[%c0_1, %c0_2, %c0_3] : memref<1x8x64xbf16, #tpu.memory_space<vmem>>, vector<1x8x64xbf16>
    %2 = vector.shape_cast %1 : vector<1x8x64xbf16> to vector<8x64xbf16>
    %c0_4 = arith.constant 0 : index
    %c0_5 = arith.constant 0 : index
    %3 = vector.load %arg3[%c0_4, %c0_5] : memref<64x32xbf16, #tpu.memory_space<vmem>>, vector<64x32xbf16>
    %cst = arith.constant dense<0.000000e+00> : vector<8x32xf32>
    %4 = tpu.matmul %2, %3, %cst {dimension_numbers = #tpu.dot_dimension_numbers<[1], [0], [0], [1], [0, 0, 1, 1], [], []>} : vector<8x64xbf16>, vector<64x32xbf16>, vector<8x32xf32> -> vector<8x32xf32>
    %5 = vector.extract_strided_slice %0 {offsets = [0, 0], sizes = [1, 32], strides = [1, 1]} : vector<3x32xf32> to vector<1x32xf32>
    %6 = vector.broadcast %5 : vector<1x32xf32> to vector<8x32xf32>
    %7 = arith.addf %4, %6 : vector<8x32xf32>
    %8 = vector.extract_strided_slice %0 {offsets = [1, 0], sizes = [1, 32], strides = [1, 1]} : vector<3x32xf32> to vector<1x32xf32>
    %9 = vector.extract_strided_slice %0 {offsets = [2, 0], sizes = [1, 32], strides = [1, 1]} : vector<3x32xf32> to vector<1x32xf32>
    %cst_6 = arith.constant dense<0.000000e+00> : vector<8xf32>
    %10 = vector.multi_reduction <add>, %7, %cst_6 [1] : vector<8x32xf32> to vector<8xf32>
    %11 = vector.shape_cast %10 : vector<8xf32> to vector<8x1xf32>
    %cst_7 = arith.constant 3.200000e+01 : f32
    %12 = vector.broadcast %cst_7 : f32 to vector<8x1xf32>
    %13 = arith.divf %11, %12 : vector<8x1xf32>
    %14 = vector.broadcast %13 : vector<8x1xf32> to vector<8x32xf32>
    %15 = arith.subf %7, %14 : vector<8x32xf32>
    %16 = arith.mulf %15, %15 : vector<8x32xf32>
    %cst_8 = arith.constant dense<0.000000e+00> : vector<8xf32>
    %17 = vector.multi_reduction <add>, %16, %cst_8 [1] : vector<8x32xf32> to vector<8xf32>
    %18 = vector.shape_cast %17 : vector<8xf32> to vector<8x1xf32>
    %cst_9 = arith.constant 3.200000e+01 : f32
    %19 = vector.broadcast %cst_9 : f32 to vector<8x1xf32>
    %20 = arith.divf %18, %19 : vector<8x1xf32>
    %21 = vector.broadcast %13 : vector<8x1xf32> to vector<8x32xf32>
    %22 = arith.subf %7, %21 : vector<8x32xf32>
    %cst_10 = arith.constant 9.99999997E-7 : f32
    %23 = vector.broadcast %cst_10 : f32 to vector<8x1xf32>
    %24 = arith.addf %20, %23 : vector<8x1xf32>
    %25 = math.rsqrt %24 : vector<8x1xf32>
    %26 = vector.broadcast %25 : vector<8x1xf32> to vector<8x32xf32>
    %27 = arith.mulf %22, %26 : vector<8x32xf32>
    %28 = vector.broadcast %8 : vector<1x32xf32> to vector<8x32xf32>
    %29 = arith.mulf %27, %28 : vector<8x32xf32>
    %30 = vector.broadcast %9 : vector<1x32xf32> to vector<8x32xf32>
    %31 = arith.addf %29, %30 : vector<8x32xf32>
    %c0_11 = arith.constant 0 : index
    %c0_12 = arith.constant 0 : index
    %c0_13 = arith.constant 0 : index
    %32 = vector.load %arg2[%c0_11, %c0_12, %c0_13] : memref<1x8x8xf32, #tpu.memory_space<vmem>>, vector<1x8x8xf32>
    %33 = vector.shape_cast %32 : vector<1x8x8xf32> to vector<8x8xf32>
    %c0_14 = arith.constant 0 : index
    %c0_15 = arith.constant 0 : index
    %c0_16 = arith.constant 0 : index
    %34 = vector.load %arg8[%c0_14, %c0_15, %c0_16] : memref<2x6x32xf32, #tpu.memory_space<vmem>>, vector<1x6x32xf32>
    %35 = vector.shape_cast %34 : vector<1x6x32xf32> to vector<6x32xf32>
    %36 = arith.truncf %31 : vector<8x32xf32> to vector<8x32xbf16>
    %c0_17 = arith.constant 0 : index
    %c0_18 = arith.constant 0 : index
    %c0_19 = arith.constant 0 : index
    %37 = vector.load %arg5[%c0_17, %c0_18, %c0_19] : memref<2x32x96xbf16, #tpu.memory_space<vmem>>, vector<1x32x96xbf16>
    %38 = vector.shape_cast %37 : vector<1x32x96xbf16> to vector<32x96xbf16>
    %cst_20 = arith.constant dense<0.000000e+00> : vector<8x96xf32>
    %39 = tpu.matmul %36, %38, %cst_20 {dimension_numbers = #tpu.dot_dimension_numbers<[1], [0], [0], [1], [0, 0, 1, 1], [], []>} : vector<8x32xbf16>, vector<32x96xbf16>, vector<8x96xf32> -> vector<8x96xf32>
    %c0_21 = arith.constant 0 : index
    %c0_22 = arith.constant 0 : index
    %c0_23 = arith.constant 0 : index
    %40 = vector.load %arg6[%c0_21, %c0_22, %c0_23] : memref<2x1x96xf32, #tpu.memory_space<vmem>>, vector<1x1x96xf32>
    %41 = vector.shape_cast %40 : vector<1x1x96xf32> to vector<1x96xf32>
    %42 = vector.broadcast %41 : vector<1x96xf32> to vector<8x96xf32>
    %43 = arith.addf %39, %42 : vector<8x96xf32>
    %44 = vector.extract_strided_slice %43 {offsets = [0, 0], sizes = [8, 32], strides = [1, 1]} : vector<8x96xf32> to vector<8x32xf32>
    %cst_24 = arith.constant 2.500000e-01 : f32
    %45 = vector.broadcast %cst_24 : f32 to vector<8x32xf32>
    %46 = arith.mulf %44, %45 : vector<8x32xf32>
    %47 = arith.truncf %46 : vector<8x32xf32> to vector<8x32xbf16>
    %48 = vector.extract_strided_slice %43 {offsets = [0, 32], sizes = [8, 32], strides = [1, 1]} : vector<8x96xf32> to vector<8x32xf32>
    %49 = arith.truncf %48 : vector<8x32xf32> to vector<8x32xbf16>
    %50 = vector.extract_strided_slice %43 {offsets = [0, 64], sizes = [8, 32], strides = [1, 1]} : vector<8x96xf32> to vector<8x32xf32>
    %51 = arith.truncf %50 : vector<8x32xf32> to vector<8x32xbf16>
    %cst_25 = arith.constant 0.000000e+00 : f32
    %52 = vector.broadcast %cst_25 : f32 to vector<8x32xf32>
    %53 = vector.extract_strided_slice %47 {offsets = [0, 0], sizes = [8, 16], strides = [1, 1]} : vector<8x32xbf16> to vector<8x16xbf16>
    %54 = vector.extract_strided_slice %49 {offsets = [0, 0], sizes = [8, 16], strides = [1, 1]} : vector<8x32xbf16> to vector<8x16xbf16>
    %55 = vector.extract_strided_slice %51 {offsets = [0, 0], sizes = [8, 16], strides = [1, 1]} : vector<8x32xbf16> to vector<8x16xbf16>
    "tpu.trace_start"() <{level = 10 : i32, message = "qd,kd->qk"}> : () -> ()
    %cst_26 = arith.constant dense<0.000000e+00> : vector<8x8xf32>
    %56 = tpu.matmul %53, %54, %cst_26 {dimension_numbers = #tpu.dot_dimension_numbers<[1], [1], [0], [0], [0, 0, 1, 0], [], []>} : vector<8x16xbf16>, vector<8x16xbf16>, vector<8x8xf32> -> vector<8x8xf32>
    "tpu.trace_stop"() : () -> ()
    %57 = arith.addf %56, %33 : vector<8x8xf32>
    %cst_27 = arith.constant dense<0xFF800000> : vector<8xf32>
    %58 = vector.multi_reduction <maximumf>, %57, %cst_27 [1] : vector<8x8xf32> to vector<8xf32>
    %59 = vector.shape_cast %58 : vector<8xf32> to vector<8x1xf32>
    %60 = vector.broadcast %59 : vector<8x1xf32> to vector<8x8xf32>
    %61 = arith.subf %57, %60 : vector<8x8xf32>
    %62 = math.exp %61 : vector<8x8xf32>
    %cst_28 = arith.constant dense<0.000000e+00> : vector<8xf32>
    %63 = vector.multi_reduction <add>, %62, %cst_28 [1] : vector<8x8xf32> to vector<8xf32>
    %64 = vector.shape_cast %63 : vector<8xf32> to vector<8x1xf32>
    %65 = tpu.reciprocal %64 {approx = true} : vector<8x1xf32> -> vector<8x1xf32>
    %66 = vector.broadcast %65 : vector<8x1xf32> to vector<8x8xf32>
    %67 = arith.mulf %62, %66 : vector<8x8xf32>
    %68 = arith.truncf %67 : vector<8x8xf32> to vector<8x8xbf16>
    %cst_29 = arith.constant dense<0.000000e+00> : vector<8x16xf32>
    %69 = tpu.matmul %68, %55, %cst_29 {dimension_numbers = #tpu.dot_dimension_numbers<[1], [0], [0], [1], [0, 0, 1, 1], [], []>} : vector<8x8xbf16>, vector<8x16xbf16>, vector<8x16xf32> -> vector<8x16xf32>
    %70 = arith.truncf %69 : vector<8x16xf32> to vector<8x16xbf16>
    %c0_30 = arith.constant 0 : index
    %c0_31 = arith.constant 0 : index
    %c0_32 = arith.constant 0 : index
    %c0_33 = arith.constant 0 : index
    %71 = vector.load %arg7[%c0_30, %c0_31, %c0_32, %c0_33] : memref<2x2x16x32xbf16, #tpu.memory_space<vmem>>, vector<1x1x16x32xbf16>
    %72 = vector.shape_cast %71 : vector<1x1x16x32xbf16> to vector<16x32xbf16>
    %cst_34 = arith.constant dense<0.000000e+00> : vector<8x32xf32>
    %73 = tpu.matmul %70, %72, %cst_34 {dimension_numbers = #tpu.dot_dimension_numbers<[1], [0], [0], [1], [0, 0, 1, 1], [], []>} : vector<8x16xbf16>, vector<16x32xbf16>, vector<8x32xf32> -> vector<8x32xf32>
    %74 = arith.addf %52, %73 : vector<8x32xf32>
    %75 = vector.extract_strided_slice %47 {offsets = [0, 16], sizes = [8, 16], strides = [1, 1]} : vector<8x32xbf16> to vector<8x16xbf16>
    %76 = vector.extract_strided_slice %49 {offsets = [0, 16], sizes = [8, 16], strides = [1, 1]} : vector<8x32xbf16> to vector<8x16xbf16>
    %77 = vector.extract_strided_slice %51 {offsets = [0, 16], sizes = [8, 16], strides = [1, 1]} : vector<8x32xbf16> to vector<8x16xbf16>
    "tpu.trace_start"() <{level = 10 : i32, message = "qd,kd->qk"}> : () -> ()
    %cst_35 = arith.constant dense<0.000000e+00> : vector<8x8xf32>
    %78 = tpu.matmul %75, %76, %cst_35 {dimension_numbers = #tpu.dot_dimension_numbers<[1], [1], [0], [0], [0, 0, 1, 0], [], []>} : vector<8x16xbf16>, vector<8x16xbf16>, vector<8x8xf32> -> vector<8x8xf32>
    "tpu.trace_stop"() : () -> ()
    %79 = arith.addf %78, %33 : vector<8x8xf32>
    %cst_36 = arith.constant dense<0xFF800000> : vector<8xf32>
    %80 = vector.multi_reduction <maximumf>, %79, %cst_36 [1] : vector<8x8xf32> to vector<8xf32>
    %81 = vector.shape_cast %80 : vector<8xf32> to vector<8x1xf32>
    %82 = vector.broadcast %81 : vector<8x1xf32> to vector<8x8xf32>
    %83 = arith.subf %79, %82 : vector<8x8xf32>
    %84 = math.exp %83 : vector<8x8xf32>
    %cst_37 = arith.constant dense<0.000000e+00> : vector<8xf32>
    %85 = vector.multi_reduction <add>, %84, %cst_37 [1] : vector<8x8xf32> to vector<8xf32>
    %86 = vector.shape_cast %85 : vector<8xf32> to vector<8x1xf32>
    %87 = tpu.reciprocal %86 {approx = true} : vector<8x1xf32> -> vector<8x1xf32>
    %88 = vector.broadcast %87 : vector<8x1xf32> to vector<8x8xf32>
    %89 = arith.mulf %84, %88 : vector<8x8xf32>
    %90 = arith.truncf %89 : vector<8x8xf32> to vector<8x8xbf16>
    %cst_38 = arith.constant dense<0.000000e+00> : vector<8x16xf32>
    %91 = tpu.matmul %90, %77, %cst_38 {dimension_numbers = #tpu.dot_dimension_numbers<[1], [0], [0], [1], [0, 0, 1, 1], [], []>} : vector<8x8xbf16>, vector<8x16xbf16>, vector<8x16xf32> -> vector<8x16xf32>
    %92 = arith.truncf %91 : vector<8x16xf32> to vector<8x16xbf16>
    %c0_39 = arith.constant 0 : index
    %c1 = arith.constant 1 : index
    %c0_40 = arith.constant 0 : index
    %c0_41 = arith.constant 0 : index
    %93 = vector.load %arg7[%c0_39, %c1, %c0_40, %c0_41] : memref<2x2x16x32xbf16, #tpu.memory_space<vmem>>, vector<1x1x16x32xbf16>
    %94 = vector.shape_cast %93 : vector<1x1x16x32xbf16> to vector<16x32xbf16>
    %cst_42 = arith.constant dense<0.000000e+00> : vector<8x32xf32>
    %95 = tpu.matmul %92, %94, %cst_42 {dimension_numbers = #tpu.dot_dimension_numbers<[1], [0], [0], [1], [0, 0, 1, 1], [], []>} : vector<8x16xbf16>, vector<16x32xbf16>, vector<8x32xf32> -> vector<8x32xf32>
    %96 = arith.addf %74, %95 : vector<8x32xf32>
    %97 = vector.extract_strided_slice %35 {offsets = [0, 0], sizes = [1, 32], strides = [1, 1]} : vector<6x32xf32> to vector<1x32xf32>
    %98 = vector.broadcast %97 : vector<1x32xf32> to vector<8x32xf32>
    %99 = arith.addf %96, %98 : vector<8x32xf32>
    %100 = arith.addf %31, %99 : vector<8x32xf32>
    %101 = vector.extract_strided_slice %35 {offsets = [1, 0], sizes = [1, 32], strides = [1, 1]} : vector<6x32xf32> to vector<1x32xf32>
    %102 = vector.extract_strided_slice %35 {offsets = [2, 0], sizes = [1, 32], strides = [1, 1]} : vector<6x32xf32> to vector<1x32xf32>
    %cst_43 = arith.constant dense<0.000000e+00> : vector<8xf32>
    %103 = vector.multi_reduction <add>, %100, %cst_43 [1] : vector<8x32xf32> to vector<8xf32>
    %104 = vector.shape_cast %103 : vector<8xf32> to vector<8x1xf32>
    %cst_44 = arith.constant 3.200000e+01 : f32
    %105 = vector.broadcast %cst_44 : f32 to vector<8x1xf32>
    %106 = arith.divf %104, %105 : vector<8x1xf32>
    %107 = vector.broadcast %106 : vector<8x1xf32> to vector<8x32xf32>
    %108 = arith.subf %100, %107 : vector<8x32xf32>
    %109 = arith.mulf %108, %108 : vector<8x32xf32>
    %cst_45 = arith.constant dense<0.000000e+00> : vector<8xf32>
    %110 = vector.multi_reduction <add>, %109, %cst_45 [1] : vector<8x32xf32> to vector<8xf32>
    %111 = vector.shape_cast %110 : vector<8xf32> to vector<8x1xf32>
    %cst_46 = arith.constant 3.200000e+01 : f32
    %112 = vector.broadcast %cst_46 : f32 to vector<8x1xf32>
    %113 = arith.divf %111, %112 : vector<8x1xf32>
    %114 = vector.broadcast %106 : vector<8x1xf32> to vector<8x32xf32>
    %115 = arith.subf %100, %114 : vector<8x32xf32>
    %cst_47 = arith.constant 9.99999974E-6 : f32
    %116 = vector.broadcast %cst_47 : f32 to vector<8x1xf32>
    %117 = arith.addf %113, %116 : vector<8x1xf32>
    %118 = math.rsqrt %117 : vector<8x1xf32>
    %119 = vector.broadcast %118 : vector<8x1xf32> to vector<8x32xf32>
    %120 = arith.mulf %115, %119 : vector<8x32xf32>
    %121 = vector.broadcast %101 : vector<1x32xf32> to vector<8x32xf32>
    %122 = arith.mulf %120, %121 : vector<8x32xf32>
    %123 = vector.broadcast %102 : vector<1x32xf32> to vector<8x32xf32>
    %124 = arith.addf %122, %123 : vector<8x32xf32>
    %125 = arith.truncf %124 : vector<8x32xf32> to vector<8x32xbf16>
    %c0_48 = arith.constant 0 : index
    %c0_49 = arith.constant 0 : index
    %c0_50 = arith.constant 0 : index
    %126 = vector.load %arg9[%c0_48, %c0_49, %c0_50] : memref<2x32x128xbf16, #tpu.memory_space<vmem>>, vector<1x32x128xbf16>
    %127 = vector.shape_cast %126 : vector<1x32x128xbf16> to vector<32x128xbf16>
    %cst_51 = arith.constant dense<0.000000e+00> : vector<8x128xf32>
    %128 = tpu.matmul %125, %127, %cst_51 {dimension_numbers = #tpu.dot_dimension_numbers<[1], [0], [0], [1], [0, 0, 1, 1], [], []>} : vector<8x32xbf16>, vector<32x128xbf16>, vector<8x128xf32> -> vector<8x128xf32>
    %c0_52 = arith.constant 0 : index
    %c0_53 = arith.constant 0 : index
    %c0_54 = arith.constant 0 : index
    %129 = vector.load %arg11[%c0_52, %c0_53, %c0_54] : memref<2x2x128xf32, #tpu.memory_space<vmem>>, vector<1x2x128xf32>
    %130 = vector.shape_cast %129 : vector<1x2x128xf32> to vector<2x128xf32>
    %131 = vector.extract_strided_slice %130 {offsets = [0, 0], sizes = [1, 128], strides = [1, 1]} : vector<2x128xf32> to vector<1x128xf32>
    %132 = vector.broadcast %131 : vector<1x128xf32> to vector<8x128xf32>
    %133 = arith.addf %128, %132 : vector<8x128xf32>
    %cst_55 = arith.constant 0.000000e+00 : f32
    %134 = vector.broadcast %cst_55 : f32 to vector<8x128xf32>
    %135 = arith.maximumf %133, %134 : vector<8x128xf32>
    %136 = arith.truncf %135 : vector<8x128xf32> to vector<8x128xbf16>
    %c0_56 = arith.constant 0 : index
    %c0_57 = arith.constant 0 : index
    %c0_58 = arith.constant 0 : index
    %137 = vector.load %arg10[%c0_56, %c0_57, %c0_58] : memref<2x128x32xbf16, #tpu.memory_space<vmem>>, vector<1x128x32xbf16>
    %138 = vector.shape_cast %137 : vector<1x128x32xbf16> to vector<128x32xbf16>
    %cst_59 = arith.constant dense<0.000000e+00> : vector<8x32xf32>
    %139 = tpu.matmul %136, %138, %cst_59 {dimension_numbers = #tpu.dot_dimension_numbers<[1], [0], [0], [1], [0, 0, 1, 1], [], []>} : vector<8x128xbf16>, vector<128x32xbf16>, vector<8x32xf32> -> vector<8x32xf32>
    %140 = vector.extract_strided_slice %35 {offsets = [3, 0], sizes = [1, 32], strides = [1, 1]} : vector<6x32xf32> to vector<1x32xf32>
    %141 = vector.broadcast %140 : vector<1x32xf32> to vector<8x32xf32>
    %142 = arith.addf %139, %141 : vector<8x32xf32>
    %143 = arith.addf %124, %142 : vector<8x32xf32>
    %144 = vector.extract_strided_slice %35 {offsets = [4, 0], sizes = [1, 32], strides = [1, 1]} : vector<6x32xf32> to vector<1x32xf32>
    %145 = vector.extract_strided_slice %35 {offsets = [5, 0], sizes = [1, 32], strides = [1, 1]} : vector<6x32xf32> to vector<1x32xf32>
    %cst_60 = arith.constant dense<0.000000e+00> : vector<8xf32>
    %146 = vector.multi_reduction <add>, %143, %cst_60 [1] : vector<8x32xf32> to vector<8xf32>
    %147 = vector.shape_cast %146 : vector<8xf32> to vector<8x1xf32>
    %cst_61 = arith.constant 3.200000e+01 : f32
    %148 = vector.broadcast %cst_61 : f32 to vector<8x1xf32>
    %149 = arith.divf %147, %148 : vector<8x1xf32>
    %150 = vector.broadcast %149 : vector<8x1xf32> to vector<8x32xf32>
    %151 = arith.subf %143, %150 : vector<8x32xf32>
    %152 = arith.mulf %151, %151 : vector<8x32xf32>
    %cst_62 = arith.constant dense<0.000000e+00> : vector<8xf32>
    %153 = vector.multi_reduction <add>, %152, %cst_62 [1] : vector<8x32xf32> to vector<8xf32>
    %154 = vector.shape_cast %153 : vector<8xf32> to vector<8x1xf32>
    %cst_63 = arith.constant 3.200000e+01 : f32
    %155 = vector.broadcast %cst_63 : f32 to vector<8x1xf32>
    %156 = arith.divf %154, %155 : vector<8x1xf32>
    %157 = vector.broadcast %149 : vector<8x1xf32> to vector<8x32xf32>
    %158 = arith.subf %143, %157 : vector<8x32xf32>
    %cst_64 = arith.constant 9.99999974E-6 : f32
    %159 = vector.broadcast %cst_64 : f32 to vector<8x1xf32>
    %160 = arith.addf %156, %159 : vector<8x1xf32>
    %161 = math.rsqrt %160 : vector<8x1xf32>
    %162 = vector.broadcast %161 : vector<8x1xf32> to vector<8x32xf32>
    %163 = arith.mulf %158, %162 : vector<8x32xf32>
    %164 = vector.broadcast %144 : vector<1x32xf32> to vector<8x32xf32>
    %165 = arith.mulf %163, %164 : vector<8x32xf32>
    %166 = vector.broadcast %145 : vector<1x32xf32> to vector<8x32xf32>
    %167 = arith.addf %165, %166 : vector<8x32xf32>
    %c1_65 = arith.constant 1 : index
    %c0_66 = arith.constant 0 : index
    %c0_67 = arith.constant 0 : index
    %168 = vector.load %arg8[%c1_65, %c0_66, %c0_67] : memref<2x6x32xf32, #tpu.memory_space<vmem>>, vector<1x6x32xf32>
    %169 = vector.shape_cast %168 : vector<1x6x32xf32> to vector<6x32xf32>
    %170 = arith.truncf %167 : vector<8x32xf32> to vector<8x32xbf16>
    %c1_68 = arith.constant 1 : index
    %c0_69 = arith.constant 0 : index
    %c0_70 = arith.constant 0 : index
    %171 = vector.load %arg5[%c1_68, %c0_69, %c0_70] : memref<2x32x96xbf16, #tpu.memory_space<vmem>>, vector<1x32x96xbf16>
    %172 = vector.shape_cast %171 : vector<1x32x96xbf16> to vector<32x96xbf16>
    %cst_71 = arith.constant dense<0.000000e+00> : vector<8x96xf32>
    %173 = tpu.matmul %170, %172, %cst_71 {dimension_numbers = #tpu.dot_dimension_numbers<[1], [0], [0], [1], [0, 0, 1, 1], [], []>} : vector<8x32xbf16>, vector<32x96xbf16>, vector<8x96xf32> -> vector<8x96xf32>
    %c1_72 = arith.constant 1 : index
    %c0_73 = arith.constant 0 : index
    %c0_74 = arith.constant 0 : index
    %174 = vector.load %arg6[%c1_72, %c0_73, %c0_74] : memref<2x1x96xf32, #tpu.memory_space<vmem>>, vector<1x1x96xf32>
    %175 = vector.shape_cast %174 : vector<1x1x96xf32> to vector<1x96xf32>
    %176 = vector.broadcast %175 : vector<1x96xf32> to vector<8x96xf32>
    %177 = arith.addf %173, %176 : vector<8x96xf32>
    %178 = vector.extract_strided_slice %177 {offsets = [0, 0], sizes = [8, 32], strides = [1, 1]} : vector<8x96xf32> to vector<8x32xf32>
    %cst_75 = arith.constant 2.500000e-01 : f32
    %179 = vector.broadcast %cst_75 : f32 to vector<8x32xf32>
    %180 = arith.mulf %178, %179 : vector<8x32xf32>
    %181 = arith.truncf %180 : vector<8x32xf32> to vector<8x32xbf16>
    %182 = vector.extract_strided_slice %177 {offsets = [0, 32], sizes = [8, 32], strides = [1, 1]} : vector<8x96xf32> to vector<8x32xf32>
    %183 = arith.truncf %182 : vector<8x32xf32> to vector<8x32xbf16>
    %184 = vector.extract_strided_slice %177 {offsets = [0, 64], sizes = [8, 32], strides = [1, 1]} : vector<8x96xf32> to vector<8x32xf32>
    %185 = arith.truncf %184 : vector<8x32xf32> to vector<8x32xbf16>
    %cst_76 = arith.constant 0.000000e+00 : f32
    %186 = vector.broadcast %cst_76 : f32 to vector<8x32xf32>
    %187 = vector.extract_strided_slice %181 {offsets = [0, 0], sizes = [8, 16], strides = [1, 1]} : vector<8x32xbf16> to vector<8x16xbf16>
    %188 = vector.extract_strided_slice %183 {offsets = [0, 0], sizes = [8, 16], strides = [1, 1]} : vector<8x32xbf16> to vector<8x16xbf16>
    %189 = vector.extract_strided_slice %185 {offsets = [0, 0], sizes = [8, 16], strides = [1, 1]} : vector<8x32xbf16> to vector<8x16xbf16>
    "tpu.trace_start"() <{level = 10 : i32, message = "qd,kd->qk"}> : () -> ()
    %cst_77 = arith.constant dense<0.000000e+00> : vector<8x8xf32>
    %190 = tpu.matmul %187, %188, %cst_77 {dimension_numbers = #tpu.dot_dimension_numbers<[1], [1], [0], [0], [0, 0, 1, 0], [], []>} : vector<8x16xbf16>, vector<8x16xbf16>, vector<8x8xf32> -> vector<8x8xf32>
    "tpu.trace_stop"() : () -> ()
    %191 = arith.addf %190, %33 : vector<8x8xf32>
    %cst_78 = arith.constant dense<0xFF800000> : vector<8xf32>
    %192 = vector.multi_reduction <maximumf>, %191, %cst_78 [1] : vector<8x8xf32> to vector<8xf32>
    %193 = vector.shape_cast %192 : vector<8xf32> to vector<8x1xf32>
    %194 = vector.broadcast %193 : vector<8x1xf32> to vector<8x8xf32>
    %195 = arith.subf %191, %194 : vector<8x8xf32>
    %196 = math.exp %195 : vector<8x8xf32>
    %cst_79 = arith.constant dense<0.000000e+00> : vector<8xf32>
    %197 = vector.multi_reduction <add>, %196, %cst_79 [1] : vector<8x8xf32> to vector<8xf32>
    %198 = vector.shape_cast %197 : vector<8xf32> to vector<8x1xf32>
    %199 = tpu.reciprocal %198 {approx = true} : vector<8x1xf32> -> vector<8x1xf32>
    %200 = vector.broadcast %199 : vector<8x1xf32> to vector<8x8xf32>
    %201 = arith.mulf %196, %200 : vector<8x8xf32>
    %202 = arith.truncf %201 : vector<8x8xf32> to vector<8x8xbf16>
    %cst_80 = arith.constant dense<0.000000e+00> : vector<8x16xf32>
    %203 = tpu.matmul %202, %189, %cst_80 {dimension_numbers = #tpu.dot_dimension_numbers<[1], [0], [0], [1], [0, 0, 1, 1], [], []>} : vector<8x8xbf16>, vector<8x16xbf16>, vector<8x16xf32> -> vector<8x16xf32>
    %204 = arith.truncf %203 : vector<8x16xf32> to vector<8x16xbf16>
    %c1_81 = arith.constant 1 : index
    %c0_82 = arith.constant 0 : index
    %c0_83 = arith.constant 0 : index
    %c0_84 = arith.constant 0 : index
    %205 = vector.load %arg7[%c1_81, %c0_82, %c0_83, %c0_84] : memref<2x2x16x32xbf16, #tpu.memory_space<vmem>>, vector<1x1x16x32xbf16>
    %206 = vector.shape_cast %205 : vector<1x1x16x32xbf16> to vector<16x32xbf16>
    %cst_85 = arith.constant dense<0.000000e+00> : vector<8x32xf32>
    %207 = tpu.matmul %204, %206, %cst_85 {dimension_numbers = #tpu.dot_dimension_numbers<[1], [0], [0], [1], [0, 0, 1, 1], [], []>} : vector<8x16xbf16>, vector<16x32xbf16>, vector<8x32xf32> -> vector<8x32xf32>
    %208 = arith.addf %186, %207 : vector<8x32xf32>
    %209 = vector.extract_strided_slice %181 {offsets = [0, 16], sizes = [8, 16], strides = [1, 1]} : vector<8x32xbf16> to vector<8x16xbf16>
    %210 = vector.extract_strided_slice %183 {offsets = [0, 16], sizes = [8, 16], strides = [1, 1]} : vector<8x32xbf16> to vector<8x16xbf16>
    %211 = vector.extract_strided_slice %185 {offsets = [0, 16], sizes = [8, 16], strides = [1, 1]} : vector<8x32xbf16> to vector<8x16xbf16>
    "tpu.trace_start"() <{level = 10 : i32, message = "qd,kd->qk"}> : () -> ()
    %cst_86 = arith.constant dense<0.000000e+00> : vector<8x8xf32>
    %212 = tpu.matmul %209, %210, %cst_86 {dimension_numbers = #tpu.dot_dimension_numbers<[1], [1], [0], [0], [0, 0, 1, 0], [], []>} : vector<8x16xbf16>, vector<8x16xbf16>, vector<8x8xf32> -> vector<8x8xf32>
    "tpu.trace_stop"() : () -> ()
    %213 = arith.addf %212, %33 : vector<8x8xf32>
    %cst_87 = arith.constant dense<0xFF800000> : vector<8xf32>
    %214 = vector.multi_reduction <maximumf>, %213, %cst_87 [1] : vector<8x8xf32> to vector<8xf32>
    %215 = vector.shape_cast %214 : vector<8xf32> to vector<8x1xf32>
    %216 = vector.broadcast %215 : vector<8x1xf32> to vector<8x8xf32>
    %217 = arith.subf %213, %216 : vector<8x8xf32>
    %218 = math.exp %217 : vector<8x8xf32>
    %cst_88 = arith.constant dense<0.000000e+00> : vector<8xf32>
    %219 = vector.multi_reduction <add>, %218, %cst_88 [1] : vector<8x8xf32> to vector<8xf32>
    %220 = vector.shape_cast %219 : vector<8xf32> to vector<8x1xf32>
    %221 = tpu.reciprocal %220 {approx = true} : vector<8x1xf32> -> vector<8x1xf32>
    %222 = vector.broadcast %221 : vector<8x1xf32> to vector<8x8xf32>
    %223 = arith.mulf %218, %222 : vector<8x8xf32>
    %224 = arith.truncf %223 : vector<8x8xf32> to vector<8x8xbf16>
    %cst_89 = arith.constant dense<0.000000e+00> : vector<8x16xf32>
    %225 = tpu.matmul %224, %211, %cst_89 {dimension_numbers = #tpu.dot_dimension_numbers<[1], [0], [0], [1], [0, 0, 1, 1], [], []>} : vector<8x8xbf16>, vector<8x16xbf16>, vector<8x16xf32> -> vector<8x16xf32>
    %226 = arith.truncf %225 : vector<8x16xf32> to vector<8x16xbf16>
    %c1_90 = arith.constant 1 : index
    %c1_91 = arith.constant 1 : index
    %c0_92 = arith.constant 0 : index
    %c0_93 = arith.constant 0 : index
    %227 = vector.load %arg7[%c1_90, %c1_91, %c0_92, %c0_93] : memref<2x2x16x32xbf16, #tpu.memory_space<vmem>>, vector<1x1x16x32xbf16>
    %228 = vector.shape_cast %227 : vector<1x1x16x32xbf16> to vector<16x32xbf16>
    %cst_94 = arith.constant dense<0.000000e+00> : vector<8x32xf32>
    %229 = tpu.matmul %226, %228, %cst_94 {dimension_numbers = #tpu.dot_dimension_numbers<[1], [0], [0], [1], [0, 0, 1, 1], [], []>} : vector<8x16xbf16>, vector<16x32xbf16>, vector<8x32xf32> -> vector<8x32xf32>
    %230 = arith.addf %208, %229 : vector<8x32xf32>
    %231 = vector.extract_strided_slice %169 {offsets = [0, 0], sizes = [1, 32], strides = [1, 1]} : vector<6x32xf32> to vector<1x32xf32>
    %232 = vector.broadcast %231 : vector<1x32xf32> to vector<8x32xf32>
    %233 = arith.addf %230, %232 : vector<8x32xf32>
    %234 = arith.addf %167, %233 : vector<8x32xf32>
    %235 = vector.extract_strided_slice %169 {offsets = [1, 0], sizes = [1, 32], strides = [1, 1]} : vector<6x32xf32> to vector<1x32xf32>
    %236 = vector.extract_strided_slice %169 {offsets = [2, 0], sizes = [1, 32], strides = [1, 1]} : vector<6x32xf32> to vector<1x32xf32>
    %cst_95 = arith.constant dense<0.000000e+00> : vector<8xf32>
    %237 = vector.multi_reduction <add>, %234, %cst_95 [1] : vector<8x32xf32> to vector<8xf32>
    %238 = vector.shape_cast %237 : vector<8xf32> to vector<8x1xf32>
    %cst_96 = arith.constant 3.200000e+01 : f32
    %239 = vector.broadcast %cst_96 : f32 to vector<8x1xf32>
    %240 = arith.divf %238, %239 : vector<8x1xf32>
    %241 = vector.broadcast %240 : vector<8x1xf32> to vector<8x32xf32>
    %242 = arith.subf %234, %241 : vector<8x32xf32>
    %243 = arith.mulf %242, %242 : vector<8x32xf32>
    %cst_97 = arith.constant dense<0.000000e+00> : vector<8xf32>
    %244 = vector.multi_reduction <add>, %243, %cst_97 [1] : vector<8x32xf32> to vector<8xf32>
    %245 = vector.shape_cast %244 : vector<8xf32> to vector<8x1xf32>
    %cst_98 = arith.constant 3.200000e+01 : f32
    %246 = vector.broadcast %cst_98 : f32 to vector<8x1xf32>
    %247 = arith.divf %245, %246 : vector<8x1xf32>
    %248 = vector.broadcast %240 : vector<8x1xf32> to vector<8x32xf32>
    %249 = arith.subf %234, %248 : vector<8x32xf32>
    %cst_99 = arith.constant 9.99999974E-6 : f32
    %250 = vector.broadcast %cst_99 : f32 to vector<8x1xf32>
    %251 = arith.addf %247, %250 : vector<8x1xf32>
    %252 = math.rsqrt %251 : vector<8x1xf32>
    %253 = vector.broadcast %252 : vector<8x1xf32> to vector<8x32xf32>
    %254 = arith.mulf %249, %253 : vector<8x32xf32>
    %255 = vector.broadcast %235 : vector<1x32xf32> to vector<8x32xf32>
    %256 = arith.mulf %254, %255 : vector<8x32xf32>
    %257 = vector.broadcast %236 : vector<1x32xf32> to vector<8x32xf32>
    %258 = arith.addf %256, %257 : vector<8x32xf32>
    %259 = arith.truncf %258 : vector<8x32xf32> to vector<8x32xbf16>
    %c1_100 = arith.constant 1 : index
    %c0_101 = arith.constant 0 : index
    %c0_102 = arith.constant 0 : index
    %260 = vector.load %arg9[%c1_100, %c0_101, %c0_102] : memref<2x32x128xbf16, #tpu.memory_space<vmem>>, vector<1x32x128xbf16>
    %261 = vector.shape_cast %260 : vector<1x32x128xbf16> to vector<32x128xbf16>
    %cst_103 = arith.constant dense<0.000000e+00> : vector<8x128xf32>
    %262 = tpu.matmul %259, %261, %cst_103 {dimension_numbers = #tpu.dot_dimension_numbers<[1], [0], [0], [1], [0, 0, 1, 1], [], []>} : vector<8x32xbf16>, vector<32x128xbf16>, vector<8x128xf32> -> vector<8x128xf32>
    %c1_104 = arith.constant 1 : index
    %c0_105 = arith.constant 0 : index
    %c0_106 = arith.constant 0 : index
    %263 = vector.load %arg11[%c1_104, %c0_105, %c0_106] : memref<2x2x128xf32, #tpu.memory_space<vmem>>, vector<1x2x128xf32>
    %264 = vector.shape_cast %263 : vector<1x2x128xf32> to vector<2x128xf32>
    %265 = vector.extract_strided_slice %264 {offsets = [0, 0], sizes = [1, 128], strides = [1, 1]} : vector<2x128xf32> to vector<1x128xf32>
    %266 = vector.broadcast %265 : vector<1x128xf32> to vector<8x128xf32>
    %267 = arith.addf %262, %266 : vector<8x128xf32>
    %cst_107 = arith.constant 0.000000e+00 : f32
    %268 = vector.broadcast %cst_107 : f32 to vector<8x128xf32>
    %269 = arith.maximumf %267, %268 : vector<8x128xf32>
    %270 = arith.truncf %269 : vector<8x128xf32> to vector<8x128xbf16>
    %c1_108 = arith.constant 1 : index
    %c0_109 = arith.constant 0 : index
    %c0_110 = arith.constant 0 : index
    %271 = vector.load %arg10[%c1_108, %c0_109, %c0_110] : memref<2x128x32xbf16, #tpu.memory_space<vmem>>, vector<1x128x32xbf16>
    %272 = vector.shape_cast %271 : vector<1x128x32xbf16> to vector<128x32xbf16>
    %cst_111 = arith.constant dense<0.000000e+00> : vector<8x32xf32>
    %273 = tpu.matmul %270, %272, %cst_111 {dimension_numbers = #tpu.dot_dimension_numbers<[1], [0], [0], [1], [0, 0, 1, 1], [], []>} : vector<8x128xbf16>, vector<128x32xbf16>, vector<8x32xf32> -> vector<8x32xf32>
    %274 = vector.extract_strided_slice %169 {offsets = [3, 0], sizes = [1, 32], strides = [1, 1]} : vector<6x32xf32> to vector<1x32xf32>
    %275 = vector.broadcast %274 : vector<1x32xf32> to vector<8x32xf32>
    %276 = arith.addf %273, %275 : vector<8x32xf32>
    %277 = arith.addf %258, %276 : vector<8x32xf32>
    %278 = vector.extract_strided_slice %169 {offsets = [4, 0], sizes = [1, 32], strides = [1, 1]} : vector<6x32xf32> to vector<1x32xf32>
    %279 = vector.extract_strided_slice %169 {offsets = [5, 0], sizes = [1, 32], strides = [1, 1]} : vector<6x32xf32> to vector<1x32xf32>
    %cst_112 = arith.constant dense<0.000000e+00> : vector<8xf32>
    %280 = vector.multi_reduction <add>, %277, %cst_112 [1] : vector<8x32xf32> to vector<8xf32>
    %281 = vector.shape_cast %280 : vector<8xf32> to vector<8x1xf32>
    %cst_113 = arith.constant 3.200000e+01 : f32
    %282 = vector.broadcast %cst_113 : f32 to vector<8x1xf32>
    %283 = arith.divf %281, %282 : vector<8x1xf32>
    %284 = vector.broadcast %283 : vector<8x1xf32> to vector<8x32xf32>
    %285 = arith.subf %277, %284 : vector<8x32xf32>
    %286 = arith.mulf %285, %285 : vector<8x32xf32>
    %cst_114 = arith.constant dense<0.000000e+00> : vector<8xf32>
    %287 = vector.multi_reduction <add>, %286, %cst_114 [1] : vector<8x32xf32> to vector<8xf32>
    %288 = vector.shape_cast %287 : vector<8xf32> to vector<8x1xf32>
    %cst_115 = arith.constant 3.200000e+01 : f32
    %289 = vector.broadcast %cst_115 : f32 to vector<8x1xf32>
    %290 = arith.divf %288, %289 : vector<8x1xf32>
    %291 = vector.broadcast %283 : vector<8x1xf32> to vector<8x32xf32>
    %292 = arith.subf %277, %291 : vector<8x32xf32>
    %cst_116 = arith.constant 9.99999974E-6 : f32
    %293 = vector.broadcast %cst_116 : f32 to vector<8x1xf32>
    %294 = arith.addf %290, %293 : vector<8x1xf32>
    %295 = math.rsqrt %294 : vector<8x1xf32>
    %296 = vector.broadcast %295 : vector<8x1xf32> to vector<8x32xf32>
    %297 = arith.mulf %292, %296 : vector<8x32xf32>
    %298 = vector.broadcast %278 : vector<1x32xf32> to vector<8x32xf32>
    %299 = arith.mulf %297, %298 : vector<8x32xf32>
    %300 = vector.broadcast %279 : vector<1x32xf32> to vector<8x32xf32>
    %301 = arith.addf %299, %300 : vector<8x32xf32>
    %c0_117 = arith.constant 0 : index
    %c0_118 = arith.constant 0 : index
    %c0_119 = arith.constant 0 : index
    %302 = vector.load %arg12[%c0_117, %c0_118, %c0_119] : memref<2x32x128xbf16, #tpu.memory_space<vmem>>, vector<1x32x128xbf16>
    %303 = vector.shape_cast %302 : vector<1x32x128xbf16> to vector<32x128xbf16>
    %c0_120 = arith.constant 0 : index
    %c0_121 = arith.constant 0 : index
    %c0_122 = arith.constant 0 : index
    %304 = vector.load %arg13[%c0_120, %c0_121, %c0_122] : memref<2x32x128xbf16, #tpu.memory_space<vmem>>, vector<1x32x128xbf16>
    %305 = vector.shape_cast %304 : vector<1x32x128xbf16> to vector<32x128xbf16>
    %c0_123 = arith.constant 0 : index
    %c0_124 = arith.constant 0 : index
    %c0_125 = arith.constant 0 : index
    %306 = vector.load %arg11[%c0_123, %c0_124, %c0_125] : memref<2x2x128xf32, #tpu.memory_space<vmem>>, vector<1x2x128xf32>
    %307 = vector.shape_cast %306 : vector<1x2x128xf32> to vector<2x128xf32>
    %308 = vector.extract_strided_slice %307 {offsets = [1, 0], sizes = [1, 128], strides = [1, 1]} : vector<2x128xf32> to vector<1x128xf32>
    %309 = arith.truncf %301 : vector<8x32xf32> to vector<8x32xbf16>
    %cst_126 = arith.constant dense<0.000000e+00> : vector<8x128xf32>
    %310 = tpu.matmul %309, %303, %cst_126 {dimension_numbers = #tpu.dot_dimension_numbers<[1], [0], [0], [1], [0, 0, 1, 1], [], []>} : vector<8x32xbf16>, vector<32x128xbf16>, vector<8x128xf32> -> vector<8x128xf32>
    %311 = vector.broadcast %308 : vector<1x128xf32> to vector<8x128xf32>
    %312 = arith.addf %310, %311 : vector<8x128xf32>
    %cst_127 = arith.constant 0.000000e+00 : f32
    %313 = vector.broadcast %cst_127 : f32 to vector<1x32xf32>
    %cst_128 = arith.constant 0.000000e+00 : f32
    %314 = vector.broadcast %cst_128 : f32 to vector<1x32xf32>
    %315 = vector.extract_strided_slice %312 {offsets = [0, 0], sizes = [1, 128], strides = [1, 1]} : vector<8x128xf32> to vector<1x128xf32>
    %316 = arith.truncf %313 : vector<1x32xf32> to vector<1x32xbf16>
    %cst_129 = arith.constant dense<0.000000e+00> : vector<1x128xf32>
    %317 = tpu.matmul %316, %305, %cst_129 {dimension_numbers = #tpu.dot_dimension_numbers<[1], [0], [0], [1], [0, 0, 1, 1], [], []>} : vector<1x32xbf16>, vector<32x128xbf16>, vector<1x128xf32> -> vector<1x128xf32>
    %318 = arith.addf %315, %317 : vector<1x128xf32>
    %319 = vector.extract_strided_slice %318 {offsets = [0, 0], sizes = [1, 32], strides = [1, 1]} : vector<1x128xf32> to vector<1x32xf32>
    %cst_130 = arith.constant 0.000000e+00 : f32
    %320 = vector.broadcast %cst_130 : f32 to vector<1x32xf32>
    %321 = arith.subf %320, %319 : vector<1x32xf32>
    %322 = math.exp %321 : vector<1x32xf32>
    %cst_131 = arith.constant 1.000000e+00 : f32
    %323 = vector.broadcast %cst_131 : f32 to vector<1x32xf32>
    %324 = arith.addf %323, %322 : vector<1x32xf32>
    %cst_132 = arith.constant 1.000000e+00 : f32
    %325 = vector.broadcast %cst_132 : f32 to vector<1x32xf32>
    %326 = arith.divf %325, %324 : vector<1x32xf32>
    %327 = vector.extract_strided_slice %318 {offsets = [0, 32], sizes = [1, 32], strides = [1, 1]} : vector<1x128xf32> to vector<1x32xf32>
    %cst_133 = arith.constant 0.000000e+00 : f32
    %328 = vector.broadcast %cst_133 : f32 to vector<1x32xf32>
    %329 = arith.subf %328, %327 : vector<1x32xf32>
    %330 = math.exp %329 : vector<1x32xf32>
    %cst_134 = arith.constant 1.000000e+00 : f32
    %331 = vector.broadcast %cst_134 : f32 to vector<1x32xf32>
    %332 = arith.addf %331, %330 : vector<1x32xf32>
    %cst_135 = arith.constant 1.000000e+00 : f32
    %333 = vector.broadcast %cst_135 : f32 to vector<1x32xf32>
    %334 = arith.divf %333, %332 : vector<1x32xf32>
    %335 = vector.extract_strided_slice %318 {offsets = [0, 64], sizes = [1, 32], strides = [1, 1]} : vector<1x128xf32> to vector<1x32xf32>
    %336 = math.tanh %335 : vector<1x32xf32>
    %337 = vector.extract_strided_slice %318 {offsets = [0, 96], sizes = [1, 32], strides = [1, 1]} : vector<1x128xf32> to vector<1x32xf32>
    %cst_136 = arith.constant 0.000000e+00 : f32
    %338 = vector.broadcast %cst_136 : f32 to vector<1x32xf32>
    %339 = arith.subf %338, %337 : vector<1x32xf32>
    %340 = math.exp %339 : vector<1x32xf32>
    %cst_137 = arith.constant 1.000000e+00 : f32
    %341 = vector.broadcast %cst_137 : f32 to vector<1x32xf32>
    %342 = arith.addf %341, %340 : vector<1x32xf32>
    %cst_138 = arith.constant 1.000000e+00 : f32
    %343 = vector.broadcast %cst_138 : f32 to vector<1x32xf32>
    %344 = arith.divf %343, %342 : vector<1x32xf32>
    %345 = arith.mulf %334, %314 : vector<1x32xf32>
    %346 = arith.mulf %326, %336 : vector<1x32xf32>
    %347 = arith.addf %345, %346 : vector<1x32xf32>
    %348 = math.tanh %347 : vector<1x32xf32>
    %349 = arith.mulf %344, %348 : vector<1x32xf32>
    %c0_139 = arith.constant 0 : index
    %c0_140 = arith.constant 0 : index
    %350 = vector.load %arg17[%c0_139, %c0_140] : memref<8x32xf32, #tpu.memory_space<vmem>>, vector<1x32xf32>
    tpu.vector_store %arg17[%c0_139, %c0_140], %349 {strides = array<i32>} : memref<8x32xf32, #tpu.memory_space<vmem>>, vector<1x32xf32>,
    %351 = vector.extract_strided_slice %312 {offsets = [1, 0], sizes = [1, 128], strides = [1, 1]} : vector<8x128xf32> to vector<1x128xf32>
    %352 = arith.truncf %349 : vector<1x32xf32> to vector<1x32xbf16>
    %cst_141 = arith.constant dense<0.000000e+00> : vector<1x128xf32>
    %353 = tpu.matmul %352, %305, %cst_141 {dimension_numbers = #tpu.dot_dimension_numbers<[1], [0], [0], [1], [0, 0, 1, 1], [], []>} : vector<1x32xbf16>, vector<32x128xbf16>, vector<1x128xf32> -> vector<1x128xf32>
    %354 = arith.addf %351, %353 : vector<1x128xf32>
    %355 = vector.extract_strided_slice %354 {offsets = [0, 0], sizes = [1, 32], strides = [1, 1]} : vector<1x128xf32> to vector<1x32xf32>
    %cst_142 = arith.constant 0.000000e+00 : f32
    %356 = vector.broadcast %cst_142 : f32 to vector<1x32xf32>
    %357 = arith.subf %356, %355 : vector<1x32xf32>
    %358 = math.exp %357 : vector<1x32xf32>
    %cst_143 = arith.constant 1.000000e+00 : f32
    %359 = vector.broadcast %cst_143 : f32 to vector<1x32xf32>
    %360 = arith.addf %359, %358 : vector<1x32xf32>
    %cst_144 = arith.constant 1.000000e+00 : f32
    %361 = vector.broadcast %cst_144 : f32 to vector<1x32xf32>
    %362 = arith.divf %361, %360 : vector<1x32xf32>
    %363 = vector.extract_strided_slice %354 {offsets = [0, 32], sizes = [1, 32], strides = [1, 1]} : vector<1x128xf32> to vector<1x32xf32>
    %cst_145 = arith.constant 0.000000e+00 : f32
    %364 = vector.broadcast %cst_145 : f32 to vector<1x32xf32>
    %365 = arith.subf %364, %363 : vector<1x32xf32>
    %366 = math.exp %365 : vector<1x32xf32>
    %cst_146 = arith.constant 1.000000e+00 : f32
    %367 = vector.broadcast %cst_146 : f32 to vector<1x32xf32>
    %368 = arith.addf %367, %366 : vector<1x32xf32>
    %cst_147 = arith.constant 1.000000e+00 : f32
    %369 = vector.broadcast %cst_147 : f32 to vector<1x32xf32>
    %370 = arith.divf %369, %368 : vector<1x32xf32>
    %371 = vector.extract_strided_slice %354 {offsets = [0, 64], sizes = [1, 32], strides = [1, 1]} : vector<1x128xf32> to vector<1x32xf32>
    %372 = math.tanh %371 : vector<1x32xf32>
    %373 = vector.extract_strided_slice %354 {offsets = [0, 96], sizes = [1, 32], strides = [1, 1]} : vector<1x128xf32> to vector<1x32xf32>
    %cst_148 = arith.constant 0.000000e+00 : f32
    %374 = vector.broadcast %cst_148 : f32 to vector<1x32xf32>
    %375 = arith.subf %374, %373 : vector<1x32xf32>
    %376 = math.exp %375 : vector<1x32xf32>
    %cst_149 = arith.constant 1.000000e+00 : f32
    %377 = vector.broadcast %cst_149 : f32 to vector<1x32xf32>
    %378 = arith.addf %377, %376 : vector<1x32xf32>
    %cst_150 = arith.constant 1.000000e+00 : f32
    %379 = vector.broadcast %cst_150 : f32 to vector<1x32xf32>
    %380 = arith.divf %379, %378 : vector<1x32xf32>
    %381 = arith.mulf %370, %347 : vector<1x32xf32>
    %382 = arith.mulf %362, %372 : vector<1x32xf32>
    %383 = arith.addf %381, %382 : vector<1x32xf32>
    %384 = math.tanh %383 : vector<1x32xf32>
    %385 = arith.mulf %380, %384 : vector<1x32xf32>
    %c1_151 = arith.constant 1 : index
    %c0_152 = arith.constant 0 : index
    %386 = vector.load %arg17[%c1_151, %c0_152] : memref<8x32xf32, #tpu.memory_space<vmem>>, vector<1x32xf32>
    tpu.vector_store %arg17[%c1_151, %c0_152], %385 {strides = array<i32>} : memref<8x32xf32, #tpu.memory_space<vmem>>, vector<1x32xf32>,
    %387 = vector.extract_strided_slice %312 {offsets = [2, 0], sizes = [1, 128], strides = [1, 1]} : vector<8x128xf32> to vector<1x128xf32>
    %388 = arith.truncf %385 : vector<1x32xf32> to vector<1x32xbf16>
    %cst_153 = arith.constant dense<0.000000e+00> : vector<1x128xf32>
    %389 = tpu.matmul %388, %305, %cst_153 {dimension_numbers = #tpu.dot_dimension_numbers<[1], [0], [0], [1], [0, 0, 1, 1], [], []>} : vector<1x32xbf16>, vector<32x128xbf16>, vector<1x128xf32> -> vector<1x128xf32>
    %390 = arith.addf %387, %389 : vector<1x128xf32>
    %391 = vector.extract_strided_slice %390 {offsets = [0, 0], sizes = [1, 32], strides = [1, 1]} : vector<1x128xf32> to vector<1x32xf32>
    %cst_154 = arith.constant 0.000000e+00 : f32
    %392 = vector.broadcast %cst_154 : f32 to vector<1x32xf32>
    %393 = arith.subf %392, %391 : vector<1x32xf32>
    %394 = math.exp %393 : vector<1x32xf32>
    %cst_155 = arith.constant 1.000000e+00 : f32
    %395 = vector.broadcast %cst_155 : f32 to vector<1x32xf32>
    %396 = arith.addf %395, %394 : vector<1x32xf32>
    %cst_156 = arith.constant 1.000000e+00 : f32
    %397 = vector.broadcast %cst_156 : f32 to vector<1x32xf32>
    %398 = arith.divf %397, %396 : vector<1x32xf32>
    %399 = vector.extract_strided_slice %390 {offsets = [0, 32], sizes = [1, 32], strides = [1, 1]} : vector<1x128xf32> to vector<1x32xf32>
    %cst_157 = arith.constant 0.000000e+00 : f32
    %400 = vector.broadcast %cst_157 : f32 to vector<1x32xf32>
    %401 = arith.subf %400, %399 : vector<1x32xf32>
    %402 = math.exp %401 : vector<1x32xf32>
    %cst_158 = arith.constant 1.000000e+00 : f32
    %403 = vector.broadcast %cst_158 : f32 to vector<1x32xf32>
    %404 = arith.addf %403, %402 : vector<1x32xf32>
    %cst_159 = arith.constant 1.000000e+00 : f32
    %405 = vector.broadcast %cst_159 : f32 to vector<1x32xf32>
    %406 = arith.divf %405, %404 : vector<1x32xf32>
    %407 = vector.extract_strided_slice %390 {offsets = [0, 64], sizes = [1, 32], strides = [1, 1]} : vector<1x128xf32> to vector<1x32xf32>
    %408 = math.tanh %407 : vector<1x32xf32>
    %409 = vector.extract_strided_slice %390 {offsets = [0, 96], sizes = [1, 32], strides = [1, 1]} : vector<1x128xf32> to vector<1x32xf32>
    %cst_160 = arith.constant 0.000000e+00 : f32
    %410 = vector.broadcast %cst_160 : f32 to vector<1x32xf32>
    %411 = arith.subf %410, %409 : vector<1x32xf32>
    %412 = math.exp %411 : vector<1x32xf32>
    %cst_161 = arith.constant 1.000000e+00 : f32
    %413 = vector.broadcast %cst_161 : f32 to vector<1x32xf32>
    %414 = arith.addf %413, %412 : vector<1x32xf32>
    %cst_162 = arith.constant 1.000000e+00 : f32
    %415 = vector.broadcast %cst_162 : f32 to vector<1x32xf32>
    %416 = arith.divf %415, %414 : vector<1x32xf32>
    %417 = arith.mulf %406, %383 : vector<1x32xf32>
    %418 = arith.mulf %398, %408 : vector<1x32xf32>
    %419 = arith.addf %417, %418 : vector<1x32xf32>
    %420 = math.tanh %419 : vector<1x32xf32>
    %421 = arith.mulf %416, %420 : vector<1x32xf32>
    %c2 = arith.constant 2 : index
    %c0_163 = arith.constant 0 : index
    %422 = vector.load %arg17[%c2, %c0_163] : memref<8x32xf32, #tpu.memory_space<vmem>>, vector<1x32xf32>
    tpu.vector_store %arg17[%c2, %c0_163], %421 {strides = array<i32>} : memref<8x32xf32, #tpu.memory_space<vmem>>, vector<1x32xf32>,
    %423 = vector.extract_strided_slice %312 {offsets = [3, 0], sizes = [1, 128], strides = [1, 1]} : vector<8x128xf32> to vector<1x128xf32>
    %424 = arith.truncf %421 : vector<1x32xf32> to vector<1x32xbf16>
    %cst_164 = arith.constant dense<0.000000e+00> : vector<1x128xf32>
    %425 = tpu.matmul %424, %305, %cst_164 {dimension_numbers = #tpu.dot_dimension_numbers<[1], [0], [0], [1], [0, 0, 1, 1], [], []>} : vector<1x32xbf16>, vector<32x128xbf16>, vector<1x128xf32> -> vector<1x128xf32>
    %426 = arith.addf %423, %425 : vector<1x128xf32>
    %427 = vector.extract_strided_slice %426 {offsets = [0, 0], sizes = [1, 32], strides = [1, 1]} : vector<1x128xf32> to vector<1x32xf32>
    %cst_165 = arith.constant 0.000000e+00 : f32
    %428 = vector.broadcast %cst_165 : f32 to vector<1x32xf32>
    %429 = arith.subf %428, %427 : vector<1x32xf32>
    %430 = math.exp %429 : vector<1x32xf32>
    %cst_166 = arith.constant 1.000000e+00 : f32
    %431 = vector.broadcast %cst_166 : f32 to vector<1x32xf32>
    %432 = arith.addf %431, %430 : vector<1x32xf32>
    %cst_167 = arith.constant 1.000000e+00 : f32
    %433 = vector.broadcast %cst_167 : f32 to vector<1x32xf32>
    %434 = arith.divf %433, %432 : vector<1x32xf32>
    %435 = vector.extract_strided_slice %426 {offsets = [0, 32], sizes = [1, 32], strides = [1, 1]} : vector<1x128xf32> to vector<1x32xf32>
    %cst_168 = arith.constant 0.000000e+00 : f32
    %436 = vector.broadcast %cst_168 : f32 to vector<1x32xf32>
    %437 = arith.subf %436, %435 : vector<1x32xf32>
    %438 = math.exp %437 : vector<1x32xf32>
    %cst_169 = arith.constant 1.000000e+00 : f32
    %439 = vector.broadcast %cst_169 : f32 to vector<1x32xf32>
    %440 = arith.addf %439, %438 : vector<1x32xf32>
    %cst_170 = arith.constant 1.000000e+00 : f32
    %441 = vector.broadcast %cst_170 : f32 to vector<1x32xf32>
    %442 = arith.divf %441, %440 : vector<1x32xf32>
    %443 = vector.extract_strided_slice %426 {offsets = [0, 64], sizes = [1, 32], strides = [1, 1]} : vector<1x128xf32> to vector<1x32xf32>
    %444 = math.tanh %443 : vector<1x32xf32>
    %445 = vector.extract_strided_slice %426 {offsets = [0, 96], sizes = [1, 32], strides = [1, 1]} : vector<1x128xf32> to vector<1x32xf32>
    %cst_171 = arith.constant 0.000000e+00 : f32
    %446 = vector.broadcast %cst_171 : f32 to vector<1x32xf32>
    %447 = arith.subf %446, %445 : vector<1x32xf32>
    %448 = math.exp %447 : vector<1x32xf32>
    %cst_172 = arith.constant 1.000000e+00 : f32
    %449 = vector.broadcast %cst_172 : f32 to vector<1x32xf32>
    %450 = arith.addf %449, %448 : vector<1x32xf32>
    %cst_173 = arith.constant 1.000000e+00 : f32
    %451 = vector.broadcast %cst_173 : f32 to vector<1x32xf32>
    %452 = arith.divf %451, %450 : vector<1x32xf32>
    %453 = arith.mulf %442, %419 : vector<1x32xf32>
    %454 = arith.mulf %434, %444 : vector<1x32xf32>
    %455 = arith.addf %453, %454 : vector<1x32xf32>
    %456 = math.tanh %455 : vector<1x32xf32>
    %457 = arith.mulf %452, %456 : vector<1x32xf32>
    %c3 = arith.constant 3 : index
    %c0_174 = arith.constant 0 : index
    %458 = vector.load %arg17[%c3, %c0_174] : memref<8x32xf32, #tpu.memory_space<vmem>>, vector<1x32xf32>
    tpu.vector_store %arg17[%c3, %c0_174], %457 {strides = array<i32>} : memref<8x32xf32, #tpu.memory_space<vmem>>, vector<1x32xf32>,
    %459 = vector.extract_strided_slice %312 {offsets = [4, 0], sizes = [1, 128], strides = [1, 1]} : vector<8x128xf32> to vector<1x128xf32>
    %460 = arith.truncf %457 : vector<1x32xf32> to vector<1x32xbf16>
    %cst_175 = arith.constant dense<0.000000e+00> : vector<1x128xf32>
    %461 = tpu.matmul %460, %305, %cst_175 {dimension_numbers = #tpu.dot_dimension_numbers<[1], [0], [0], [1], [0, 0, 1, 1], [], []>} : vector<1x32xbf16>, vector<32x128xbf16>, vector<1x128xf32> -> vector<1x128xf32>
    %462 = arith.addf %459, %461 : vector<1x128xf32>
    %463 = vector.extract_strided_slice %462 {offsets = [0, 0], sizes = [1, 32], strides = [1, 1]} : vector<1x128xf32> to vector<1x32xf32>
    %cst_176 = arith.constant 0.000000e+00 : f32
    %464 = vector.broadcast %cst_176 : f32 to vector<1x32xf32>
    %465 = arith.subf %464, %463 : vector<1x32xf32>
    %466 = math.exp %465 : vector<1x32xf32>
    %cst_177 = arith.constant 1.000000e+00 : f32
    %467 = vector.broadcast %cst_177 : f32 to vector<1x32xf32>
    %468 = arith.addf %467, %466 : vector<1x32xf32>
    %cst_178 = arith.constant 1.000000e+00 : f32
    %469 = vector.broadcast %cst_178 : f32 to vector<1x32xf32>
    %470 = arith.divf %469, %468 : vector<1x32xf32>
    %471 = vector.extract_strided_slice %462 {offsets = [0, 32], sizes = [1, 32], strides = [1, 1]} : vector<1x128xf32> to vector<1x32xf32>
    %cst_179 = arith.constant 0.000000e+00 : f32
    %472 = vector.broadcast %cst_179 : f32 to vector<1x32xf32>
    %473 = arith.subf %472, %471 : vector<1x32xf32>
    %474 = math.exp %473 : vector<1x32xf32>
    %cst_180 = arith.constant 1.000000e+00 : f32
    %475 = vector.broadcast %cst_180 : f32 to vector<1x32xf32>
    %476 = arith.addf %475, %474 : vector<1x32xf32>
    %cst_181 = arith.constant 1.000000e+00 : f32
    %477 = vector.broadcast %cst_181 : f32 to vector<1x32xf32>
    %478 = arith.divf %477, %476 : vector<1x32xf32>
    %479 = vector.extract_strided_slice %462 {offsets = [0, 64], sizes = [1, 32], strides = [1, 1]} : vector<1x128xf32> to vector<1x32xf32>
    %480 = math.tanh %479 : vector<1x32xf32>
    %481 = vector.extract_strided_slice %462 {offsets = [0, 96], sizes = [1, 32], strides = [1, 1]} : vector<1x128xf32> to vector<1x32xf32>
    %cst_182 = arith.constant 0.000000e+00 : f32
    %482 = vector.broadcast %cst_182 : f32 to vector<1x32xf32>
    %483 = arith.subf %482, %481 : vector<1x32xf32>
    %484 = math.exp %483 : vector<1x32xf32>
    %cst_183 = arith.constant 1.000000e+00 : f32
    %485 = vector.broadcast %cst_183 : f32 to vector<1x32xf32>
    %486 = arith.addf %485, %484 : vector<1x32xf32>
    %cst_184 = arith.constant 1.000000e+00 : f32
    %487 = vector.broadcast %cst_184 : f32 to vector<1x32xf32>
    %488 = arith.divf %487, %486 : vector<1x32xf32>
    %489 = arith.mulf %478, %455 : vector<1x32xf32>
    %490 = arith.mulf %470, %480 : vector<1x32xf32>
    %491 = arith.addf %489, %490 : vector<1x32xf32>
    %492 = math.tanh %491 : vector<1x32xf32>
    %493 = arith.mulf %488, %492 : vector<1x32xf32>
    %c4 = arith.constant 4 : index
    %c0_185 = arith.constant 0 : index
    %494 = vector.load %arg17[%c4, %c0_185] : memref<8x32xf32, #tpu.memory_space<vmem>>, vector<1x32xf32>
    tpu.vector_store %arg17[%c4, %c0_185], %493 {strides = array<i32>} : memref<8x32xf32, #tpu.memory_space<vmem>>, vector<1x32xf32>,
    %495 = vector.extract_strided_slice %312 {offsets = [5, 0], sizes = [1, 128], strides = [1, 1]} : vector<8x128xf32> to vector<1x128xf32>
    %496 = arith.truncf %493 : vector<1x32xf32> to vector<1x32xbf16>
    %cst_186 = arith.constant dense<0.000000e+00> : vector<1x128xf32>
    %497 = tpu.matmul %496, %305, %cst_186 {dimension_numbers = #tpu.dot_dimension_numbers<[1], [0], [0], [1], [0, 0, 1, 1], [], []>} : vector<1x32xbf16>, vector<32x128xbf16>, vector<1x128xf32> -> vector<1x128xf32>
    %498 = arith.addf %495, %497 : vector<1x128xf32>
    %499 = vector.extract_strided_slice %498 {offsets = [0, 0], sizes = [1, 32], strides = [1, 1]} : vector<1x128xf32> to vector<1x32xf32>
    %cst_187 = arith.constant 0.000000e+00 : f32
    %500 = vector.broadcast %cst_187 : f32 to vector<1x32xf32>
    %501 = arith.subf %500, %499 : vector<1x32xf32>
    %502 = math.exp %501 : vector<1x32xf32>
    %cst_188 = arith.constant 1.000000e+00 : f32
    %503 = vector.broadcast %cst_188 : f32 to vector<1x32xf32>
    %504 = arith.addf %503, %502 : vector<1x32xf32>
    %cst_189 = arith.constant 1.000000e+00 : f32
    %505 = vector.broadcast %cst_189 : f32 to vector<1x32xf32>
    %506 = arith.divf %505, %504 : vector<1x32xf32>
    %507 = vector.extract_strided_slice %498 {offsets = [0, 32], sizes = [1, 32], strides = [1, 1]} : vector<1x128xf32> to vector<1x32xf32>
    %cst_190 = arith.constant 0.000000e+00 : f32
    %508 = vector.broadcast %cst_190 : f32 to vector<1x32xf32>
    %509 = arith.subf %508, %507 : vector<1x32xf32>
    %510 = math.exp %509 : vector<1x32xf32>
    %cst_191 = arith.constant 1.000000e+00 : f32
    %511 = vector.broadcast %cst_191 : f32 to vector<1x32xf32>
    %512 = arith.addf %511, %510 : vector<1x32xf32>
    %cst_192 = arith.constant 1.000000e+00 : f32
    %513 = vector.broadcast %cst_192 : f32 to vector<1x32xf32>
    %514 = arith.divf %513, %512 : vector<1x32xf32>
    %515 = vector.extract_strided_slice %498 {offsets = [0, 64], sizes = [1, 32], strides = [1, 1]} : vector<1x128xf32> to vector<1x32xf32>
    %516 = math.tanh %515 : vector<1x32xf32>
    %517 = vector.extract_strided_slice %498 {offsets = [0, 96], sizes = [1, 32], strides = [1, 1]} : vector<1x128xf32> to vector<1x32xf32>
    %cst_193 = arith.constant 0.000000e+00 : f32
    %518 = vector.broadcast %cst_193 : f32 to vector<1x32xf32>
    %519 = arith.subf %518, %517 : vector<1x32xf32>
    %520 = math.exp %519 : vector<1x32xf32>
    %cst_194 = arith.constant 1.000000e+00 : f32
    %521 = vector.broadcast %cst_194 : f32 to vector<1x32xf32>
    %522 = arith.addf %521, %520 : vector<1x32xf32>
    %cst_195 = arith.constant 1.000000e+00 : f32
    %523 = vector.broadcast %cst_195 : f32 to vector<1x32xf32>
    %524 = arith.divf %523, %522 : vector<1x32xf32>
    %525 = arith.mulf %514, %491 : vector<1x32xf32>
    %526 = arith.mulf %506, %516 : vector<1x32xf32>
    %527 = arith.addf %525, %526 : vector<1x32xf32>
    %528 = math.tanh %527 : vector<1x32xf32>
    %529 = arith.mulf %524, %528 : vector<1x32xf32>
    %c5 = arith.constant 5 : index
    %c0_196 = arith.constant 0 : index
    %530 = vector.load %arg17[%c5, %c0_196] : memref<8x32xf32, #tpu.memory_space<vmem>>, vector<1x32xf32>
    tpu.vector_store %arg17[%c5, %c0_196], %529 {strides = array<i32>} : memref<8x32xf32, #tpu.memory_space<vmem>>, vector<1x32xf32>,
    %531 = vector.extract_strided_slice %312 {offsets = [6, 0], sizes = [1, 128], strides = [1, 1]} : vector<8x128xf32> to vector<1x128xf32>
    %532 = arith.truncf %529 : vector<1x32xf32> to vector<1x32xbf16>
    %cst_197 = arith.constant dense<0.000000e+00> : vector<1x128xf32>
    %533 = tpu.matmul %532, %305, %cst_197 {dimension_numbers = #tpu.dot_dimension_numbers<[1], [0], [0], [1], [0, 0, 1, 1], [], []>} : vector<1x32xbf16>, vector<32x128xbf16>, vector<1x128xf32> -> vector<1x128xf32>
    %534 = arith.addf %531, %533 : vector<1x128xf32>
    %535 = vector.extract_strided_slice %534 {offsets = [0, 0], sizes = [1, 32], strides = [1, 1]} : vector<1x128xf32> to vector<1x32xf32>
    %cst_198 = arith.constant 0.000000e+00 : f32
    %536 = vector.broadcast %cst_198 : f32 to vector<1x32xf32>
    %537 = arith.subf %536, %535 : vector<1x32xf32>
    %538 = math.exp %537 : vector<1x32xf32>
    %cst_199 = arith.constant 1.000000e+00 : f32
    %539 = vector.broadcast %cst_199 : f32 to vector<1x32xf32>
    %540 = arith.addf %539, %538 : vector<1x32xf32>
    %cst_200 = arith.constant 1.000000e+00 : f32
    %541 = vector.broadcast %cst_200 : f32 to vector<1x32xf32>
    %542 = arith.divf %541, %540 : vector<1x32xf32>
    %543 = vector.extract_strided_slice %534 {offsets = [0, 32], sizes = [1, 32], strides = [1, 1]} : vector<1x128xf32> to vector<1x32xf32>
    %cst_201 = arith.constant 0.000000e+00 : f32
    %544 = vector.broadcast %cst_201 : f32 to vector<1x32xf32>
    %545 = arith.subf %544, %543 : vector<1x32xf32>
    %546 = math.exp %545 : vector<1x32xf32>
    %cst_202 = arith.constant 1.000000e+00 : f32
    %547 = vector.broadcast %cst_202 : f32 to vector<1x32xf32>
    %548 = arith.addf %547, %546 : vector<1x32xf32>
    %cst_203 = arith.constant 1.000000e+00 : f32
    %549 = vector.broadcast %cst_203 : f32 to vector<1x32xf32>
    %550 = arith.divf %549, %548 : vector<1x32xf32>
    %551 = vector.extract_strided_slice %534 {offsets = [0, 64], sizes = [1, 32], strides = [1, 1]} : vector<1x128xf32> to vector<1x32xf32>
    %552 = math.tanh %551 : vector<1x32xf32>
    %553 = vector.extract_strided_slice %534 {offsets = [0, 96], sizes = [1, 32], strides = [1, 1]} : vector<1x128xf32> to vector<1x32xf32>
    %cst_204 = arith.constant 0.000000e+00 : f32
    %554 = vector.broadcast %cst_204 : f32 to vector<1x32xf32>
    %555 = arith.subf %554, %553 : vector<1x32xf32>
    %556 = math.exp %555 : vector<1x32xf32>
    %cst_205 = arith.constant 1.000000e+00 : f32
    %557 = vector.broadcast %cst_205 : f32 to vector<1x32xf32>
    %558 = arith.addf %557, %556 : vector<1x32xf32>
    %cst_206 = arith.constant 1.000000e+00 : f32
    %559 = vector.broadcast %cst_206 : f32 to vector<1x32xf32>
    %560 = arith.divf %559, %558 : vector<1x32xf32>
    %561 = arith.mulf %550, %527 : vector<1x32xf32>
    %562 = arith.mulf %542, %552 : vector<1x32xf32>
    %563 = arith.addf %561, %562 : vector<1x32xf32>
    %564 = math.tanh %563 : vector<1x32xf32>
    %565 = arith.mulf %560, %564 : vector<1x32xf32>
    %c6 = arith.constant 6 : index
    %c0_207 = arith.constant 0 : index
    %566 = vector.load %arg17[%c6, %c0_207] : memref<8x32xf32, #tpu.memory_space<vmem>>, vector<1x32xf32>
    tpu.vector_store %arg17[%c6, %c0_207], %565 {strides = array<i32>} : memref<8x32xf32, #tpu.memory_space<vmem>>, vector<1x32xf32>,
    %567 = vector.extract_strided_slice %312 {offsets = [7, 0], sizes = [1, 128], strides = [1, 1]} : vector<8x128xf32> to vector<1x128xf32>
    %568 = arith.truncf %565 : vector<1x32xf32> to vector<1x32xbf16>
    %cst_208 = arith.constant dense<0.000000e+00> : vector<1x128xf32>
    %569 = tpu.matmul %568, %305, %cst_208 {dimension_numbers = #tpu.dot_dimension_numbers<[1], [0], [0], [1], [0, 0, 1, 1], [], []>} : vector<1x32xbf16>, vector<32x128xbf16>, vector<1x128xf32> -> vector<1x128xf32>
    %570 = arith.addf %567, %569 : vector<1x128xf32>
    %571 = vector.extract_strided_slice %570 {offsets = [0, 0], sizes = [1, 32], strides = [1, 1]} : vector<1x128xf32> to vector<1x32xf32>
    %cst_209 = arith.constant 0.000000e+00 : f32
    %572 = vector.broadcast %cst_209 : f32 to vector<1x32xf32>
    %573 = arith.subf %572, %571 : vector<1x32xf32>
    %574 = math.exp %573 : vector<1x32xf32>
    %cst_210 = arith.constant 1.000000e+00 : f32
    %575 = vector.broadcast %cst_210 : f32 to vector<1x32xf32>
    %576 = arith.addf %575, %574 : vector<1x32xf32>
    %cst_211 = arith.constant 1.000000e+00 : f32
    %577 = vector.broadcast %cst_211 : f32 to vector<1x32xf32>
    %578 = arith.divf %577, %576 : vector<1x32xf32>
    %579 = vector.extract_strided_slice %570 {offsets = [0, 32], sizes = [1, 32], strides = [1, 1]} : vector<1x128xf32> to vector<1x32xf32>
    %cst_212 = arith.constant 0.000000e+00 : f32
    %580 = vector.broadcast %cst_212 : f32 to vector<1x32xf32>
    %581 = arith.subf %580, %579 : vector<1x32xf32>
    %582 = math.exp %581 : vector<1x32xf32>
    %cst_213 = arith.constant 1.000000e+00 : f32
    %583 = vector.broadcast %cst_213 : f32 to vector<1x32xf32>
    %584 = arith.addf %583, %582 : vector<1x32xf32>
    %cst_214 = arith.constant 1.000000e+00 : f32
    %585 = vector.broadcast %cst_214 : f32 to vector<1x32xf32>
    %586 = arith.divf %585, %584 : vector<1x32xf32>
    %587 = vector.extract_strided_slice %570 {offsets = [0, 64], sizes = [1, 32], strides = [1, 1]} : vector<1x128xf32> to vector<1x32xf32>
    %588 = math.tanh %587 : vector<1x32xf32>
    %589 = vector.extract_strided_slice %570 {offsets = [0, 96], sizes = [1, 32], strides = [1, 1]} : vector<1x128xf32> to vector<1x32xf32>
    %cst_215 = arith.constant 0.000000e+00 : f32
    %590 = vector.broadcast %cst_215 : f32 to vector<1x32xf32>
    %591 = arith.subf %590, %589 : vector<1x32xf32>
    %592 = math.exp %591 : vector<1x32xf32>
    %cst_216 = arith.constant 1.000000e+00 : f32
    %593 = vector.broadcast %cst_216 : f32 to vector<1x32xf32>
    %594 = arith.addf %593, %592 : vector<1x32xf32>
    %cst_217 = arith.constant 1.000000e+00 : f32
    %595 = vector.broadcast %cst_217 : f32 to vector<1x32xf32>
    %596 = arith.divf %595, %594 : vector<1x32xf32>
    %597 = arith.mulf %586, %563 : vector<1x32xf32>
    %598 = arith.mulf %578, %588 : vector<1x32xf32>
    %599 = arith.addf %597, %598 : vector<1x32xf32>
    %600 = math.tanh %599 : vector<1x32xf32>
    %601 = arith.mulf %596, %600 : vector<1x32xf32>
    %c7 = arith.constant 7 : index
    %c0_218 = arith.constant 0 : index
    %602 = vector.load %arg17[%c7, %c0_218] : memref<8x32xf32, #tpu.memory_space<vmem>>, vector<1x32xf32>
    tpu.vector_store %arg17[%c7, %c0_218], %601 {strides = array<i32>} : memref<8x32xf32, #tpu.memory_space<vmem>>, vector<1x32xf32>,
    %c0_219 = arith.constant 0 : index
    %c0_220 = arith.constant 0 : index
    %603 = vector.load %arg17[%c0_219, %c0_220] : memref<8x32xf32, #tpu.memory_space<vmem>>, vector<8x32xf32>
    %c1_221 = arith.constant 1 : index
    %c0_222 = arith.constant 0 : index
    %c0_223 = arith.constant 0 : index
    %604 = vector.load %arg12[%c1_221, %c0_222, %c0_223] : memref<2x32x128xbf16, #tpu.memory_space<vmem>>, vector<1x32x128xbf16>
    %605 = vector.shape_cast %604 : vector<1x32x128xbf16> to vector<32x128xbf16>
    %c1_224 = arith.constant 1 : index
    %c0_225 = arith.constant 0 : index
    %c0_226 = arith.constant 0 : index
    %606 = vector.load %arg13[%c1_224, %c0_225, %c0_226] : memref<2x32x128xbf16, #tpu.memory_space<vmem>>, vector<1x32x128xbf16>
    %607 = vector.shape_cast %606 : vector<1x32x128xbf16> to vector<32x128xbf16>
    %c1_227 = arith.constant 1 : index
    %c0_228 = arith.constant 0 : index
    %c0_229 = arith.constant 0 : index
    %608 = vector.load %arg11[%c1_227, %c0_228, %c0_229] : memref<2x2x128xf32, #tpu.memory_space<vmem>>, vector<1x2x128xf32>
    %609 = vector.shape_cast %608 : vector<1x2x128xf32> to vector<2x128xf32>
    %610 = vector.extract_strided_slice %609 {offsets = [1, 0], sizes = [1, 128], strides = [1, 1]} : vector<2x128xf32> to vector<1x128xf32>
    %611 = arith.truncf %603 : vector<8x32xf32> to vector<8x32xbf16>
    %cst_230 = arith.constant dense<0.000000e+00> : vector<8x128xf32>
    %612 = tpu.matmul %611, %605, %cst_230 {dimension_numbers = #tpu.dot_dimension_numbers<[1], [0], [0], [1], [0, 0, 1, 1], [], []>} : vector<8x32xbf16>, vector<32x128xbf16>, vector<8x128xf32> -> vector<8x128xf32>
    %613 = vector.broadcast %610 : vector<1x128xf32> to vector<8x128xf32>
    %614 = arith.addf %612, %613 : vector<8x128xf32>
    %cst_231 = arith.constant 0.000000e+00 : f32
    %615 = vector.broadcast %cst_231 : f32 to vector<1x32xf32>
    %cst_232 = arith.constant 0.000000e+00 : f32
    %616 = vector.broadcast %cst_232 : f32 to vector<1x32xf32>
    %617 = vector.extract_strided_slice %614 {offsets = [0, 0], sizes = [1, 128], strides = [1, 1]} : vector<8x128xf32> to vector<1x128xf32>
    %618 = arith.truncf %615 : vector<1x32xf32> to vector<1x32xbf16>
    %cst_233 = arith.constant dense<0.000000e+00> : vector<1x128xf32>
    %619 = tpu.matmul %618, %607, %cst_233 {dimension_numbers = #tpu.dot_dimension_numbers<[1], [0], [0], [1], [0, 0, 1, 1], [], []>} : vector<1x32xbf16>, vector<32x128xbf16>, vector<1x128xf32> -> vector<1x128xf32>
    %620 = arith.addf %617, %619 : vector<1x128xf32>
    %621 = vector.extract_strided_slice %620 {offsets = [0, 0], sizes = [1, 32], strides = [1, 1]} : vector<1x128xf32> to vector<1x32xf32>
    %cst_234 = arith.constant 0.000000e+00 : f32
    %622 = vector.broadcast %cst_234 : f32 to vector<1x32xf32>
    %623 = arith.subf %622, %621 : vector<1x32xf32>
    %624 = math.exp %623 : vector<1x32xf32>
    %cst_235 = arith.constant 1.000000e+00 : f32
    %625 = vector.broadcast %cst_235 : f32 to vector<1x32xf32>
    %626 = arith.addf %625, %624 : vector<1x32xf32>
    %cst_236 = arith.constant 1.000000e+00 : f32
    %627 = vector.broadcast %cst_236 : f32 to vector<1x32xf32>
    %628 = arith.divf %627, %626 : vector<1x32xf32>
    %629 = vector.extract_strided_slice %620 {offsets = [0, 32], sizes = [1, 32], strides = [1, 1]} : vector<1x128xf32> to vector<1x32xf32>
    %cst_237 = arith.constant 0.000000e+00 : f32
    %630 = vector.broadcast %cst_237 : f32 to vector<1x32xf32>
    %631 = arith.subf %630, %629 : vector<1x32xf32>
    %632 = math.exp %631 : vector<1x32xf32>
    %cst_238 = arith.constant 1.000000e+00 : f32
    %633 = vector.broadcast %cst_238 : f32 to vector<1x32xf32>
    %634 = arith.addf %633, %632 : vector<1x32xf32>
    %cst_239 = arith.constant 1.000000e+00 : f32
    %635 = vector.broadcast %cst_239 : f32 to vector<1x32xf32>
    %636 = arith.divf %635, %634 : vector<1x32xf32>
    %637 = vector.extract_strided_slice %620 {offsets = [0, 64], sizes = [1, 32], strides = [1, 1]} : vector<1x128xf32> to vector<1x32xf32>
    %638 = math.tanh %637 : vector<1x32xf32>
    %639 = vector.extract_strided_slice %620 {offsets = [0, 96], sizes = [1, 32], strides = [1, 1]} : vector<1x128xf32> to vector<1x32xf32>
    %cst_240 = arith.constant 0.000000e+00 : f32
    %640 = vector.broadcast %cst_240 : f32 to vector<1x32xf32>
    %641 = arith.subf %640, %639 : vector<1x32xf32>
    %642 = math.exp %641 : vector<1x32xf32>
    %cst_241 = arith.constant 1.000000e+00 : f32
    %643 = vector.broadcast %cst_241 : f32 to vector<1x32xf32>
    %644 = arith.addf %643, %642 : vector<1x32xf32>
    %cst_242 = arith.constant 1.000000e+00 : f32
    %645 = vector.broadcast %cst_242 : f32 to vector<1x32xf32>
    %646 = arith.divf %645, %644 : vector<1x32xf32>
    %647 = arith.mulf %636, %616 : vector<1x32xf32>
    %648 = arith.mulf %628, %638 : vector<1x32xf32>
    %649 = arith.addf %647, %648 : vector<1x32xf32>
    %650 = math.tanh %649 : vector<1x32xf32>
    %651 = arith.mulf %646, %650 : vector<1x32xf32>
    %652 = vector.extract_strided_slice %614 {offsets = [1, 0], sizes = [1, 128], strides = [1, 1]} : vector<8x128xf32> to vector<1x128xf32>
    %653 = arith.truncf %651 : vector<1x32xf32> to vector<1x32xbf16>
    %cst_243 = arith.constant dense<0.000000e+00> : vector<1x128xf32>
    %654 = tpu.matmul %653, %607, %cst_243 {dimension_numbers = #tpu.dot_dimension_numbers<[1], [0], [0], [1], [0, 0, 1, 1], [], []>} : vector<1x32xbf16>, vector<32x128xbf16>, vector<1x128xf32> -> vector<1x128xf32>
    %655 = arith.addf %652, %654 : vector<1x128xf32>
    %656 = vector.extract_strided_slice %655 {offsets = [0, 0], sizes = [1, 32], strides = [1, 1]} : vector<1x128xf32> to vector<1x32xf32>
    %cst_244 = arith.constant 0.000000e+00 : f32
    %657 = vector.broadcast %cst_244 : f32 to vector<1x32xf32>
    %658 = arith.subf %657, %656 : vector<1x32xf32>
    %659 = math.exp %658 : vector<1x32xf32>
    %cst_245 = arith.constant 1.000000e+00 : f32
    %660 = vector.broadcast %cst_245 : f32 to vector<1x32xf32>
    %661 = arith.addf %660, %659 : vector<1x32xf32>
    %cst_246 = arith.constant 1.000000e+00 : f32
    %662 = vector.broadcast %cst_246 : f32 to vector<1x32xf32>
    %663 = arith.divf %662, %661 : vector<1x32xf32>
    %664 = vector.extract_strided_slice %655 {offsets = [0, 32], sizes = [1, 32], strides = [1, 1]} : vector<1x128xf32> to vector<1x32xf32>
    %cst_247 = arith.constant 0.000000e+00 : f32
    %665 = vector.broadcast %cst_247 : f32 to vector<1x32xf32>
    %666 = arith.subf %665, %664 : vector<1x32xf32>
    %667 = math.exp %666 : vector<1x32xf32>
    %cst_248 = arith.constant 1.000000e+00 : f32
    %668 = vector.broadcast %cst_248 : f32 to vector<1x32xf32>
    %669 = arith.addf %668, %667 : vector<1x32xf32>
    %cst_249 = arith.constant 1.000000e+00 : f32
    %670 = vector.broadcast %cst_249 : f32 to vector<1x32xf32>
    %671 = arith.divf %670, %669 : vector<1x32xf32>
    %672 = vector.extract_strided_slice %655 {offsets = [0, 64], sizes = [1, 32], strides = [1, 1]} : vector<1x128xf32> to vector<1x32xf32>
    %673 = math.tanh %672 : vector<1x32xf32>
    %674 = vector.extract_strided_slice %655 {offsets = [0, 96], sizes = [1, 32], strides = [1, 1]} : vector<1x128xf32> to vector<1x32xf32>
    %cst_250 = arith.constant 0.000000e+00 : f32
    %675 = vector.broadcast %cst_250 : f32 to vector<1x32xf32>
    %676 = arith.subf %675, %674 : vector<1x32xf32>
    %677 = math.exp %676 : vector<1x32xf32>
    %cst_251 = arith.constant 1.000000e+00 : f32
    %678 = vector.broadcast %cst_251 : f32 to vector<1x32xf32>
    %679 = arith.addf %678, %677 : vector<1x32xf32>
    %cst_252 = arith.constant 1.000000e+00 : f32
    %680 = vector.broadcast %cst_252 : f32 to vector<1x32xf32>
    %681 = arith.divf %680, %679 : vector<1x32xf32>
    %682 = arith.mulf %671, %649 : vector<1x32xf32>
    %683 = arith.mulf %663, %673 : vector<1x32xf32>
    %684 = arith.addf %682, %683 : vector<1x32xf32>
    %685 = math.tanh %684 : vector<1x32xf32>
    %686 = arith.mulf %681, %685 : vector<1x32xf32>
    %687 = vector.extract_strided_slice %614 {offsets = [2, 0], sizes = [1, 128], strides = [1, 1]} : vector<8x128xf32> to vector<1x128xf32>
    %688 = arith.truncf %686 : vector<1x32xf32> to vector<1x32xbf16>
    %cst_253 = arith.constant dense<0.000000e+00> : vector<1x128xf32>
    %689 = tpu.matmul %688, %607, %cst_253 {dimension_numbers = #tpu.dot_dimension_numbers<[1], [0], [0], [1], [0, 0, 1, 1], [], []>} : vector<1x32xbf16>, vector<32x128xbf16>, vector<1x128xf32> -> vector<1x128xf32>
    %690 = arith.addf %687, %689 : vector<1x128xf32>
    %691 = vector.extract_strided_slice %690 {offsets = [0, 0], sizes = [1, 32], strides = [1, 1]} : vector<1x128xf32> to vector<1x32xf32>
    %cst_254 = arith.constant 0.000000e+00 : f32
    %692 = vector.broadcast %cst_254 : f32 to vector<1x32xf32>
    %693 = arith.subf %692, %691 : vector<1x32xf32>
    %694 = math.exp %693 : vector<1x32xf32>
    %cst_255 = arith.constant 1.000000e+00 : f32
    %695 = vector.broadcast %cst_255 : f32 to vector<1x32xf32>
    %696 = arith.addf %695, %694 : vector<1x32xf32>
    %cst_256 = arith.constant 1.000000e+00 : f32
    %697 = vector.broadcast %cst_256 : f32 to vector<1x32xf32>
    %698 = arith.divf %697, %696 : vector<1x32xf32>
    %699 = vector.extract_strided_slice %690 {offsets = [0, 32], sizes = [1, 32], strides = [1, 1]} : vector<1x128xf32> to vector<1x32xf32>
    %cst_257 = arith.constant 0.000000e+00 : f32
    %700 = vector.broadcast %cst_257 : f32 to vector<1x32xf32>
    %701 = arith.subf %700, %699 : vector<1x32xf32>
    %702 = math.exp %701 : vector<1x32xf32>
    %cst_258 = arith.constant 1.000000e+00 : f32
    %703 = vector.broadcast %cst_258 : f32 to vector<1x32xf32>
    %704 = arith.addf %703, %702 : vector<1x32xf32>
    %cst_259 = arith.constant 1.000000e+00 : f32
    %705 = vector.broadcast %cst_259 : f32 to vector<1x32xf32>
    %706 = arith.divf %705, %704 : vector<1x32xf32>
    %707 = vector.extract_strided_slice %690 {offsets = [0, 64], sizes = [1, 32], strides = [1, 1]} : vector<1x128xf32> to vector<1x32xf32>
    %708 = math.tanh %707 : vector<1x32xf32>
    %709 = vector.extract_strided_slice %690 {offsets = [0, 96], sizes = [1, 32], strides = [1, 1]} : vector<1x128xf32> to vector<1x32xf32>
    %cst_260 = arith.constant 0.000000e+00 : f32
    %710 = vector.broadcast %cst_260 : f32 to vector<1x32xf32>
    %711 = arith.subf %710, %709 : vector<1x32xf32>
    %712 = math.exp %711 : vector<1x32xf32>
    %cst_261 = arith.constant 1.000000e+00 : f32
    %713 = vector.broadcast %cst_261 : f32 to vector<1x32xf32>
    %714 = arith.addf %713, %712 : vector<1x32xf32>
    %cst_262 = arith.constant 1.000000e+00 : f32
    %715 = vector.broadcast %cst_262 : f32 to vector<1x32xf32>
    %716 = arith.divf %715, %714 : vector<1x32xf32>
    %717 = arith.mulf %706, %684 : vector<1x32xf32>
    %718 = arith.mulf %698, %708 : vector<1x32xf32>
    %719 = arith.addf %717, %718 : vector<1x32xf32>
    %720 = math.tanh %719 : vector<1x32xf32>
    %721 = arith.mulf %716, %720 : vector<1x32xf32>
    %722 = vector.extract_strided_slice %614 {offsets = [3, 0], sizes = [1, 128], strides = [1, 1]} : vector<8x128xf32> to vector<1x128xf32>
    %723 = arith.truncf %721 : vector<1x32xf32> to vector<1x32xbf16>
    %cst_263 = arith.constant dense<0.000000e+00> : vector<1x128xf32>
    %724 = tpu.matmul %723, %607, %cst_263 {dimension_numbers = #tpu.dot_dimension_numbers<[1], [0], [0], [1], [0, 0, 1, 1], [], []>} : vector<1x32xbf16>, vector<32x128xbf16>, vector<1x128xf32> -> vector<1x128xf32>
    %725 = arith.addf %722, %724 : vector<1x128xf32>
    %726 = vector.extract_strided_slice %725 {offsets = [0, 0], sizes = [1, 32], strides = [1, 1]} : vector<1x128xf32> to vector<1x32xf32>
    %cst_264 = arith.constant 0.000000e+00 : f32
    %727 = vector.broadcast %cst_264 : f32 to vector<1x32xf32>
    %728 = arith.subf %727, %726 : vector<1x32xf32>
    %729 = math.exp %728 : vector<1x32xf32>
    %cst_265 = arith.constant 1.000000e+00 : f32
    %730 = vector.broadcast %cst_265 : f32 to vector<1x32xf32>
    %731 = arith.addf %730, %729 : vector<1x32xf32>
    %cst_266 = arith.constant 1.000000e+00 : f32
    %732 = vector.broadcast %cst_266 : f32 to vector<1x32xf32>
    %733 = arith.divf %732, %731 : vector<1x32xf32>
    %734 = vector.extract_strided_slice %725 {offsets = [0, 32], sizes = [1, 32], strides = [1, 1]} : vector<1x128xf32> to vector<1x32xf32>
    %cst_267 = arith.constant 0.000000e+00 : f32
    %735 = vector.broadcast %cst_267 : f32 to vector<1x32xf32>
    %736 = arith.subf %735, %734 : vector<1x32xf32>
    %737 = math.exp %736 : vector<1x32xf32>
    %cst_268 = arith.constant 1.000000e+00 : f32
    %738 = vector.broadcast %cst_268 : f32 to vector<1x32xf32>
    %739 = arith.addf %738, %737 : vector<1x32xf32>
    %cst_269 = arith.constant 1.000000e+00 : f32
    %740 = vector.broadcast %cst_269 : f32 to vector<1x32xf32>
    %741 = arith.divf %740, %739 : vector<1x32xf32>
    %742 = vector.extract_strided_slice %725 {offsets = [0, 64], sizes = [1, 32], strides = [1, 1]} : vector<1x128xf32> to vector<1x32xf32>
    %743 = math.tanh %742 : vector<1x32xf32>
    %744 = vector.extract_strided_slice %725 {offsets = [0, 96], sizes = [1, 32], strides = [1, 1]} : vector<1x128xf32> to vector<1x32xf32>
    %cst_270 = arith.constant 0.000000e+00 : f32
    %745 = vector.broadcast %cst_270 : f32 to vector<1x32xf32>
    %746 = arith.subf %745, %744 : vector<1x32xf32>
    %747 = math.exp %746 : vector<1x32xf32>
    %cst_271 = arith.constant 1.000000e+00 : f32
    %748 = vector.broadcast %cst_271 : f32 to vector<1x32xf32>
    %749 = arith.addf %748, %747 : vector<1x32xf32>
    %cst_272 = arith.constant 1.000000e+00 : f32
    %750 = vector.broadcast %cst_272 : f32 to vector<1x32xf32>
    %751 = arith.divf %750, %749 : vector<1x32xf32>
    %752 = arith.mulf %741, %719 : vector<1x32xf32>
    %753 = arith.mulf %733, %743 : vector<1x32xf32>
    %754 = arith.addf %752, %753 : vector<1x32xf32>
    %755 = math.tanh %754 : vector<1x32xf32>
    %756 = arith.mulf %751, %755 : vector<1x32xf32>
    %757 = vector.extract_strided_slice %614 {offsets = [4, 0], sizes = [1, 128], strides = [1, 1]} : vector<8x128xf32> to vector<1x128xf32>
    %758 = arith.truncf %756 : vector<1x32xf32> to vector<1x32xbf16>
    %cst_273 = arith.constant dense<0.000000e+00> : vector<1x128xf32>
    %759 = tpu.matmul %758, %607, %cst_273 {dimension_numbers = #tpu.dot_dimension_numbers<[1], [0], [0], [1], [0, 0, 1, 1], [], []>} : vector<1x32xbf16>, vector<32x128xbf16>, vector<1x128xf32> -> vector<1x128xf32>
    %760 = arith.addf %757, %759 : vector<1x128xf32>
    %761 = vector.extract_strided_slice %760 {offsets = [0, 0], sizes = [1, 32], strides = [1, 1]} : vector<1x128xf32> to vector<1x32xf32>
    %cst_274 = arith.constant 0.000000e+00 : f32
    %762 = vector.broadcast %cst_274 : f32 to vector<1x32xf32>
    %763 = arith.subf %762, %761 : vector<1x32xf32>
    %764 = math.exp %763 : vector<1x32xf32>
    %cst_275 = arith.constant 1.000000e+00 : f32
    %765 = vector.broadcast %cst_275 : f32 to vector<1x32xf32>
    %766 = arith.addf %765, %764 : vector<1x32xf32>
    %cst_276 = arith.constant 1.000000e+00 : f32
    %767 = vector.broadcast %cst_276 : f32 to vector<1x32xf32>
    %768 = arith.divf %767, %766 : vector<1x32xf32>
    %769 = vector.extract_strided_slice %760 {offsets = [0, 32], sizes = [1, 32], strides = [1, 1]} : vector<1x128xf32> to vector<1x32xf32>
    %cst_277 = arith.constant 0.000000e+00 : f32
    %770 = vector.broadcast %cst_277 : f32 to vector<1x32xf32>
    %771 = arith.subf %770, %769 : vector<1x32xf32>
    %772 = math.exp %771 : vector<1x32xf32>
    %cst_278 = arith.constant 1.000000e+00 : f32
    %773 = vector.broadcast %cst_278 : f32 to vector<1x32xf32>
    %774 = arith.addf %773, %772 : vector<1x32xf32>
    %cst_279 = arith.constant 1.000000e+00 : f32
    %775 = vector.broadcast %cst_279 : f32 to vector<1x32xf32>
    %776 = arith.divf %775, %774 : vector<1x32xf32>
    %777 = vector.extract_strided_slice %760 {offsets = [0, 64], sizes = [1, 32], strides = [1, 1]} : vector<1x128xf32> to vector<1x32xf32>
    %778 = math.tanh %777 : vector<1x32xf32>
    %779 = vector.extract_strided_slice %760 {offsets = [0, 96], sizes = [1, 32], strides = [1, 1]} : vector<1x128xf32> to vector<1x32xf32>
    %cst_280 = arith.constant 0.000000e+00 : f32
    %780 = vector.broadcast %cst_280 : f32 to vector<1x32xf32>
    %781 = arith.subf %780, %779 : vector<1x32xf32>
    %782 = math.exp %781 : vector<1x32xf32>
    %cst_281 = arith.constant 1.000000e+00 : f32
    %783 = vector.broadcast %cst_281 : f32 to vector<1x32xf32>
    %784 = arith.addf %783, %782 : vector<1x32xf32>
    %cst_282 = arith.constant 1.000000e+00 : f32
    %785 = vector.broadcast %cst_282 : f32 to vector<1x32xf32>
    %786 = arith.divf %785, %784 : vector<1x32xf32>
    %787 = arith.mulf %776, %754 : vector<1x32xf32>
    %788 = arith.mulf %768, %778 : vector<1x32xf32>
    %789 = arith.addf %787, %788 : vector<1x32xf32>
    %790 = math.tanh %789 : vector<1x32xf32>
    %791 = arith.mulf %786, %790 : vector<1x32xf32>
    %792 = vector.extract_strided_slice %614 {offsets = [5, 0], sizes = [1, 128], strides = [1, 1]} : vector<8x128xf32> to vector<1x128xf32>
    %793 = arith.truncf %791 : vector<1x32xf32> to vector<1x32xbf16>
    %cst_283 = arith.constant dense<0.000000e+00> : vector<1x128xf32>
    %794 = tpu.matmul %793, %607, %cst_283 {dimension_numbers = #tpu.dot_dimension_numbers<[1], [0], [0], [1], [0, 0, 1, 1], [], []>} : vector<1x32xbf16>, vector<32x128xbf16>, vector<1x128xf32> -> vector<1x128xf32>
    %795 = arith.addf %792, %794 : vector<1x128xf32>
    %796 = vector.extract_strided_slice %795 {offsets = [0, 0], sizes = [1, 32], strides = [1, 1]} : vector<1x128xf32> to vector<1x32xf32>
    %cst_284 = arith.constant 0.000000e+00 : f32
    %797 = vector.broadcast %cst_284 : f32 to vector<1x32xf32>
    %798 = arith.subf %797, %796 : vector<1x32xf32>
    %799 = math.exp %798 : vector<1x32xf32>
    %cst_285 = arith.constant 1.000000e+00 : f32
    %800 = vector.broadcast %cst_285 : f32 to vector<1x32xf32>
    %801 = arith.addf %800, %799 : vector<1x32xf32>
    %cst_286 = arith.constant 1.000000e+00 : f32
    %802 = vector.broadcast %cst_286 : f32 to vector<1x32xf32>
    %803 = arith.divf %802, %801 : vector<1x32xf32>
    %804 = vector.extract_strided_slice %795 {offsets = [0, 32], sizes = [1, 32], strides = [1, 1]} : vector<1x128xf32> to vector<1x32xf32>
    %cst_287 = arith.constant 0.000000e+00 : f32
    %805 = vector.broadcast %cst_287 : f32 to vector<1x32xf32>
    %806 = arith.subf %805, %804 : vector<1x32xf32>
    %807 = math.exp %806 : vector<1x32xf32>
    %cst_288 = arith.constant 1.000000e+00 : f32
    %808 = vector.broadcast %cst_288 : f32 to vector<1x32xf32>
    %809 = arith.addf %808, %807 : vector<1x32xf32>
    %cst_289 = arith.constant 1.000000e+00 : f32
    %810 = vector.broadcast %cst_289 : f32 to vector<1x32xf32>
    %811 = arith.divf %810, %809 : vector<1x32xf32>
    %812 = vector.extract_strided_slice %795 {offsets = [0, 64], sizes = [1, 32], strides = [1, 1]} : vector<1x128xf32> to vector<1x32xf32>
    %813 = math.tanh %812 : vector<1x32xf32>
    %814 = vector.extract_strided_slice %795 {offsets = [0, 96], sizes = [1, 32], strides = [1, 1]} : vector<1x128xf32> to vector<1x32xf32>
    %cst_290 = arith.constant 0.000000e+00 : f32
    %815 = vector.broadcast %cst_290 : f32 to vector<1x32xf32>
    %816 = arith.subf %815, %814 : vector<1x32xf32>
    %817 = math.exp %816 : vector<1x32xf32>
    %cst_291 = arith.constant 1.000000e+00 : f32
    %818 = vector.broadcast %cst_291 : f32 to vector<1x32xf32>
    %819 = arith.addf %818, %817 : vector<1x32xf32>
    %cst_292 = arith.constant 1.000000e+00 : f32
    %820 = vector.broadcast %cst_292 : f32 to vector<1x32xf32>
    %821 = arith.divf %820, %819 : vector<1x32xf32>
    %822 = arith.mulf %811, %789 : vector<1x32xf32>
    %823 = arith.mulf %803, %813 : vector<1x32xf32>
    %824 = arith.addf %822, %823 : vector<1x32xf32>
    %825 = math.tanh %824 : vector<1x32xf32>
    %826 = arith.mulf %821, %825 : vector<1x32xf32>
    %827 = vector.extract_strided_slice %614 {offsets = [6, 0], sizes = [1, 128], strides = [1, 1]} : vector<8x128xf32> to vector<1x128xf32>
    %828 = arith.truncf %826 : vector<1x32xf32> to vector<1x32xbf16>
    %cst_293 = arith.constant dense<0.000000e+00> : vector<1x128xf32>
    %829 = tpu.matmul %828, %607, %cst_293 {dimension_numbers = #tpu.dot_dimension_numbers<[1], [0], [0], [1], [0, 0, 1, 1], [], []>} : vector<1x32xbf16>, vector<32x128xbf16>, vector<1x128xf32> -> vector<1x128xf32>
    %830 = arith.addf %827, %829 : vector<1x128xf32>
    %831 = vector.extract_strided_slice %830 {offsets = [0, 0], sizes = [1, 32], strides = [1, 1]} : vector<1x128xf32> to vector<1x32xf32>
    %cst_294 = arith.constant 0.000000e+00 : f32
    %832 = vector.broadcast %cst_294 : f32 to vector<1x32xf32>
    %833 = arith.subf %832, %831 : vector<1x32xf32>
    %834 = math.exp %833 : vector<1x32xf32>
    %cst_295 = arith.constant 1.000000e+00 : f32
    %835 = vector.broadcast %cst_295 : f32 to vector<1x32xf32>
    %836 = arith.addf %835, %834 : vector<1x32xf32>
    %cst_296 = arith.constant 1.000000e+00 : f32
    %837 = vector.broadcast %cst_296 : f32 to vector<1x32xf32>
    %838 = arith.divf %837, %836 : vector<1x32xf32>
    %839 = vector.extract_strided_slice %830 {offsets = [0, 32], sizes = [1, 32], strides = [1, 1]} : vector<1x128xf32> to vector<1x32xf32>
    %cst_297 = arith.constant 0.000000e+00 : f32
    %840 = vector.broadcast %cst_297 : f32 to vector<1x32xf32>
    %841 = arith.subf %840, %839 : vector<1x32xf32>
    %842 = math.exp %841 : vector<1x32xf32>
    %cst_298 = arith.constant 1.000000e+00 : f32
    %843 = vector.broadcast %cst_298 : f32 to vector<1x32xf32>
    %844 = arith.addf %843, %842 : vector<1x32xf32>
    %cst_299 = arith.constant 1.000000e+00 : f32
    %845 = vector.broadcast %cst_299 : f32 to vector<1x32xf32>
    %846 = arith.divf %845, %844 : vector<1x32xf32>
    %847 = vector.extract_strided_slice %830 {offsets = [0, 64], sizes = [1, 32], strides = [1, 1]} : vector<1x128xf32> to vector<1x32xf32>
    %848 = math.tanh %847 : vector<1x32xf32>
    %849 = vector.extract_strided_slice %830 {offsets = [0, 96], sizes = [1, 32], strides = [1, 1]} : vector<1x128xf32> to vector<1x32xf32>
    %cst_300 = arith.constant 0.000000e+00 : f32
    %850 = vector.broadcast %cst_300 : f32 to vector<1x32xf32>
    %851 = arith.subf %850, %849 : vector<1x32xf32>
    %852 = math.exp %851 : vector<1x32xf32>
    %cst_301 = arith.constant 1.000000e+00 : f32
    %853 = vector.broadcast %cst_301 : f32 to vector<1x32xf32>
    %854 = arith.addf %853, %852 : vector<1x32xf32>
    %cst_302 = arith.constant 1.000000e+00 : f32
    %855 = vector.broadcast %cst_302 : f32 to vector<1x32xf32>
    %856 = arith.divf %855, %854 : vector<1x32xf32>
    %857 = arith.mulf %846, %824 : vector<1x32xf32>
    %858 = arith.mulf %838, %848 : vector<1x32xf32>
    %859 = arith.addf %857, %858 : vector<1x32xf32>
    %860 = math.tanh %859 : vector<1x32xf32>
    %861 = arith.mulf %856, %860 : vector<1x32xf32>
    %862 = vector.extract_strided_slice %614 {offsets = [7, 0], sizes = [1, 128], strides = [1, 1]} : vector<8x128xf32> to vector<1x128xf32>
    %863 = arith.truncf %861 : vector<1x32xf32> to vector<1x32xbf16>
    %cst_303 = arith.constant dense<0.000000e+00> : vector<1x128xf32>
    %864 = tpu.matmul %863, %607, %cst_303 {dimension_numbers = #tpu.dot_dimension_numbers<[1], [0], [0], [1], [0, 0, 1, 1], [], []>} : vector<1x32xbf16>, vector<32x128xbf16>, vector<1x128xf32> -> vector<1x128xf32>
    %865 = arith.addf %862, %864 : vector<1x128xf32>
    %866 = vector.extract_strided_slice %865 {offsets = [0, 0], sizes = [1, 32], strides = [1, 1]} : vector<1x128xf32> to vector<1x32xf32>
    %cst_304 = arith.constant 0.000000e+00 : f32
    %867 = vector.broadcast %cst_304 : f32 to vector<1x32xf32>
    %868 = arith.subf %867, %866 : vector<1x32xf32>
    %869 = math.exp %868 : vector<1x32xf32>
    %cst_305 = arith.constant 1.000000e+00 : f32
    %870 = vector.broadcast %cst_305 : f32 to vector<1x32xf32>
    %871 = arith.addf %870, %869 : vector<1x32xf32>
    %cst_306 = arith.constant 1.000000e+00 : f32
    %872 = vector.broadcast %cst_306 : f32 to vector<1x32xf32>
    %873 = arith.divf %872, %871 : vector<1x32xf32>
    %874 = vector.extract_strided_slice %865 {offsets = [0, 32], sizes = [1, 32], strides = [1, 1]} : vector<1x128xf32> to vector<1x32xf32>
    %cst_307 = arith.constant 0.000000e+00 : f32
    %875 = vector.broadcast %cst_307 : f32 to vector<1x32xf32>
    %876 = arith.subf %875, %874 : vector<1x32xf32>
    %877 = math.exp %876 : vector<1x32xf32>
    %cst_308 = arith.constant 1.000000e+00 : f32
    %878 = vector.broadcast %cst_308 : f32 to vector<1x32xf32>
    %879 = arith.addf %878, %877 : vector<1x32xf32>
    %cst_309 = arith.constant 1.000000e+00 : f32
    %880 = vector.broadcast %cst_309 : f32 to vector<1x32xf32>
    %881 = arith.divf %880, %879 : vector<1x32xf32>
    %882 = vector.extract_strided_slice %865 {offsets = [0, 64], sizes = [1, 32], strides = [1, 1]} : vector<1x128xf32> to vector<1x32xf32>
    %883 = math.tanh %882 : vector<1x32xf32>
    %884 = vector.extract_strided_slice %865 {offsets = [0, 96], sizes = [1, 32], strides = [1, 1]} : vector<1x128xf32> to vector<1x32xf32>
    %cst_310 = arith.constant 0.000000e+00 : f32
    %885 = vector.broadcast %cst_310 : f32 to vector<1x32xf32>
    %886 = arith.subf %885, %884 : vector<1x32xf32>
    %887 = math.exp %886 : vector<1x32xf32>
    %cst_311 = arith.constant 1.000000e+00 : f32
    %888 = vector.broadcast %cst_311 : f32 to vector<1x32xf32>
    %889 = arith.addf %888, %887 : vector<1x32xf32>
    %cst_312 = arith.constant 1.000000e+00 : f32
    %890 = vector.broadcast %cst_312 : f32 to vector<1x32xf32>
    %891 = arith.divf %890, %889 : vector<1x32xf32>
    %892 = arith.mulf %881, %859 : vector<1x32xf32>
    %893 = arith.mulf %873, %883 : vector<1x32xf32>
    %894 = arith.addf %892, %893 : vector<1x32xf32>
    %895 = math.tanh %894 : vector<1x32xf32>
    %896 = arith.mulf %891, %895 : vector<1x32xf32>
    %897 = arith.truncf %896 : vector<1x32xf32> to vector<1x32xbf16>
    %c0_313 = arith.constant 0 : index
    %c0_314 = arith.constant 0 : index
    %898 = vector.load %arg14[%c0_313, %c0_314] : memref<32x128xbf16, #tpu.memory_space<vmem>>, vector<32x128xbf16>
    %cst_315 = arith.constant dense<0.000000e+00> : vector<1x128xf32>
    %899 = tpu.matmul %897, %898, %cst_315 {dimension_numbers = #tpu.dot_dimension_numbers<[1], [0], [0], [1], [0, 0, 1, 1], [], []>} : vector<1x32xbf16>, vector<32x128xbf16>, vector<1x128xf32> -> vector<1x128xf32>
    %c0_316 = arith.constant 0 : index
    %c0_317 = arith.constant 0 : index
    %900 = vector.load %arg15[%c0_316, %c0_317] : memref<1x128xf32, #tpu.memory_space<vmem>>, vector<1x128xf32>
    %901 = arith.addf %899, %900 : vector<1x128xf32>
    %c0_318 = arith.constant 0 : index
    %c0_319 = arith.constant 0 : index
    %c0_320 = arith.constant 0 : index
    %902 = vector.load %arg16[%c0_318, %c0_319, %c0_320] : memref<1x1x128xf32, #tpu.memory_space<vmem>>, vector<1x1x128xf32>
    %903 = vector.shape_cast %902 : vector<1x1x128xf32> to vector<1x128xf32>
    %904 = vector.shape_cast %901 : vector<1x128xf32> to vector<1x1x128xf32>
    tpu.vector_store %arg16[%c0_318, %c0_319, %c0_320], %904 {strides = array<i32>} : memref<1x1x128xf32, #tpu.memory_space<vmem>>, vector<1x1x128xf32>,
    return
  }
  func.func @transform_0(%arg0: i32) -> (i32, i32, i32) {
    %c0_i32 = arith.constant 0 : i32
    %c0_i32_0 = arith.constant 0 : i32
    %c0_i32_1 = arith.constant 0 : i32
    return %arg0, %c0_i32, %c0_i32_0 : i32, i32, i32
  }
  func.func @transform_1(%arg0: i32) -> (i32, i32, i32) {
    %c0_i32 = arith.constant 0 : i32
    %c0_i32_0 = arith.constant 0 : i32
    %c0_i32_1 = arith.constant 0 : i32
    return %arg0, %c0_i32, %c0_i32_0 : i32, i32, i32
  }
  func.func @transform_2(%arg0: i32) -> (i32, i32) {
    %c0_i32 = arith.constant 0 : i32
    %c0_i32_0 = arith.constant 0 : i32
    %c0_i32_1 = arith.constant 0 : i32
    return %c0_i32, %c0_i32_0 : i32, i32
  }
  func.func @transform_3(%arg0: i32) -> (i32, i32) {
    %c0_i32 = arith.constant 0 : i32
    %c0_i32_0 = arith.constant 0 : i32
    %c0_i32_1 = arith.constant 0 : i32
    return %c0_i32, %c0_i32_0 : i32, i32
  }
  func.func @transform_4(%arg0: i32) -> (i32, i32, i32) {
    %c0_i32 = arith.constant 0 : i32
    %c0_i32_0 = arith.constant 0 : i32
    %c0_i32_1 = arith.constant 0 : i32
    %c0_i32_2 = arith.constant 0 : i32
    return %c0_i32, %c0_i32_0, %c0_i32_1 : i32, i32, i32
  }
  func.func @transform_5(%arg0: i32) -> (i32, i32, i32) {
    %c0_i32 = arith.constant 0 : i32
    %c0_i32_0 = arith.constant 0 : i32
    %c0_i32_1 = arith.constant 0 : i32
    %c0_i32_2 = arith.constant 0 : i32
    return %c0_i32, %c0_i32_0, %c0_i32_1 : i32, i32, i32
  }
  func.func @transform_6(%arg0: i32) -> (i32, i32, i32, i32) {
    %c0_i32 = arith.constant 0 : i32
    %c0_i32_0 = arith.constant 0 : i32
    %c0_i32_1 = arith.constant 0 : i32
    %c0_i32_2 = arith.constant 0 : i32
    %c0_i32_3 = arith.constant 0 : i32
    return %c0_i32, %c0_i32_0, %c0_i32_1, %c0_i32_2 : i32, i32, i32, i32
  }
  func.func @transform_7(%arg0: i32) -> (i32, i32, i32) {
    %c0_i32 = arith.constant 0 : i32
    %c0_i32_0 = arith.constant 0 : i32
    %c0_i32_1 = arith.constant 0 : i32
    %c0_i32_2 = arith.constant 0 : i32
    return %c0_i32, %c0_i32_0, %c0_i32_1 : i32, i32, i32
  }
  func.func @transform_8(%arg0: i32) -> (i32, i32, i32) {
    %c0_i32 = arith.constant 0 : i32
    %c0_i32_0 = arith.constant 0 : i32
    %c0_i32_1 = arith.constant 0 : i32
    %c0_i32_2 = arith.constant 0 : i32
    return %c0_i32, %c0_i32_0, %c0_i32_1 : i32, i32, i32
  }
  func.func @transform_9(%arg0: i32) -> (i32, i32, i32) {
    %c0_i32 = arith.constant 0 : i32
    %c0_i32_0 = arith.constant 0 : i32
    %c0_i32_1 = arith.constant 0 : i32
    %c0_i32_2 = arith.constant 0 : i32
    return %c0_i32, %c0_i32_0, %c0_i32_1 : i32, i32, i32
  }
  func.func @transform_10(%arg0: i32) -> (i32, i32, i32) {
    %c0_i32 = arith.constant 0 : i32
    %c0_i32_0 = arith.constant 0 : i32
    %c0_i32_1 = arith.constant 0 : i32
    %c0_i32_2 = arith.constant 0 : i32
    return %c0_i32, %c0_i32_0, %c0_i32_1 : i32, i32, i32
  }
  func.func @transform_11(%arg0: i32) -> (i32, i32, i32) {
    %c0_i32 = arith.constant 0 : i32
    %c0_i32_0 = arith.constant 0 : i32
    %c0_i32_1 = arith.constant 0 : i32
    %c0_i32_2 = arith.constant 0 : i32
    return %c0_i32, %c0_i32_0, %c0_i32_1 : i32, i32, i32
  }
  func.func @transform_12(%arg0: i32) -> (i32, i32, i32) {
    %c0_i32 = arith.constant 0 : i32
    %c0_i32_0 = arith.constant 0 : i32
    %c0_i32_1 = arith.constant 0 : i32
    %c0_i32_2 = arith.constant 0 : i32
    return %c0_i32, %c0_i32_0, %c0_i32_1 : i32, i32, i32
  }
  func.func @transform_13(%arg0: i32) -> (i32, i32) {
    %c0_i32 = arith.constant 0 : i32
    %c0_i32_0 = arith.constant 0 : i32
    %c0_i32_1 = arith.constant 0 : i32
    return %c0_i32, %c0_i32_0 : i32, i32
  }
  func.func @transform_14(%arg0: i32) -> (i32, i32) {
    %c0_i32 = arith.constant 0 : i32
    %c0_i32_0 = arith.constant 0 : i32
    %c0_i32_1 = arith.constant 0 : i32
    return %c0_i32, %c0_i32_0 : i32, i32
  }
  func.func @transform_15(%arg0: i32) -> (i32, i32, i32) {
    %c0_i32 = arith.constant 0 : i32
    %c0_i32_0 = arith.constant 0 : i32
    %c0_i32_1 = arith.constant 0 : i32
    return %arg0, %c0_i32, %c0_i32_0 : i32, i32, i32
  }
}

</mosaic_0001>

<llo_original>
// kernel: tpu_custom_call.1
$region0: #{tpu_custom_call.1}
  #allocation0 [shape = 'u32[]', space=smem, size = 0x4, offset = 0x4, fixed_abs, tag = 'smem constant byte address 0x4 - core index']
  #allocation1 [shape = 'u32[72,128]{1,0:T(1,128)}', space=vmem, size = 0x9000, scoped, tag = 'internal scratch']
  #allocation2 [shape = 'f32[8,32]{1,0:T(8,128)}', space=vmem, size = 0x1000, scoped, tag = 'scratch operand']
  %s0 = inlined_call_operand.hbm [shape: bf16[2,8,64], index: 0, kind: input, shape index: {}]
  %s1 = inlined_call_operand.vmem [shape: f32[2,8,8], index: 1, kind: input, shape index: {}]
  %s2 = inlined_call_operand.vmem [shape: bf16[64,32], index: 2, kind: input, shape index: {}]
  %s3 = inlined_call_operand.hbm [shape: f32[3,32], index: 3, kind: input, shape index: {}]
  %s4 = inlined_call_operand.vmem [shape: bf16[2,32,96], index: 4, kind: input, shape index: {}]
  %s5 = inlined_call_operand.hbm [shape: f32[2,1,96], index: 5, kind: input, shape index: {}]
  %s6 = inlined_call_operand.vmem [shape: bf16[2,2,16,32], index: 6, kind: input, shape index: {}]
  %s7 = inlined_call_operand.vmem [shape: f32[2,6,32], index: 7, kind: input, shape index: {}]
  %s8 = inlined_call_operand.vmem [shape: bf16[2,32,128], index: 8, kind: input, shape index: {}]
  %s9 = inlined_call_operand.vmem [shape: bf16[2,128,32], index: 9, kind: input, shape index: {}]
  %s10 = inlined_call_operand.vmem [shape: f32[2,2,128], index: 10, kind: input, shape index: {}]
  %s11 = inlined_call_operand.vmem [shape: bf16[2,32,128], index: 11, kind: input, shape index: {}]
  %s12 = inlined_call_operand.vmem [shape: bf16[2,32,128], index: 12, kind: input, shape index: {}]
  %s13 = inlined_call_operand.vmem [shape: bf16[32,128], index: 13, kind: input, shape index: {}]
  %s14 = inlined_call_operand.vmem [shape: f32[1,128], index: 14, kind: input, shape index: {}]
  %s15 = inlined_call_operand.hbm [shape: f32[2,1,128], index: 15, kind: output, shape index: {}]
  %s16 = sld [smem:[#allocation0]]
  $region105: #{tpu_custom_call.1} parent=0
    _
  %s18 = ssub.s32 1, %s16
  %s19 = scalar_select 0, %s18, %s16
  $region1: #{tpu_custom_call.1} parent=0
    #allocation3 [shape = 'u8[4096]{0}', space=vmem, size = 0x1000, scoped, tag = 'input window, operand 0']
    #allocation4 [shape = 's32[2]{0}', space=sflag, size = 0x8, scoped, tag = 'scoped memory for tpu_custom_call.1']
    #allocation5 [shape = 's32[2]{0}', space=sflag, size = 0x8, scoped, tag = 'scoped memory for tpu_custom_call.1']
    #allocation6 [shape = 'u8[2048]{0}', space=vmem, size = 0x800, scoped, tag = 'input window, operand 3, single buffered']
    #allocation7 [shape = 's32[1]{0}', space=sflag, size = 0x4, scoped, tag = 'scoped memory for tpu_custom_call.1']
    #allocation8 [shape = 'u8[1024]{0}', space=vmem, size = 0x400, scoped, tag = 'input window, operand 5, single buffered']
    #allocation9 [shape = 'u8[1024]{0}', space=vmem, size = 0x400, scoped, tag = 'output window, operand 0']
    %20 = vsyncpa [#allocation4], 0
    %s21 = scalar_lea.sflag [#allocation4], 1
    %22 = vsyncpa %s21, 0
    %23 = vsyncpa [#allocation7], 0
    %24 = vsyncpa [#allocation5], 0
    %s25 = scalar_lea.sflag [#allocation5], 1
    %26 = vsyncpa %s25, 0
    loop: start=0, step=1, limit=4
    $region2: #{tpu_custom_call.1} parent=1 // loop_pre_header
      _
    $region3: #{tpu_custom_call.1} parent=1 // loop_header
      %s28 = sphi 0, %s32
      %p29 = scmp.ge.s32.totalorder %s28, 4
      %s38 = sphi 0, %s40
      %s41 = sphi 0, %s38
      %s42 = sphi 0, %s41
      %s58 = sphi 0, %s42
      %s64 = sphi 0, %s66
      %s67 = sphi 0, %s64
      %s68 = sphi 0, %s67
      %s84 = sphi 0, %s68
      %s88 = sphi 0, %s88
      %s90 = sphi 0, %s88
      %s91 = sphi 0, %s90
      %s105 = sphi 0, %s91
      %s109 = sphi 0, %s109
      %s111 = sphi 0, %s109
      %s112 = sphi 0, %s111
      %s126 = sphi 0, %s112
      %s130 = sphi 0, %s130
      %s132 = sphi 0, %s130
      %s133 = sphi 0, %s132
      %s147 = sphi 0, %s133
      %s151 = sphi 0, %s151
      %s153 = sphi 0, %s151
      %s154 = sphi 0, %s153
      %s168 = sphi 0, %s154
      %s172 = sphi 0, %s172
      %s174 = sphi 0, %s172
      %s175 = sphi 0, %s174
      %s189 = sphi 0, %s175
      %s193 = sphi 0, %s193
      %s195 = sphi 0, %s193
      %s196 = sphi 0, %s195
      %s210 = sphi 0, %s196
      %s214 = sphi 0, %s214
      %s216 = sphi 0, %s214
      %s217 = sphi 0, %s216
      %s231 = sphi 0, %s217
      %s235 = sphi 0, %s235
      %s237 = sphi 0, %s235
      %s238 = sphi 0, %s237
      %s252 = sphi 0, %s238
      %s256 = sphi 0, %s256
      %s258 = sphi 0, %s256
      %s259 = sphi 0, %s258
      %s273 = sphi 0, %s259
      %s277 = sphi 0, %s277
      %s279 = sphi 0, %s277
      %s280 = sphi 0, %s279
      %s294 = sphi 0, %s280
      %s298 = sphi 0, %s298
      %s300 = sphi 0, %s298
      %s301 = sphi 0, %s300
      %s315 = sphi 0, %s301
      %s319 = sphi 0, %s319
      %s321 = sphi 0, %s319
      %s322 = sphi 0, %s321
      %s336 = sphi 0, %s322
      %s340 = sphi 0, %s340
      %s342 = sphi 0, %s340
      %s343 = sphi 0, %s342
      %s357 = sphi 0, %s343
      %s363 = sphi 0, %s365
      %s366 = sphi 0, %s363
      %s367 = sphi 0, %s366
      %s383 = sphi 0, %s367
    $region4: #{tpu_custom_call.1} parent=1 // loop_header_branch
      %31 = sbr.rel (%p29) target = $region8
    $region5: #{tpu_custom_call.1} parent=1 // loop_body
      %s33 = ssub.s32 %s28, 1
      %s34 = ssub.s32 %s28, 2
      %s35 = sadd.s32 %s28, 1
      %s36 = ssub.s32 %s28, %s35
      %p37 = scmp.eq.s32.totalorder %s36, 0
      %s39 = sadd.s32 %s38, 1
      %s40 = scalar_select %p37, %s38, %s39
      %p43 = pneg %p37
      %p44 = scmp.eq.s32.totalorder %s28, 1
      %p45 = por %p43, %p44
      %p46 = scmp.ne.s32.totalorder %s38, %s41
      %p47 = scmp.eq.s32.totalorder %s28, 0
      %p48 = por %p46, %p47
      %p49 = scmp.ne.s32.totalorder %s38, %s41
      %p50 = scmp.eq.s32.totalorder %s33, 1
      %p51 = por %p49, %p50
      %p52 = scmp.ne.s32.totalorder %s41, %s42
      %p53 = scmp.eq.s32.totalorder %s33, 0
      %p54 = por %p52, %p53
      %p55 = scmp.ne.s32.totalorder %s41, %s42
      %p56 = scmp.eq.s32.totalorder %s34, 1
      %p57 = por %p55, %p56
      %p59 = scmp.ne.s32.totalorder %s42, %s58
      %p60 = scmp.eq.s32.totalorder %s34, 0
      %p61 = por %p59, %p60
      %s62 = ssub.s32 %s28, %s35
      %p63 = scmp.eq.s32.totalorder %s62, 0
      %s65 = sadd.s32 %s64, 1
      %s66 = scalar_select %p63, %s64, %s65
      %p69 = pneg %p63
      %p70 = scmp.eq.s32.totalorder %s28, 1
      %p71 = por %p69, %p70
      %p72 = scmp.ne.s32.totalorder %s64, %s67
      %p73 = scmp.eq.s32.totalorder %s28, 0
      %p74 = por %p72, %p73
      %p75 = scmp.ne.s32.totalorder %s64, %s67
      %p76 = scmp.eq.s32.totalorder %s33, 1
      %p77 = por %p75, %p76
      %p78 = scmp.ne.s32.totalorder %s67, %s68
      %p79 = scmp.eq.s32.totalorder %s33, 0
      %p80 = por %p78, %p79
      %p81 = scmp.ne.s32.totalorder %s67, %s68
      %p82 = scmp.eq.s32.totalorder %s34, 1
      %p83 = por %p81, %p82
      %p85 = scmp.ne.s32.totalorder %s68, %s84
      %p86 = scmp.eq.s32.totalorder %s34, 0
      %p87 = por %p85, %p86
      %s89 = sadd.s32 %s88, 1
      %p92 = scmp.eq.s32.totalorder %s28, 1
      %p93 = scmp.ne.s32.totalorder %s88, %s90
      %p94 = scmp.eq.s32.totalorder %s28, 0
      %p95 = por %p93, %p94
      %p96 = scmp.ne.s32.totalorder %s88, %s90
      %p97 = scmp.eq.s32.totalorder %s33, 1
      %p98 = por %p96, %p97
      %p99 = scmp.ne.s32.totalorder %s90, %s91
      %p100 = scmp.eq.s32.totalorder %s33, 0
      %p101 = por %p99, %p100
      %p102 = scmp.ne.s32.totalorder %s90, %s91
      %p103 = scmp.eq.s32.totalorder %s34, 1
      %p104 = por %p102, %p103
      %p106 = scmp.ne.s32.totalorder %s91, %s105
      %p107 = scmp.eq.s32.totalorder %s34, 0
      %p108 = por %p106, %p107
      %s110 = sadd.s32 %s109, 1
      %p113 = scmp.eq.s32.totalorder %s28, 1
      %p114 = scmp.ne.s32.totalorder %s109, %s111
      %p115 = scmp.eq.s32.totalorder %s28, 0
      %p116 = por %p114, %p115
      %p117 = scmp.ne.s32.totalorder %s109, %s111
      %p118 = scmp.eq.s32.totalorder %s33, 1
      %p119 = por %p117, %p118
      %p120 = scmp.ne.s32.totalorder %s111, %s112
      %p121 = scmp.eq.s32.totalorder %s33, 0
      %p122 = por %p120, %p121
      %p123 = scmp.ne.s32.totalorder %s111, %s112
      %p124 = scmp.eq.s32.totalorder %s34, 1
      %p125 = por %p123, %p124
      %p127 = scmp.ne.s32.totalorder %s112, %s126
      %p128 = scmp.eq.s32.totalorder %s34, 0
      %p129 = por %p127, %p128
      %s131 = sadd.s32 %s130, 1
      %p134 = scmp.eq.s32.totalorder %s28, 1
      %p135 = scmp.ne.s32.totalorder %s130, %s132
      %p136 = scmp.eq.s32.totalorder %s28, 0
      %p137 = por %p135, %p136
      %p138 = scmp.ne.s32.totalorder %s130, %s132
      %p139 = scmp.eq.s32.totalorder %s33, 1
      %p140 = por %p138, %p139
      %p141 = scmp.ne.s32.totalorder %s132, %s133
      %p142 = scmp.eq.s32.totalorder %s33, 0
      %p143 = por %p141, %p142
      %p144 = scmp.ne.s32.totalorder %s132, %s133
      %p145 = scmp.eq.s32.totalorder %s34, 1
      %p146 = por %p144, %p145
      %p148 = scmp.ne.s32.totalorder %s133, %s147
      %p149 = scmp.eq.s32.totalorder %s34, 0
      %p150 = por %p148, %p149
      %s152 = sadd.s32 %s151, 1
      %p155 = scmp.eq.s32.totalorder %s28, 1
      %p156 = scmp.ne.s32.totalorder %s151, %s153
      %p157 = scmp.eq.s32.totalorder %s28, 0
      %p158 = por %p156, %p157
      %p159 = scmp.ne.s32.totalorder %s151, %s153
      %p160 = scmp.eq.s32.totalorder %s33, 1
      %p161 = por %p159, %p160
      %p162 = scmp.ne.s32.totalorder %s153, %s154
      %p163 = scmp.eq.s32.totalorder %s33, 0
      %p164 = por %p162, %p163
      %p165 = scmp.ne.s32.totalorder %s153, %s154
      %p166 = scmp.eq.s32.totalorder %s34, 1
      %p167 = por %p165, %p166
      %p169 = scmp.ne.s32.totalorder %s154, %s168
      %p170 = scmp.eq.s32.totalorder %s34, 0
      %p171 = por %p169, %p170
      %s173 = sadd.s32 %s172, 1
      %p176 = scmp.eq.s32.totalorder %s28, 1
      %p177 = scmp.ne.s32.totalorder %s172, %s174
      %p178 = scmp.eq.s32.totalorder %s28, 0
      %p179 = por %p177, %p178
      %p180 = scmp.ne.s32.totalorder %s172, %s174
      %p181 = scmp.eq.s32.totalorder %s33, 1
      %p182 = por %p180, %p181
      %p183 = scmp.ne.s32.totalorder %s174, %s175
      %p184 = scmp.eq.s32.totalorder %s33, 0
      %p185 = por %p183, %p184
      %p186 = scmp.ne.s32.totalorder %s174, %s175
      %p187 = scmp.eq.s32.totalorder %s34, 1
      %p188 = por %p186, %p187
      %p190 = scmp.ne.s32.totalorder %s175, %s189
      %p191 = scmp.eq.s32.totalorder %s34, 0
      %p192 = por %p190, %p191
      %s194 = sadd.s32 %s193, 1
      %p197 = scmp.eq.s32.totalorder %s28, 1
      %p198 = scmp.ne.s32.totalorder %s193, %s195
      %p199 = scmp.eq.s32.totalorder %s28, 0
      %p200 = por %p198, %p199
      %p201 = scmp.ne.s32.totalorder %s193, %s195
      %p202 = scmp.eq.s32.totalorder %s33, 1
      %p203 = por %p201, %p202
      %p204 = scmp.ne.s32.totalorder %s195, %s196
      %p205 = scmp.eq.s32.totalorder %s33, 0
      %p206 = por %p204, %p205
      %p207 = scmp.ne.s32.totalorder %s195, %s196
      %p208 = scmp.eq.s32.totalorder %s34, 1
      %p209 = por %p207, %p208
      %p211 = scmp.ne.s32.totalorder %s196, %s210
      %p212 = scmp.eq.s32.totalorder %s34, 0
      %p213 = por %p211, %p212
      %s215 = sadd.s32 %s214, 1
      %p218 = scmp.eq.s32.totalorder %s28, 1
      %p219 = scmp.ne.s32.totalorder %s214, %s216
      %p220 = scmp.eq.s32.totalorder %s28, 0
      %p221 = por %p219, %p220
      %p222 = scmp.ne.s32.totalorder %s214, %s216
      %p223 = scmp.eq.s32.totalorder %s33, 1
      %p224 = por %p222, %p223
      %p225 = scmp.ne.s32.totalorder %s216, %s217
      %p226 = scmp.eq.s32.totalorder %s33, 0
      %p227 = por %p225, %p226
      %p228 = scmp.ne.s32.totalorder %s216, %s217
      %p229 = scmp.eq.s32.totalorder %s34, 1
      %p230 = por %p228, %p229
      %p232 = scmp.ne.s32.totalorder %s217, %s231
      %p233 = scmp.eq.s32.totalorder %s34, 0
      %p234 = por %p232, %p233
      %s236 = sadd.s32 %s235, 1
      %p239 = scmp.eq.s32.totalorder %s28, 1
      %p240 = scmp.ne.s32.totalorder %s235, %s237
      %p241 = scmp.eq.s32.totalorder %s28, 0
      %p242 = por %p240, %p241
      %p243 = scmp.ne.s32.totalorder %s235, %s237
      %p244 = scmp.eq.s32.totalorder %s33, 1
      %p245 = por %p243, %p244
      %p246 = scmp.ne.s32.totalorder %s237, %s238
      %p247 = scmp.eq.s32.totalorder %s33, 0
      %p248 = por %p246, %p247
      %p249 = scmp.ne.s32.totalorder %s237, %s238
      %p250 = scmp.eq.s32.totalorder %s34, 1
      %p251 = por %p249, %p250
      %p253 = scmp.ne.s32.totalorder %s238, %s252
      %p254 = scmp.eq.s32.totalorder %s34, 0
      %p255 = por %p253, %p254
      %s257 = sadd.s32 %s256, 1
      %p260 = scmp.eq.s32.totalorder %s28, 1
      %p261 = scmp.ne.s32.totalorder %s256, %s258
      %p262 = scmp.eq.s32.totalorder %s28, 0
      %p263 = por %p261, %p262
      %p264 = scmp.ne.s32.totalorder %s256, %s258
      %p265 = scmp.eq.s32.totalorder %s33, 1
      %p266 = por %p264, %p265
      %p267 = scmp.ne.s32.totalorder %s258, %s259
      %p268 = scmp.eq.s32.totalorder %s33, 0
      %p269 = por %p267, %p268
      %p270 = scmp.ne.s32.totalorder %s258, %s259
      %p271 = scmp.eq.s32.totalorder %s34, 1
      %p272 = por %p270, %p271
      %p274 = scmp.ne.s32.totalorder %s259, %s273
      %p275 = scmp.eq.s32.totalorder %s34, 0
      %p276 = por %p274, %p275
      %s278 = sadd.s32 %s277, 1
      %p281 = scmp.eq.s32.totalorder %s28, 1
      %p282 = scmp.ne.s32.totalorder %s277, %s279
      %p283 = scmp.eq.s32.totalorder %s28, 0
      %p284 = por %p282, %p283
      %p285 = scmp.ne.s32.totalorder %s277, %s279
      %p286 = scmp.eq.s32.totalorder %s33, 1
      %p287 = por %p285, %p286
      %p288 = scmp.ne.s32.totalorder %s279, %s280
      %p289 = scmp.eq.s32.totalorder %s33, 0
      %p290 = por %p288, %p289
      %p291 = scmp.ne.s32.totalorder %s279, %s280
      %p292 = scmp.eq.s32.totalorder %s34, 1
      %p293 = por %p291, %p292
      %p295 = scmp.ne.s32.totalorder %s280, %s294
      %p296 = scmp.eq.s32.totalorder %s34, 0
      %p297 = por %p295, %p296
      %s299 = sadd.s32 %s298, 1
      %p302 = scmp.eq.s32.totalorder %s28, 1
      %p303 = scmp.ne.s32.totalorder %s298, %s300
      %p304 = scmp.eq.s32.totalorder %s28, 0
      %p305 = por %p303, %p304
      %p306 = scmp.ne.s32.totalorder %s298, %s300
      %p307 = scmp.eq.s32.totalorder %s33, 1
      %p308 = por %p306, %p307
      %p309 = scmp.ne.s32.totalorder %s300, %s301
      %p310 = scmp.eq.s32.totalorder %s33, 0
      %p311 = por %p309, %p310
      %p312 = scmp.ne.s32.totalorder %s300, %s301
      %p313 = scmp.eq.s32.totalorder %s34, 1
      %p314 = por %p312, %p313
      %p316 = scmp.ne.s32.totalorder %s301, %s315
      %p317 = scmp.eq.s32.totalorder %s34, 0
      %p318 = por %p316, %p317
      %s320 = sadd.s32 %s319, 1
      %p323 = scmp.eq.s32.totalorder %s28, 1
      %p324 = scmp.ne.s32.totalorder %s319, %s321
      %p325 = scmp.eq.s32.totalorder %s28, 0
      %p326 = por %p324, %p325
      %p327 = scmp.ne.s32.totalorder %s319, %s321
      %p328 = scmp.eq.s32.totalorder %s33, 1
      %p329 = por %p327, %p328
      %p330 = scmp.ne.s32.totalorder %s321, %s322
      %p331 = scmp.eq.s32.totalorder %s33, 0
      %p332 = por %p330, %p331
      %p333 = scmp.ne.s32.totalorder %s321, %s322
      %p334 = scmp.eq.s32.totalorder %s34, 1
      %p335 = por %p333, %p334
      %p337 = scmp.ne.s32.totalorder %s322, %s336
      %p338 = scmp.eq.s32.totalorder %s34, 0
      %p339 = por %p337, %p338
      %s341 = sadd.s32 %s340, 1
      %p344 = scmp.eq.s32.totalorder %s28, 1
      %p345 = scmp.ne.s32.totalorder %s340, %s342
      %p346 = scmp.eq.s32.totalorder %s28, 0
      %p347 = por %p345, %p346
      %p348 = scmp.ne.s32.totalorder %s340, %s342
      %p349 = scmp.eq.s32.totalorder %s33, 1
      %p350 = por %p348, %p349
      %p351 = scmp.ne.s32.totalorder %s342, %s343
      %p352 = scmp.eq.s32.totalorder %s33, 0
      %p353 = por %p351, %p352
      %p354 = scmp.ne.s32.totalorder %s342, %s343
      %p355 = scmp.eq.s32.totalorder %s34, 1
      %p356 = por %p354, %p355
      %p358 = scmp.ne.s32.totalorder %s343, %s357
      %p359 = scmp.eq.s32.totalorder %s34, 0
      %p360 = por %p358, %p359
      %s361 = ssub.s32 %s28, %s35
      %p362 = scmp.eq.s32.totalorder %s361, 0
      %s364 = sadd.s32 %s363, 1
      %s365 = scalar_select %p362, %s363, %s364
      %p368 = pneg %p362
      %p369 = scmp.eq.s32.totalorder %s28, 1
      %p370 = por %p368, %p369
      %p371 = scmp.ne.s32.totalorder %s363, %s366
      %p372 = scmp.eq.s32.totalorder %s28, 0
      %p373 = por %p371, %p372
      %p374 = scmp.ne.s32.totalorder %s363, %s366
      %p375 = scmp.eq.s32.totalorder %s33, 1
      %p376 = por %p374, %p375
      %p377 = scmp.ne.s32.totalorder %s366, %s367
      %p378 = scmp.eq.s32.totalorder %s33, 0
      %p379 = por %p377, %p378
      %p380 = scmp.ne.s32.totalorder %s366, %s367
      %p381 = scmp.eq.s32.totalorder %s34, 1
      %p382 = por %p380, %p381
      %p384 = scmp.ne.s32.totalorder %s367, %s383
      %p385 = scmp.eq.s32.totalorder %s34, 0
      %p386 = por %p384, %p385
      %p387 = scmp.le.s32.totalorder 1, %s28
      %p388 = scmp.lt.s32.totalorder %s28, 3
      %p389 = pnand %p387, %p388
      %p390 = pneg %p389
      // Predicated region
      $region9: #{tpu_custom_call.1} parent=5 // pred_check
        _
      $region10: #{tpu_custom_call.1} parent=5 // pred_check_branch
        %392 = sbr.rel (%p389) target = $region12
      $region11: #{tpu_custom_call.1} parent=5 // pred_region
        %s393 = ssub.s32 %s28, 1
        // Predicated region
        $region13: #{tpu_custom_call.1} parent=11 // pred_check
          %p394 = pneg %p101
        $region14: #{tpu_custom_call.1} parent=11 // pred_check_branch
          %396 = sbr.rel (%p394) target = $region16
        $region15: #{tpu_custom_call.1} parent=11 // pred_region
          _
        $region16: #{tpu_custom_call.1} parent=11 // pred_fallthru
          _
        // Predicated region
        $region17: #{tpu_custom_call.1} parent=11 // pred_check
          %p397 = pneg %p122
        $region18: #{tpu_custom_call.1} parent=11 // pred_check_branch
          %399 = sbr.rel (%p397) target = $region20
        $region19: #{tpu_custom_call.1} parent=11 // pred_region
          %401 = vsyncadd [#allocation7], 0
          %s403 = sshll.u32 %s3, 4
          %s404 = int_to_ptr.hbm [resolvable:$true] %s403
          %s405 = sshll.u32 [#allocation6], 4
          %s406 = int_to_ptr.vmem [resolvable:$true] %s405
          %408 = dma.hbm_to_vmem [thread:$0]  %s404, 64, %s406, [#allocation7]
        $region20: #{tpu_custom_call.1} parent=11 // pred_fallthru
          _
        // Predicated region
        $region21: #{tpu_custom_call.1} parent=11 // pred_check
          %p409 = pneg %p143
        $region22: #{tpu_custom_call.1} parent=11 // pred_check_branch
          %411 = sbr.rel (%p409) target = $region24
        $region23: #{tpu_custom_call.1} parent=11 // pred_region
          _
        $region24: #{tpu_custom_call.1} parent=11 // pred_fallthru
          _
        // Predicated region
        $region25: #{tpu_custom_call.1} parent=11 // pred_check
          %p412 = pneg %p164
        $region26: #{tpu_custom_call.1} parent=11 // pred_check_branch
          %414 = sbr.rel (%p412) target = $region28
        $region27: #{tpu_custom_call.1} parent=11 // pred_region
          %416 = vsyncadd [#allocation7], 0
          %s417 = sshll.u32 %s5, 4
          %s418 = int_to_ptr.hbm [resolvable:$true] %s417
          %s419 = sshll.u32 [#allocation8], 4
          %s420 = int_to_ptr.vmem [resolvable:$true] %s419
          %425 = dma.hbm_to_vmem [thread:$0]  %s418, 32, %s420, [#allocation7], 16, 16, 1
        $region28: #{tpu_custom_call.1} parent=11 // pred_fallthru
          _
        // Predicated region
        $region29: #{tpu_custom_call.1} parent=11 // pred_check
          %p426 = pneg %p185
        $region30: #{tpu_custom_call.1} parent=11 // pred_check_branch
          %428 = sbr.rel (%p426) target = $region32
        $region31: #{tpu_custom_call.1} parent=11 // pred_region
          _
        $region32: #{tpu_custom_call.1} parent=11 // pred_fallthru
          _
        // Predicated region
        $region33: #{tpu_custom_call.1} parent=11 // pred_check
          %p429 = pneg %p206
        $region34: #{tpu_custom_call.1} parent=11 // pred_check_branch
          %431 = sbr.rel (%p429) target = $region36
        $region35: #{tpu_custom_call.1} parent=11 // pred_region
          _
        $region36: #{tpu_custom_call.1} parent=11 // pred_fallthru
          _
        // Predicated region
        $region37: #{tpu_custom_call.1} parent=11 // pred_check
          %p432 = pneg %p227
        $region38: #{tpu_custom_call.1} parent=11 // pred_check_branch
          %434 = sbr.rel (%p432) target = $region40
        $region39: #{tpu_custom_call.1} parent=11 // pred_region
          _
        $region40: #{tpu_custom_call.1} parent=11 // pred_fallthru
          _
        // Predicated region
        $region41: #{tpu_custom_call.1} parent=11 // pred_check
          %p435 = pneg %p248
        $region42: #{tpu_custom_call.1} parent=11 // pred_check_branch
          %437 = sbr.rel (%p435) target = $region44
        $region43: #{tpu_custom_call.1} parent=11 // pred_region
          _
        $region44: #{tpu_custom_call.1} parent=11 // pred_fallthru
          _
        // Predicated region
        $region45: #{tpu_custom_call.1} parent=11 // pred_check
          %p438 = pneg %p269
        $region46: #{tpu_custom_call.1} parent=11 // pred_check_branch
          %440 = sbr.rel (%p438) target = $region48
        $region47: #{tpu_custom_call.1} parent=11 // pred_region
          _
        $region48: #{tpu_custom_call.1} parent=11 // pred_fallthru
          _
        // Predicated region
        $region49: #{tpu_custom_call.1} parent=11 // pred_check
          %p441 = pneg %p290
        $region50: #{tpu_custom_call.1} parent=11 // pred_check_branch
          %443 = sbr.rel (%p441) target = $region52
        $region51: #{tpu_custom_call.1} parent=11 // pred_region
          _
        $region52: #{tpu_custom_call.1} parent=11 // pred_fallthru
          _
        // Predicated region
        $region53: #{tpu_custom_call.1} parent=11 // pred_check
          %p444 = pneg %p311
        $region54: #{tpu_custom_call.1} parent=11 // pred_check_branch
          %446 = sbr.rel (%p444) target = $region56
        $region55: #{tpu_custom_call.1} parent=11 // pred_region
          _
        $region56: #{tpu_custom_call.1} parent=11 // pred_fallthru
          _
        // Predicated region
        $region57: #{tpu_custom_call.1} parent=11 // pred_check
          %p447 = pneg %p332
        $region58: #{tpu_custom_call.1} parent=11 // pred_check_branch
          %449 = sbr.rel (%p447) target = $region60
        $region59: #{tpu_custom_call.1} parent=11 // pred_region
          _
        $region60: #{tpu_custom_call.1} parent=11 // pred_fallthru
          _
        // Predicated region
        $region61: #{tpu_custom_call.1} parent=11 // pred_check
          %p450 = pneg %p353
        $region62: #{tpu_custom_call.1} parent=11 // pred_check_branch
          %452 = sbr.rel (%p450) target = $region64
        $region63: #{tpu_custom_call.1} parent=11 // pred_region
          _
        $region64: #{tpu_custom_call.1} parent=11 // pred_fallthru
          _
      $region12: #{tpu_custom_call.1} parent=5 // pred_fallthru
        _
      %p453 = scmp.lt.s32.totalorder %s28, 2
      // Predicated region
      $region65: #{tpu_custom_call.1} parent=5 // pred_check
        %p454 = pneg %p453
      $region66: #{tpu_custom_call.1} parent=5 // pred_check_branch
        %456 = sbr.rel (%p454) target = $region68
      $region67: #{tpu_custom_call.1} parent=5 // pred_region
        // Predicated region
        $region69: #{tpu_custom_call.1} parent=67 // pred_check
          %p457 = pneg %p48
        $region70: #{tpu_custom_call.1} parent=67 // pred_check_branch
          %459 = sbr.rel (%p457) target = $region72
        $region71: #{tpu_custom_call.1} parent=67 // pred_region
          %s460 = sand.u32 %s38, 1
          %s461 = scalar_lea.sflag [#allocation4], %s460
          %s462 = sand.u32 %s38, 1
          %s463 = smul.addr %s462, 4
          %s464 = scalar_lea.vmem [#allocation3], %s463
          %466 = vsyncadd %s461, 0
          %s467 = smul.addr %s28, 4
          %s468 = scalar_lea.hbm %s0, %s467
          %s470 = sshll.u32 %s468, 4
          %s471 = int_to_ptr.hbm [resolvable:$true] %s470
          %s472 = sshll.u32 %s464, 4
          %s473 = int_to_ptr.vmem [resolvable:$true] %s472
          %475 = dma.hbm_to_vmem [thread:$0]  %s471, 64, %s473, %s461
        $region72: #{tpu_custom_call.1} parent=67 // pred_fallthru
          _
        // Predicated region
        $region73: #{tpu_custom_call.1} parent=67 // pred_check
          %p476 = pneg %p74
        $region74: #{tpu_custom_call.1} parent=67 // pred_check_branch
          %478 = sbr.rel (%p476) target = $region76
        $region75: #{tpu_custom_call.1} parent=67 // pred_region
          %p479 = scmp.lt.s32.totalorder %s28, 1
          %s480 = scalar_select %p479, %s28, 1
          %s481 = smul.addr %s480, 8
          %s482 = scalar_lea.vmem %s1, %s481
        $region76: #{tpu_custom_call.1} parent=67 // pred_fallthru
          _
      $region68: #{tpu_custom_call.1} parent=5 // pred_fallthru
        _
      %p483 = scmp.le.s32.totalorder 1, %s28
      %p484 = scmp.lt.s32.totalorder %s28, 3
      %p485 = pnand %p483, %p484
      %p486 = pneg %p485
      // Predicated region
      $region77: #{tpu_custom_call.1} parent=5 // pred_check
        _
      $region78: #{tpu_custom_call.1} parent=5 // pred_check_branch
        %488 = sbr.rel (%p485) target = $region80
      $region79: #{tpu_custom_call.1} parent=5 // pred_region
        %s489 = ssub.s32 %s28, 1
        %s490 = sand.u32 %s41, 1
        %s491 = scalar_lea.sflag [#allocation4], %s490
        %s492 = sand.u32 %s41, 1
        %s493 = smul.addr %s492, 4
        %s494 = scalar_lea.vmem [#allocation3], %s493
        // Predicated region
        $region81: #{tpu_custom_call.1} parent=79 // pred_check
          %p495 = pneg %p54
        $region82: #{tpu_custom_call.1} parent=79 // pred_check_branch
          %497 = sbr.rel (%p495) target = $region84
        $region83: #{tpu_custom_call.1} parent=79 // pred_region
          %499 = dma.done %s491, 64
        $region84: #{tpu_custom_call.1} parent=79 // pred_fallthru
          _
        // Predicated region
        $region85: #{tpu_custom_call.1} parent=79 // pred_check
          %p500 = pneg %p122
        $region86: #{tpu_custom_call.1} parent=79 // pred_check_branch
          %502 = sbr.rel (%p500) target = $region88
        $region87: #{tpu_custom_call.1} parent=79 // pred_region
          %504 = dma.done [#allocation7], 64
        $region88: #{tpu_custom_call.1} parent=79 // pred_fallthru
          _
        // Predicated region
        $region89: #{tpu_custom_call.1} parent=79 // pred_check
          %p505 = pneg %p164
        $region90: #{tpu_custom_call.1} parent=79 // pred_check_branch
          %507 = sbr.rel (%p505) target = $region92
        $region91: #{tpu_custom_call.1} parent=79 // pred_region
          %509 = dma.done [#allocation7], 32
        $region92: #{tpu_custom_call.1} parent=79 // pred_fallthru
          _
        %s510 = sand.u32 %s41, 1
        %s511 = scalar_lea.sflag [#allocation4], %s510
        %s512 = sand.u32 %s41, 1
        %s513 = smul.addr %s512, 4
        %s514 = scalar_lea.vmem [#allocation3], %s513
        %p515 = pneg %p54
        %p516 = pneg %p51
        %p517 = scmp.lt.s32.totalorder %s33, 1
        %s518 = scalar_select %p517, %s33, 1
        %s519 = smul.addr %s518, 8
        %s520 = scalar_lea.vmem %s1, %s519
        %p521 = pneg %p80
        %p522 = pneg %p77
        %p523 = pneg %p101
        %p524 = pneg %p98
        %p525 = pneg %p122
        %p526 = pneg %p119
        %p527 = pneg %p143
        %p528 = pneg %p140
        %p529 = pneg %p164
        %p530 = pneg %p161
        %p531 = pneg %p185
        %p532 = pneg %p182
        %p533 = pneg %p206
        %p534 = pneg %p203
        %p535 = pneg %p227
        %p536 = pneg %p224
        %p537 = pneg %p248
        %p538 = pneg %p245
        %p539 = pneg %p269
        %p540 = pneg %p266
        %p541 = pneg %p290
        %p542 = pneg %p287
        %p543 = pneg %p311
        %p544 = pneg %p308
        %p545 = pneg %p332
        %p546 = pneg %p329
        %p547 = pneg %p353
        %p548 = pneg %p350
        %p549 = pneg %p379
        %p550 = pneg %p376
        %s551 = sand.u32 %s366, 1
        %s552 = scalar_lea.sflag [#allocation5], %s551
        %s553 = sand.u32 %s366, 1
        %s554 = scalar_lea.vmem [#allocation9], %s553
        %p555 = scmp.lt.s32.totalorder %s33, 1
        %s556 = scalar_select %p555, %s33, 1
        %s557 = smul.addr %s556, 8
        %s558 = scalar_lea.vmem %s1, %s557
        %v560 = vld [vmem:[#allocation6] sm:$0x7]
        %v561 = vld [vmem:[%s494] sm:$0xf]
        %v562 = vld [vmem:[%s2] sm:$0xf]
        %v563 = vld [vmem:[%s2 + $0x4] sm:$0xf]
        %v564 = vld [vmem:[%s2 + $0x8] sm:$0xf]
        %v565 = vld [vmem:[%s2 + $0xc] sm:$0xf]
        %v566 = vld [vmem:[%s2 + $0x10] sm:$0xf]
        %v567 = vld [vmem:[%s2 + $0x14] sm:$0xf]
        %v568 = vld [vmem:[%s2 + $0x18] sm:$0xf]
        %v569 = vld [vmem:[%s2 + $0x1c] sm:$0xf]
        %v570 = vperm.slane %v560, 0
        %v579 = vunpack.c.l.b16 %v562
        %v580 = vunpack.c.l.b16 %v563
        %v581 = vunpack.c.l.b16 %v564
        %v582 = vunpack.c.l.b16 %v565
        %v583 = vunpack.c.l.b16 %v566
        %v584 = vunpack.c.l.b16 %v567
        %v585 = vunpack.c.l.b16 %v568
        %v586 = vunpack.c.l.b16 %v569
        %v587 = vpack.c.b16 %v580, %v579
        %v588 = vpack.c.b16 %v582, %v581
        %v589 = vpack.c.b16 %v584, %v583
        %v590 = vpack.c.b16 %v586, %v585
        %vm595 = vcmask 523264
        %v597 = vsel %vm595, %v561, 0
        %599 = vmatpush.bf16.msra.mxu0 0
        %600 = vmatpush.bf16.msra.mxu0 0
        %601 = vmatpush.bf16.msra.mxu0 0
        %602 = vmatpush.bf16.msra.mxu0 0
        %603 = vmatpush.bf16.msra.mxu0 %v590
        %604 = vmatpush.bf16.msra.mxu0 %v589
        %605 = vmatpush.bf16.msra.mxu0 %v588
        %606 = vmatpush.bf16.msra.mxu0 %v587
        %607 = vmatmul.bf16.gmra.mxu0 %v597
        %v608 = vpop.f32.mrf.mxu0
        %v609 = vadd.f32 %v570, %v608
        %v610 = vpop.f32.mrf.mxu0
        %611 = vdwg.mxu0
        %vm612 = vcmask 261120
        %v613 = vsel %vm612, %v609, 0.0
        %614 = vadd.xlane.f32.xlu0 %v613
        %v615 = vpop.xlane.xlu0 %614
        %v616 = vrcp.pop 32.0
        %v617 = vmul.f32 32.0, %v616
        %v618 = vsub.f32 1.0, %v617
        %v619 = vmul.f32 %v616, %v618
        %v620 = vadd.f32 %v616, %v619
        %vm621 = vweird.f32 %v616
        %v622 = vsel %vm621, %v616, %v620
        %v623 = vmul.f32 %v615, %v622
        %v624 = vsub.f32 %v609, %v623
        %v625 = vmul.f32 %v624, %v624
        %v626 = vsel %vm612, %v625, 0.0
        %627 = vadd.xlane.f32.xlu0 %v626
        %v628 = vpop.xlane.xlu0 %627
        %v629 = vmul.f32 %v628, %v622
        %v630 = vadd.f32 %v629, 1e-06
        %v631 = vrsqrt.pop %v630
        %v632 = vmul.f32 %v631, %v630
        %v633 = vmul.f32 %v632, %v631
        %v634 = vmul.f32 0.5, %v633
        %v635 = vsub.f32 1.5, %v634
        %v636 = vmul.f32 %v631, %v635
        %vm637 = vweird.f32 %v630
        %vm638 = vweird.f32 %v631
        %vm639 = vmor %vm637, %vm638
        %v640 = vsel %vm639, %v631, %v636
        %v641 = vmul.f32 %v624, %v640
        %v642 = vperm.slane %v560, 1
        %v643 = vmul.f32 %v641, %v642
        %v644 = vperm.slane %v560, 2
        %v645 = vadd.f32 %v643, %v644
        %v646 = vld [vmem:[%s558] sm:$0xff]
        %v647 = vld [vmem:[%s7] sm:$0x3f]
        %v648 = vpack.c.bf16 %v645, %v645
        %v649 = vld [vmem:[%s4] sm:$0xf]
        %v650 = vld [vmem:[%s4 + $0x4] sm:$0xf]
        %v651 = vld [vmem:[%s4 + $0x8] sm:$0xf]
        %v652 = vld [vmem:[%s4 + $0xc] sm:$0xf]
        %v653 = vld [vmem:[#allocation8] sm:$0x1]
        %v655 = vperm.slane %v653, 0
        %v661 = vunpack.c.l.b16 %v649
        %v662 = vunpack.c.l.b16 %v650
        %v663 = vunpack.c.l.b16 %v651
        %v664 = vunpack.c.l.b16 %v652
        %v665 = vpack.c.b16 %v662, %v661
        %v666 = vpack.c.b16 %v664, %v663
        %v670 = vsel %vm612, %v648, 0
        %672 = vmatpush.bf16.msra.mxu0 0
        %673 = vmatpush.bf16.msra.mxu0 0
        %674 = vmatpush.bf16.msra.mxu0 0
        %675 = vmatpush.bf16.msra.mxu0 0
        %676 = vmatpush.bf16.msra.mxu0 0
        %677 = vmatpush.bf16.msra.mxu0 0
        %678 = vmatpush.bf16.msra.mxu0 %v666
        %679 = vmatpush.bf16.msra.mxu0 %v665
        %680 = vmatmul.bf16.gmra.mxu0 %v670
        %v681 = vpop.f32.mrf.mxu0
        %v682 = vadd.f32 %v655, %v681
        %v683 = vpop.f32.mrf.mxu0
        %684 = vdwg.mxu0
        %v685 = vmul.f32 %v682, 0.25
        %v686 = vpack.c.bf16 %v685, %v685
        %v687 = vpack.c.bf16 %v682, %v682
        %v689 = vunpack.c.l.b16 %v687
        %v690 = vpack.c.b16 %v689, %v689
        %691 = vrot.lane.b32.xlu0 %v690, 96
        %v692 = vpop.permute.xlu0 %691
        %vm693 = vcmask 130048
        %v695 = vsel %vm693, %v686, 0
        %v698 = vsel %vm693, %v692, 0
        %700 = vmatpush.bf16.xpose.msra.mxu0 0
        %701 = vmatpush.bf16.xpose.msra.mxu0 0
        %702 = vmatpush.bf16.xpose.msra.mxu0 0
        %703 = vmatpush.bf16.xpose.msra.mxu0 0
        %704 = vmatpush.bf16.xpose.msra.mxu0 0
        %705 = vmatpush.bf16.xpose.msra.mxu0 0
        %706 = vmatpush.bf16.xpose.msra.mxu0 0
        %707 = vmatpush.bf16.xpose.msra.mxu0 %v698
        %708 = vmatmul.bf16.gmra.mxu0 %v695
        %v709 = vpop.f32.mrf.mxu0
        %v710 = vadd.f32 %v646, %v709
        %v711 = vpop.f32.mrf.mxu0
        %712 = vdwg.mxu0
        %vm713 = vcmask 64512
        %v714 = vsel %vm713, %v710, -inf
        %715 = vmax.xlane.f32.xlu0 %v714
        %v716 = vpop.xlane.xlu0 %715
        %v717 = vsub.f32 %v710, %v716
        %v718 = vmul.f32 %v717, 1.442695
        %v719 = vpow.pop %v718
        %v720 = vsel %vm713, %v719, 0.0
        %721 = vadd.xlane.f32.xlu0 %v720
        %v722 = vpop.xlane.xlu0 %721
        %v723 = vrcp.pop %v722
        %v724 = vmul.f32 %v719, %v723
        %v725 = vpack.c.bf16 %v724, %v724
        %726 = vrot.lane.b32.xlu0 %v690, 64
        %v727 = vpop.permute.xlu0 %726
        %v729 = vsel %vm713, %v725, 0
        %vm731 = vcmask 1043456
        %v733 = vsel %vm731, %v727, 0
        %735 = vmatpush.bf16.msra.mxu0 0
        %736 = vmatpush.bf16.msra.mxu0 0
        %737 = vmatpush.bf16.msra.mxu0 0
        %738 = vmatpush.bf16.msra.mxu0 0
        %739 = vmatpush.bf16.msra.mxu0 0
        %740 = vmatpush.bf16.msra.mxu0 0
        %741 = vmatpush.bf16.msra.mxu0 0
        %742 = vmatpush.bf16.msra.mxu0 %v733
        %743 = vmatmul.bf16.gmra.mxu0 %v729
        %v744 = vpop.f32.mrf.mxu0
        %v745 = vadd.f32 0.0, %v744
        %v746 = vpop.f32.mrf.mxu0
        %747 = vdwg.mxu0
        %v748 = vpack.c.bf16 %v745, %v745
        %v749 = vld [vmem:[%s6] sm:$0xf]
        %v750 = vld [vmem:[%s6 + $0x4] sm:$0xf]
        %v752 = vunpack.c.l.b16 %v686
        %v753 = vpack.c.b16 %v752, %v752
        %754 = vrot.lane.b32.xlu0 %v753, 112
        %v755 = vpop.permute.xlu0 %754
        %756 = vrot.lane.b32.xlu0 %v690, 80
        %v757 = vpop.permute.xlu0 %756
        %v759 = vsel %vm693, %v755, 0
        %v762 = vsel %vm693, %v757, 0
        %764 = vmatpush.bf16.xpose.msra.mxu0 0
        %765 = vmatpush.bf16.xpose.msra.mxu0 0
        %766 = vmatpush.bf16.xpose.msra.mxu0 0
        %767 = vmatpush.bf16.xpose.msra.mxu0 0
        %768 = vmatpush.bf16.xpose.msra.mxu0 0
        %769 = vmatpush.bf16.xpose.msra.mxu0 0
        %770 = vmatpush.bf16.xpose.msra.mxu0 0
        %771 = vmatpush.bf16.xpose.msra.mxu0 %v762
        %772 = vmatmul.bf16.gmra.mxu0 %v759
        %v773 = vpop.f32.mrf.mxu0
        %v774 = vadd.f32 %v646, %v773
        %v775 = vpop.f32.mrf.mxu0
        %776 = vdwg.mxu0
        %v777 = vsel %vm713, %v774, -inf
        %778 = vmax.xlane.f32.xlu0 %v777
        %v779 = vpop.xlane.xlu0 %778
        %v780 = vsub.f32 %v774, %v779
        %v781 = vmul.f32 %v780, 1.442695
        %v782 = vpow.pop %v781
        %v783 = vsel %vm713, %v782, 0.0
        %784 = vadd.xlane.f32.xlu0 %v783
        %v785 = vpop.xlane.xlu0 %784
        %v786 = vrcp.pop %v785
        %v787 = vmul.f32 %v782, %v786
        %v788 = vpack.c.bf16 %v787, %v787
        %789 = vrot.lane.b32.xlu0 %v690, 48
        %v790 = vpop.permute.xlu0 %789
        %v792 = vsel %vm713, %v788, 0
        %v795 = vsel %vm731, %v790, 0
        %797 = vmatpush.bf16.msra.mxu0 0
        %798 = vmatpush.bf16.msra.mxu0 0
        %799 = vmatpush.bf16.msra.mxu0 0
        %800 = vmatpush.bf16.msra.mxu0 0
        %801 = vmatpush.bf16.msra.mxu0 0
        %802 = vmatpush.bf16.msra.mxu0 0
        %803 = vmatpush.bf16.msra.mxu0 0
        %804 = vmatpush.bf16.msra.mxu0 %v795
        %805 = vmatmul.bf16.gmra.mxu0 %v792
        %v806 = vpop.f32.mrf.mxu0
        %v807 = vadd.f32 0.0, %v806
        %v808 = vpop.f32.mrf.mxu0
        %809 = vdwg.mxu0
        %v810 = vpack.c.bf16 %v807, %v807
        %s811 = scalar_lea.vmem %s6, 8
        %v812 = vld [vmem:[%s811] sm:$0xf]
        %v813 = vld [vmem:[%s811 + $0x4] sm:$0xf]
        %v816 = vunpack.c.l.b16 %v812
        %v817 = vunpack.c.l.b16 %v813
        %v818 = vpack.c.b16 %v817, %v816
        %v821 = vsel %vm693, %v810, 0
        %823 = vmatpush.bf16.msra.mxu0 0
        %824 = vmatpush.bf16.msra.mxu0 0
        %825 = vmatpush.bf16.msra.mxu0 0
        %826 = vmatpush.bf16.msra.mxu0 0
        %827 = vmatpush.bf16.msra.mxu0 0
        %828 = vmatpush.bf16.msra.mxu0 0
        %829 = vmatpush.bf16.msra.mxu0 0
        %830 = vmatpush.bf16.msra.mxu0 %v818
        %831 = vmatmul.bf16.gmra.mxu0 %v821
        %v832 = vpop.f32.mrf.mxu0
        %v833 = vadd.f32 0.0, %v832
        %v834 = vpop.f32.mrf.mxu0
        %835 = vdwg.mxu0
        %v838 = vunpack.c.l.b16 %v749
        %v839 = vunpack.c.l.b16 %v750
        %v840 = vpack.c.b16 %v839, %v838
        %v843 = vsel %vm693, %v748, 0
        %845 = vmatpush.bf16.msra.mxu0 0
        %846 = vmatpush.bf16.msra.mxu0 0
        %847 = vmatpush.bf16.msra.mxu0 0
        %848 = vmatpush.bf16.msra.mxu0 0
        %849 = vmatpush.bf16.msra.mxu0 0
        %850 = vmatpush.bf16.msra.mxu0 0
        %851 = vmatpush.bf16.msra.mxu0 0
        %852 = vmatpush.bf16.msra.mxu0 %v840
        %853 = vmatmul.bf16.gmra.mxu0 %v843
        %v854 = vpop.f32.mrf.mxu0
        %v855 = vadd.f32 %v833, %v854
        %v856 = vpop.f32.mrf.mxu0
        %857 = vdwg.mxu0
        %v858 = vperm.slane %v647, 0
        %v859 = vadd.f32 %v855, %v858
        %v860 = vadd.f32 %v645, %v859
        %v861 = vsel %vm612, %v860, 0.0
        %862 = vadd.xlane.f32.xlu0 %v861
        %v863 = vpop.xlane.xlu0 %862
        %v864 = vmul.f32 %v863, %v622
        %v865 = vsub.f32 %v860, %v864
        %v866 = vmul.f32 %v865, %v865
        %v867 = vsel %vm612, %v866, 0.0
        %868 = vadd.xlane.f32.xlu0 %v867
        %v869 = vpop.xlane.xlu0 %868
        %v870 = vmul.f32 %v869, %v622
        %v871 = vadd.f32 %v870, 1e-05
        %v872 = vrsqrt.pop %v871
        %v873 = vmul.f32 %v872, %v871
        %v874 = vmul.f32 %v873, %v872
        %v875 = vmul.f32 0.5, %v874
        %v876 = vsub.f32 1.5, %v875
        %v877 = vmul.f32 %v872, %v876
        %vm878 = vweird.f32 %v871
        %vm879 = vweird.f32 %v872
        %vm880 = vmor %vm878, %vm879
        %v881 = vsel %vm880, %v872, %v877
        %v882 = vmul.f32 %v865, %v881
        %v883 = vperm.slane %v647, 1
        %v884 = vmul.f32 %v882, %v883
        %v885 = vperm.slane %v647, 2
        %v886 = vadd.f32 %v884, %v885
        %v887 = vpack.c.bf16 %v886, %v886
        %v888 = vld [vmem:[%s8] sm:$0xf]
        %v889 = vld [vmem:[%s8 + $0x4] sm:$0xf]
        %v890 = vld [vmem:[%s8 + $0x8] sm:$0xf]
        %v891 = vld [vmem:[%s8 + $0xc] sm:$0xf]
        %v892 = vld [vmem:[%s10] sm:$0x3]
        %v893 = vperm.slane %v892, 0
        %v898 = vunpack.c.l.b16 %v888
        %v899 = vunpack.c.l.b16 %v889
        %v900 = vunpack.c.l.b16 %v890
        %v901 = vunpack.c.l.b16 %v891
        %v902 = vpack.c.b16 %v899, %v898
        %v903 = vpack.c.b16 %v901, %v900
        %v907 = vsel %vm612, %v887, 0
        %909 = vmatpush.bf16.msra.mxu0 0
        %910 = vmatpush.bf16.msra.mxu0 0
        %911 = vmatpush.bf16.msra.mxu0 0
        %912 = vmatpush.bf16.msra.mxu0 0
        %913 = vmatpush.bf16.msra.mxu0 0
        %914 = vmatpush.bf16.msra.mxu0 0
        %915 = vmatpush.bf16.msra.mxu0 %v903
        %916 = vmatpush.bf16.msra.mxu0 %v902
        %917 = vmatmul.bf16.gmra.mxu0 %v907
        %v918 = vpop.f32.mrf.mxu0
        %v919 = vadd.f32 %v893, %v918
        %v920 = vpop.f32.mrf.mxu0
        %921 = vdwg.mxu0
        %v922 = vmax.f32 %v919, 0.0
        %v923 = vpack.c.bf16 %v922, %v922
        %v924 = vld [vmem:[%s9] sm:$0xf]
        %v925 = vld [vmem:[%s9 + $0x4] sm:$0xf]
        %v926 = vld [vmem:[%s9 + $0x8] sm:$0xf]
        %v927 = vld [vmem:[%s9 + $0xc] sm:$0xf]
        %v928 = vld [vmem:[%s9 + $0x10] sm:$0xf]
        %v929 = vld [vmem:[%s9 + $0x14] sm:$0xf]
        %v930 = vld [vmem:[%s9 + $0x18] sm:$0xf]
        %v931 = vld [vmem:[%s9 + $0x1c] sm:$0xf]
        %v932 = vld [vmem:[%s9 + $0x20] sm:$0xf]
        %v933 = vld [vmem:[%s9 + $0x24] sm:$0xf]
        %v934 = vld [vmem:[%s9 + $0x28] sm:$0xf]
        %v935 = vld [vmem:[%s9 + $0x2c] sm:$0xf]
        %v936 = vld [vmem:[%s9 + $0x30] sm:$0xf]
        %v937 = vld [vmem:[%s9 + $0x34] sm:$0xf]
        %v938 = vld [vmem:[%s9 + $0x38] sm:$0xf]
        %v939 = vld [vmem:[%s9 + $0x3c] sm:$0xf]
        %v940 = vperm.slane %v647, 3
        %v957 = vunpack.c.l.b16 %v924
        %v958 = vunpack.c.l.b16 %v925
        %v959 = vunpack.c.l.b16 %v926
        %v960 = vunpack.c.l.b16 %v927
        %v961 = vunpack.c.l.b16 %v928
        %v962 = vunpack.c.l.b16 %v929
        %v963 = vunpack.c.l.b16 %v930
        %v964 = vunpack.c.l.b16 %v931
        %v965 = vunpack.c.l.b16 %v932
        %v966 = vunpack.c.l.b16 %v933
        %v967 = vunpack.c.l.b16 %v934
        %v968 = vunpack.c.l.b16 %v935
        %v969 = vunpack.c.l.b16 %v936
        %v970 = vunpack.c.l.b16 %v937
        %v971 = vunpack.c.l.b16 %v938
        %v972 = vunpack.c.l.b16 %v939
        %v973 = vpack.c.b16 %v958, %v957
        %v974 = vpack.c.b16 %v960, %v959
        %v975 = vpack.c.b16 %v962, %v961
        %v976 = vpack.c.b16 %v964, %v963
        %v977 = vpack.c.b16 %v966, %v965
        %v978 = vpack.c.b16 %v968, %v967
        %v979 = vpack.c.b16 %v970, %v969
        %v980 = vpack.c.b16 %v972, %v971
        %989 = vmatpush.bf16.msra.mxu0 %v980
        %990 = vmatpush.bf16.msra.mxu0 %v979
        %991 = vmatpush.bf16.msra.mxu0 %v978
        %992 = vmatpush.bf16.msra.mxu0 %v977
        %993 = vmatpush.bf16.msra.mxu0 %v976
        %994 = vmatpush.bf16.msra.mxu0 %v975
        %995 = vmatpush.bf16.msra.mxu0 %v974
        %996 = vmatpush.bf16.msra.mxu0 %v973
        %997 = vmatmul.bf16.gmra.mxu0 %v923
        %v998 = vpop.f32.mrf.mxu0
        %v999 = vadd.f32 %v940, %v998
        %v1000 = vpop.f32.mrf.mxu0
        %1001 = vdwg.mxu0
        %v1002 = vadd.f32 %v886, %v999
        %v1003 = vsel %vm612, %v1002, 0.0
        %1004 = vadd.xlane.f32.xlu0 %v1003
        %v1005 = vpop.xlane.xlu0 %1004
        %v1006 = vmul.f32 %v1005, %v622
        %v1007 = vsub.f32 %v1002, %v1006
        %v1008 = vmul.f32 %v1007, %v1007
        %v1009 = vsel %vm612, %v1008, 0.0
        %1010 = vadd.xlane.f32.xlu0 %v1009
        %v1011 = vpop.xlane.xlu0 %1010
        %v1012 = vmul.f32 %v1011, %v622
        %v1013 = vadd.f32 %v1012, 1e-05
        %v1014 = vrsqrt.pop %v1013
        %v1015 = vmul.f32 %v1014, %v1013
        %v1016 = vmul.f32 %v1015, %v1014
        %v1017 = vmul.f32 0.5, %v1016
        %v1018 = vsub.f32 1.5, %v1017
        %v1019 = vmul.f32 %v1014, %v1018
        %vm1020 = vweird.f32 %v1013
        %vm1021 = vweird.f32 %v1014
        %vm1022 = vmor %vm1020, %vm1021
        %v1023 = vsel %vm1022, %v1014, %v1019
        %v1024 = vmul.f32 %v1007, %v1023
        %v1025 = vperm.slane %v647, 4
        %v1026 = vmul.f32 %v1024, %v1025
        %v1027 = vperm.slane %v647, 5
        %v1028 = vadd.f32 %v1026, %v1027
        %s1029 = scalar_lea.vmem %s7, 8
        %v1030 = vld [vmem:[%s1029] sm:$0x3f]
        %v1031 = vpack.c.bf16 %v1028, %v1028
        %s1032 = scalar_lea.vmem %s4, 16
        %v1033 = vld [vmem:[%s1032] sm:$0xf]
        %v1034 = vld [vmem:[%s1032 + $0x4] sm:$0xf]
        %v1035 = vld [vmem:[%s1032 + $0x8] sm:$0xf]
        %v1036 = vld [vmem:[%s1032 + $0xc] sm:$0xf]
        %s1037 = scalar_lea.vmem [#allocation8], 1
        %v1038 = vld [vmem:[%s1037] sm:$0x1]
        %v1040 = vperm.slane %v1038, 0
        %v1046 = vunpack.c.l.b16 %v1033
        %v1047 = vunpack.c.l.b16 %v1034
        %v1048 = vunpack.c.l.b16 %v1035
        %v1049 = vunpack.c.l.b16 %v1036
        %v1050 = vpack.c.b16 %v1047, %v1046
        %v1051 = vpack.c.b16 %v1049, %v1048
        %v1055 = vsel %vm612, %v1031, 0
        %1057 = vmatpush.bf16.msra.mxu0 0
        %1058 = vmatpush.bf16.msra.mxu0 0
        %1059 = vmatpush.bf16.msra.mxu0 0
        %1060 = vmatpush.bf16.msra.mxu0 0
        %1061 = vmatpush.bf16.msra.mxu0 0
        %1062 = vmatpush.bf16.msra.mxu0 0
        %1063 = vmatpush.bf16.msra.mxu0 %v1051
        %1064 = vmatpush.bf16.msra.mxu0 %v1050
        %1065 = vmatmul.bf16.gmra.mxu0 %v1055
        %v1066 = vpop.f32.mrf.mxu0
        %v1067 = vadd.f32 %v1040, %v1066
        %v1068 = vpop.f32.mrf.mxu0
        %1069 = vdwg.mxu0
        %v1070 = vmul.f32 %v1067, 0.25
        %v1071 = vpack.c.bf16 %v1070, %v1070
        %v1072 = vpack.c.bf16 %v1067, %v1067
        %v1074 = vunpack.c.l.b16 %v1072
        %v1075 = vpack.c.b16 %v1074, %v1074
        %1076 = vrot.lane.b32.xlu0 %v1075, 96
        %v1077 = vpop.permute.xlu0 %1076
        %v1079 = vsel %vm693, %v1071, 0
        %v1082 = vsel %vm693, %v1077, 0
        %1084 = vmatpush.bf16.xpose.msra.mxu0 0
        %1085 = vmatpush.bf16.xpose.msra.mxu0 0
        %1086 = vmatpush.bf16.xpose.msra.mxu0 0
        %1087 = vmatpush.bf16.xpose.msra.mxu0 0
        %1088 = vmatpush.bf16.xpose.msra.mxu0 0
        %1089 = vmatpush.bf16.xpose.msra.mxu0 0
        %1090 = vmatpush.bf16.xpose.msra.mxu0 0
        %1091 = vmatpush.bf16.xpose.msra.mxu0 %v1082
        %1092 = vmatmul.bf16.gmra.mxu0 %v1079
        %v1093 = vpop.f32.mrf.mxu0
        %v1094 = vadd.f32 %v646, %v1093
        %v1095 = vpop.f32.mrf.mxu0
        %1096 = vdwg.mxu0
        %v1097 = vsel %vm713, %v1094, -inf
        %1098 = vmax.xlane.f32.xlu0 %v1097
        %v1099 = vpop.xlane.xlu0 %1098
        %v1100 = vsub.f32 %v1094, %v1099
        %v1101 = vmul.f32 %v1100, 1.442695
        %v1102 = vpow.pop %v1101
        %v1103 = vsel %vm713, %v1102, 0.0
        %1104 = vadd.xlane.f32.xlu0 %v1103
        %v1105 = vpop.xlane.xlu0 %1104
        %v1106 = vrcp.pop %v1105
        %v1107 = vmul.f32 %v1102, %v1106
        %v1108 = vpack.c.bf16 %v1107, %v1107
        %1109 = vrot.lane.b32.xlu0 %v1075, 64
        %v1110 = vpop.permute.xlu0 %1109
        %v1112 = vsel %vm713, %v1108, 0
        %v1115 = vsel %vm731, %v1110, 0
        %1117 = vmatpush.bf16.msra.mxu0 0
        %1118 = vmatpush.bf16.msra.mxu0 0
        %1119 = vmatpush.bf16.msra.mxu0 0
        %1120 = vmatpush.bf16.msra.mxu0 0
        %1121 = vmatpush.bf16.msra.mxu0 0
        %1122 = vmatpush.bf16.msra.mxu0 0
        %1123 = vmatpush.bf16.msra.mxu0 0
        %1124 = vmatpush.bf16.msra.mxu0 %v1115
        %1125 = vmatmul.bf16.gmra.mxu0 %v1112
        %v1126 = vpop.f32.mrf.mxu0
        %v1127 = vadd.f32 0.0, %v1126
        %v1128 = vpop.f32.mrf.mxu0
        %1129 = vdwg.mxu0
        %v1130 = vpack.c.bf16 %v1127, %v1127
        %s1131 = scalar_lea.vmem %s6, 16
        %v1132 = vld [vmem:[%s1131] sm:$0xf]
        %v1133 = vld [vmem:[%s1131 + $0x4] sm:$0xf]
        %v1135 = vunpack.c.l.b16 %v1071
        %v1136 = vpack.c.b16 %v1135, %v1135
        %1137 = vrot.lane.b32.xlu0 %v1136, 112
        %v1138 = vpop.permute.xlu0 %1137
        %1139 = vrot.lane.b32.xlu0 %v1075, 80
        %v1140 = vpop.permute.xlu0 %1139
        %v1142 = vsel %vm693, %v1138, 0
        %v1145 = vsel %vm693, %v1140, 0
        %1147 = vmatpush.bf16.xpose.msra.mxu0 0
        %1148 = vmatpush.bf16.xpose.msra.mxu0 0
        %1149 = vmatpush.bf16.xpose.msra.mxu0 0
        %1150 = vmatpush.bf16.xpose.msra.mxu0 0
        %1151 = vmatpush.bf16.xpose.msra.mxu0 0
        %1152 = vmatpush.bf16.xpose.msra.mxu0 0
        %1153 = vmatpush.bf16.xpose.msra.mxu0 0
        %1154 = vmatpush.bf16.xpose.msra.mxu0 %v1145
        %1155 = vmatmul.bf16.gmra.mxu0 %v1142
        %v1156 = vpop.f32.mrf.mxu0
        %v1157 = vadd.f32 %v646, %v1156
        %v1158 = vpop.f32.mrf.mxu0
        %1159 = vdwg.mxu0
        %v1160 = vsel %vm713, %v1157, -inf
        %1161 = vmax.xlane.f32.xlu0 %v1160
        %v1162 = vpop.xlane.xlu0 %1161
        %v1163 = vsub.f32 %v1157, %v1162
        %v1164 = vmul.f32 %v1163, 1.442695
        %v1165 = vpow.pop %v1164
        %v1166 = vsel %vm713, %v1165, 0.0
        %1167 = vadd.xlane.f32.xlu0 %v1166
        %v1168 = vpop.xlane.xlu0 %1167
        %v1169 = vrcp.pop %v1168
        %v1170 = vmul.f32 %v1165, %v1169
        %v1171 = vpack.c.bf16 %v1170, %v1170
        %1172 = vrot.lane.b32.xlu0 %v1075, 48
        %v1173 = vpop.permute.xlu0 %1172
        %v1175 = vsel %vm713, %v1171, 0
        %v1178 = vsel %vm731, %v1173, 0
        %1180 = vmatpush.bf16.msra.mxu0 0
        %1181 = vmatpush.bf16.msra.mxu0 0
        %1182 = vmatpush.bf16.msra.mxu0 0
        %1183 = vmatpush.bf16.msra.mxu0 0
        %1184 = vmatpush.bf16.msra.mxu0 0
        %1185 = vmatpush.bf16.msra.mxu0 0
        %1186 = vmatpush.bf16.msra.mxu0 0
        %1187 = vmatpush.bf16.msra.mxu0 %v1178
        %1188 = vmatmul.bf16.gmra.mxu0 %v1175
        %v1189 = vpop.f32.mrf.mxu0
        %v1190 = vadd.f32 0.0, %v1189
        %v1191 = vpop.f32.mrf.mxu0
        %1192 = vdwg.mxu0
        %v1193 = vpack.c.bf16 %v1190, %v1190
        %s1194 = scalar_lea.vmem %s6, 24
        %v1195 = vld [vmem:[%s1194] sm:$0xf]
        %v1196 = vld [vmem:[%s1194 + $0x4] sm:$0xf]
        %v1199 = vunpack.c.l.b16 %v1195
        %v1200 = vunpack.c.l.b16 %v1196
        %v1201 = vpack.c.b16 %v1200, %v1199
        %v1204 = vsel %vm693, %v1193, 0
        %1206 = vmatpush.bf16.msra.mxu0 0
        %1207 = vmatpush.bf16.msra.mxu0 0
        %1208 = vmatpush.bf16.msra.mxu0 0
        %1209 = vmatpush.bf16.msra.mxu0 0
        %1210 = vmatpush.bf16.msra.mxu0 0
        %1211 = vmatpush.bf16.msra.mxu0 0
        %1212 = vmatpush.bf16.msra.mxu0 0
        %1213 = vmatpush.bf16.msra.mxu0 %v1201
        %1214 = vmatmul.bf16.gmra.mxu0 %v1204
        %v1215 = vpop.f32.mrf.mxu0
        %v1216 = vadd.f32 0.0, %v1215
        %v1217 = vpop.f32.mrf.mxu0
        %1218 = vdwg.mxu0
        %v1221 = vunpack.c.l.b16 %v1132
        %v1222 = vunpack.c.l.b16 %v1133
        %v1223 = vpack.c.b16 %v1222, %v1221
        %v1226 = vsel %vm693, %v1130, 0
        %1228 = vmatpush.bf16.msra.mxu0 0
        %1229 = vmatpush.bf16.msra.mxu0 0
        %1230 = vmatpush.bf16.msra.mxu0 0
        %1231 = vmatpush.bf16.msra.mxu0 0
        %1232 = vmatpush.bf16.msra.mxu0 0
        %1233 = vmatpush.bf16.msra.mxu0 0
        %1234 = vmatpush.bf16.msra.mxu0 0
        %1235 = vmatpush.bf16.msra.mxu0 %v1223
        %1236 = vmatmul.bf16.gmra.mxu0 %v1226
        %v1237 = vpop.f32.mrf.mxu0
        %v1238 = vadd.f32 %v1216, %v1237
        %v1239 = vpop.f32.mrf.mxu0
        %1240 = vdwg.mxu0
        %v1241 = vperm.slane %v1030, 0
        %v1242 = vadd.f32 %v1238, %v1241
        %v1243 = vadd.f32 %v1028, %v1242
        %v1244 = vsel %vm612, %v1243, 0.0
        %1245 = vadd.xlane.f32.xlu0 %v1244
        %v1246 = vpop.xlane.xlu0 %1245
        %v1247 = vmul.f32 %v1246, %v622
        %v1248 = vsub.f32 %v1243, %v1247
        %v1249 = vmul.f32 %v1248, %v1248
        %v1250 = vsel %vm612, %v1249, 0.0
        %1251 = vadd.xlane.f32.xlu0 %v1250
        %v1252 = vpop.xlane.xlu0 %1251
        %v1253 = vmul.f32 %v1252, %v622
        %v1254 = vadd.f32 %v1253, 1e-05
        %v1255 = vrsqrt.pop %v1254
        %v1256 = vmul.f32 %v1255, %v1254
        %v1257 = vmul.f32 %v1256, %v1255
        %v1258 = vmul.f32 0.5, %v1257
        %v1259 = vsub.f32 1.5, %v1258
        %v1260 = vmul.f32 %v1255, %v1259
        %vm1261 = vweird.f32 %v1254
        %vm1262 = vweird.f32 %v1255
        %vm1263 = vmor %vm1261, %vm1262
        %v1264 = vsel %vm1263, %v1255, %v1260
        %v1265 = vmul.f32 %v1248, %v1264
        %v1266 = vperm.slane %v1030, 1
        %v1267 = vmul.f32 %v1265, %v1266
        %v1268 = vperm.slane %v1030, 2
        %v1269 = vadd.f32 %v1267, %v1268
        %v1270 = vpack.c.bf16 %v1269, %v1269
        %s1271 = scalar_lea.vmem %s8, 16
        %v1272 = vld [vmem:[%s1271] sm:$0xf]
        %v1273 = vld [vmem:[%s1271 + $0x4] sm:$0xf]
        %v1274 = vld [vmem:[%s1271 + $0x8] sm:$0xf]
        %v1275 = vld [vmem:[%s1271 + $0xc] sm:$0xf]
        %s1276 = scalar_lea.vmem %s10, 2
        %v1277 = vld [vmem:[%s1276] sm:$0x3]
        %v1278 = vperm.slane %v1277, 0
        %v1283 = vunpack.c.l.b16 %v1272
        %v1284 = vunpack.c.l.b16 %v1273
        %v1285 = vunpack.c.l.b16 %v1274
        %v1286 = vunpack.c.l.b16 %v1275
        %v1287 = vpack.c.b16 %v1284, %v1283
        %v1288 = vpack.c.b16 %v1286, %v1285
        %v1292 = vsel %vm612, %v1270, 0
        %1294 = vmatpush.bf16.msra.mxu0 0
        %1295 = vmatpush.bf16.msra.mxu0 0
        %1296 = vmatpush.bf16.msra.mxu0 0
        %1297 = vmatpush.bf16.msra.mxu0 0
        %1298 = vmatpush.bf16.msra.mxu0 0
        %1299 = vmatpush.bf16.msra.mxu0 0
        %1300 = vmatpush.bf16.msra.mxu0 %v1288
        %1301 = vmatpush.bf16.msra.mxu0 %v1287
        %1302 = vmatmul.bf16.gmra.mxu0 %v1292
        %v1303 = vpop.f32.mrf.mxu0
        %v1304 = vadd.f32 %v1278, %v1303
        %v1305 = vpop.f32.mrf.mxu0
        %1306 = vdwg.mxu0
        %v1307 = vmax.f32 %v1304, 0.0
        %v1308 = vpack.c.bf16 %v1307, %v1307
        %s1309 = scalar_lea.vmem %s9, 64
        %v1310 = vld [vmem:[%s1309] sm:$0xf]
        %v1311 = vld [vmem:[%s1309 + $0x4] sm:$0xf]
        %v1312 = vld [vmem:[%s1309 + $0x8] sm:$0xf]
        %v1313 = vld [vmem:[%s1309 + $0xc] sm:$0xf]
        %v1314 = vld [vmem:[%s1309 + $0x10] sm:$0xf]
        %v1315 = vld [vmem:[%s1309 + $0x14] sm:$0xf]
        %v1316 = vld [vmem:[%s1309 + $0x18] sm:$0xf]
        %v1317 = vld [vmem:[%s1309 + $0x1c] sm:$0xf]
        %v1318 = vld [vmem:[%s1309 + $0x20] sm:$0xf]
        %v1319 = vld [vmem:[%s1309 + $0x24] sm:$0xf]
        %v1320 = vld [vmem:[%s1309 + $0x28] sm:$0xf]
        %v1321 = vld [vmem:[%s1309 + $0x2c] sm:$0xf]
        %v1322 = vld [vmem:[%s1309 + $0x30] sm:$0xf]
        %v1323 = vld [vmem:[%s1309 + $0x34] sm:$0xf]
        %v1324 = vld [vmem:[%s1309 + $0x38] sm:$0xf]
        %v1325 = vld [vmem:[%s1309 + $0x3c] sm:$0xf]
        %v1326 = vperm.slane %v1030, 3
        %v1343 = vunpack.c.l.b16 %v1310
        %v1344 = vunpack.c.l.b16 %v1311
        %v1345 = vunpack.c.l.b16 %v1312
        %v1346 = vunpack.c.l.b16 %v1313
        %v1347 = vunpack.c.l.b16 %v1314
        %v1348 = vunpack.c.l.b16 %v1315
        %v1349 = vunpack.c.l.b16 %v1316
        %v1350 = vunpack.c.l.b16 %v1317
        %v1351 = vunpack.c.l.b16 %v1318
        %v1352 = vunpack.c.l.b16 %v1319
        %v1353 = vunpack.c.l.b16 %v1320
        %v1354 = vunpack.c.l.b16 %v1321
        %v1355 = vunpack.c.l.b16 %v1322
        %v1356 = vunpack.c.l.b16 %v1323
        %v1357 = vunpack.c.l.b16 %v1324
        %v1358 = vunpack.c.l.b16 %v1325
        %v1359 = vpack.c.b16 %v1344, %v1343
        %v1360 = vpack.c.b16 %v1346, %v1345
        %v1361 = vpack.c.b16 %v1348, %v1347
        %v1362 = vpack.c.b16 %v1350, %v1349
        %v1363 = vpack.c.b16 %v1352, %v1351
        %v1364 = vpack.c.b16 %v1354, %v1353
        %v1365 = vpack.c.b16 %v1356, %v1355
        %v1366 = vpack.c.b16 %v1358, %v1357
        %1375 = vmatpush.bf16.msra.mxu0 %v1366
        %1376 = vmatpush.bf16.msra.mxu0 %v1365
        %1377 = vmatpush.bf16.msra.mxu0 %v1364
        %1378 = vmatpush.bf16.msra.mxu0 %v1363
        %1379 = vmatpush.bf16.msra.mxu0 %v1362
        %1380 = vmatpush.bf16.msra.mxu0 %v1361
        %1381 = vmatpush.bf16.msra.mxu0 %v1360
        %1382 = vmatpush.bf16.msra.mxu0 %v1359
        %1383 = vmatmul.bf16.gmra.mxu0 %v1308
        %v1384 = vpop.f32.mrf.mxu0
        %v1385 = vadd.f32 %v1326, %v1384
        %v1386 = vpop.f32.mrf.mxu0
        %1387 = vdwg.mxu0
        %v1388 = vadd.f32 %v1269, %v1385
        %v1389 = vsel %vm612, %v1388, 0.0
        %1390 = vadd.xlane.f32.xlu0 %v1389
        %v1391 = vpop.xlane.xlu0 %1390
        %v1392 = vmul.f32 %v1391, %v622
        %v1393 = vsub.f32 %v1388, %v1392
        %v1394 = vmul.f32 %v1393, %v1393
        %v1395 = vsel %vm612, %v1394, 0.0
        %1396 = vadd.xlane.f32.xlu0 %v1395
        %v1397 = vpop.xlane.xlu0 %1396
        %v1398 = vmul.f32 %v1397, %v622
        %v1399 = vadd.f32 %v1398, 1e-05
        %v1400 = vrsqrt.pop %v1399
        %v1401 = vmul.f32 %v1400, %v1399
        %v1402 = vmul.f32 %v1401, %v1400
        %v1403 = vmul.f32 0.5, %v1402
        %v1404 = vsub.f32 1.5, %v1403
        %v1405 = vmul.f32 %v1400, %v1404
        %vm1406 = vweird.f32 %v1399
        %vm1407 = vweird.f32 %v1400
        %vm1408 = vmor %vm1406, %vm1407
        %v1409 = vsel %vm1408, %v1400, %v1405
        %v1410 = vmul.f32 %v1393, %v1409
        %v1411 = vperm.slane %v1030, 4
        %v1412 = vmul.f32 %v1410, %v1411
        %v1413 = vperm.slane %v1030, 5
        %v1414 = vadd.f32 %v1412, %v1413
        %v1415 = vld [vmem:[%s11] sm:$0xf]
        %v1416 = vld [vmem:[%s11 + $0x4] sm:$0xf]
        %v1417 = vld [vmem:[%s11 + $0x8] sm:$0xf]
        %v1418 = vld [vmem:[%s11 + $0xc] sm:$0xf]
        %v1419 = vld [vmem:[%s12] sm:$0xf]
        %v1420 = vld [vmem:[%s12 + $0x4] sm:$0xf]
        %v1421 = vld [vmem:[%s12 + $0x8] sm:$0xf]
        %v1422 = vld [vmem:[%s12 + $0xc] sm:$0xf]
        %v1423 = vld [vmem:[%s10] sm:$0x3]
        %v1424 = vpack.c.bf16 %v1414, %v1414
        %v1425 = vperm.slane %v1423, 1
        %v1430 = vunpack.c.l.b16 %v1415
        %v1431 = vunpack.c.l.b16 %v1416
        %v1432 = vunpack.c.l.b16 %v1417
        %v1433 = vunpack.c.l.b16 %v1418
        %v1434 = vpack.c.b16 %v1431, %v1430
        %v1435 = vpack.c.b16 %v1433, %v1432
        %v1439 = vsel %vm612, %v1424, 0
        %1441 = vmatpush.bf16.msra.mxu0 0
        %1442 = vmatpush.bf16.msra.mxu0 0
        %1443 = vmatpush.bf16.msra.mxu0 0
        %1444 = vmatpush.bf16.msra.mxu0 0
        %1445 = vmatpush.bf16.msra.mxu0 0
        %1446 = vmatpush.bf16.msra.mxu0 0
        %1447 = vmatpush.bf16.msra.mxu0 %v1435
        %1448 = vmatpush.bf16.msra.mxu0 %v1434
        %1449 = vmatmul.bf16.gmra.mxu0 %v1439
        %v1450 = vpop.f32.mrf.mxu0
        %v1451 = vadd.f32 %v1425, %v1450
        %v1452 = vpop.f32.mrf.mxu0
        %1453 = vdwg.mxu0
        %v1458 = vunpack.c.l.b16 %v1419
        %v1459 = vunpack.c.l.b16 %v1420
        %v1460 = vunpack.c.l.b16 %v1421
        %v1461 = vunpack.c.l.b16 %v1422
        %v1462 = vpack.c.b16 %v1459, %v1458
        %v1463 = vpack.c.b16 %v1461, %v1460
        %v1467 = vsel %vm612, 0, 0
        %1469 = vmatpush.bf16.msra.mxu0 0
        %1470 = vmatpush.bf16.msra.mxu0 0
        %1471 = vmatpush.bf16.msra.mxu0 0
        %1472 = vmatpush.bf16.msra.mxu0 0
        %1473 = vmatpush.bf16.msra.mxu0 0
        %1474 = vmatpush.bf16.msra.mxu0 0
        %1475 = vmatpush.bf16.msra.mxu0 %v1463
        %1476 = vmatpush.bf16.msra.mxu0 %v1462
        %1477 = vmatmul.bf16.gmra.mxu0 %v1467
        %v1478 = vpop.f32.mrf.mxu0
        %v1479 = vadd.f32 0.0, %v1478
        %v1480 = vpop.f32.mrf.mxu0
        %1481 = vdwg.mxu0
        %v1482 = vadd.f32 %v1451, %v1479
        %v1483 = vsub.f32 0.0, %v1482
        %v1484 = vmul.f32 %v1483, 1.442695
        %v1485 = vpow.pop %v1484
        %v1486 = vadd.f32 %v1485, 1.0
        %v1487 = vrcp.pop %v1486
        %v1488 = vmul.f32 %v1486, %v1487
        %v1489 = vsub.f32 1.0, %v1488
        %v1490 = vmul.f32 %v1487, %v1489
        %v1491 = vadd.f32 %v1487, %v1490
        %vm1492 = vweird.f32 %v1486
        %vm1493 = vweird.f32 %v1487
        %vm1494 = vmor %vm1492, %vm1493
        %v1495 = vsel %vm1494, %v1487, %v1491
        %v1496 = vand.u32 2147483647, %v1486
        %vm1497 = vcmp.eq.f32.partialorder %v1496, 8.507059e+37
        %v1498 = vand.u32 %v1486, 2147483648
        %v1499 = vor.u32 1.1754944e-38, %v1498
        %v1500 = vsel %vm1497, %v1499, %v1495
        %v1501 = vmul.f32 1.0, %v1500
        %v1502 = vtanh.pop %v1482
        %v1503 = vmul.f32 %v1501, 0.0
        %1505 = vrot.lane.b32.xlu0 %v1502, 64
        %v1506 = vpop.permute.xlu0 %1505
        %v1508 = vmul.f32 %v1501, %v1506
        %1510 = vrot.lane.b32.xlu0 %v1508, 32
        %v1511 = vpop.permute.xlu0 %1510
        %v1513 = vadd.f32 %v1503, %v1511
        %v1514 = vtanh.pop %v1513
        %1516 = vrot.lane.b32.xlu0 %v1514, 64
        %v1517 = vpop.permute.xlu0 %1516
        %v1519 = vmul.f32 %v1501, %v1517
        %1521 = vrot.lane.b32.xlu0 %v1519, 32
        %v1522 = vpop.permute.xlu0 %1521
        %vm1524 = vcmask 253952
        %1525 = vst.msk [vmem:[#allocation2] sm:$0x1] %vm1524, %v1522
        %v1526 = vpack.c.bf16 %v1519, %v1519
        %1528 = vrot.lane.b32.xlu0 %v1526, 32
        %v1529 = vpop.permute.xlu0 %1528
        %v1531 = vsel %vm612, %v1529, 0
        %1533 = vmatpush.bf16.msra.mxu0 0
        %1534 = vmatpush.bf16.msra.mxu0 0
        %1535 = vmatpush.bf16.msra.mxu0 0
        %1536 = vmatpush.bf16.msra.mxu0 0
        %1537 = vmatpush.bf16.msra.mxu0 0
        %1538 = vmatpush.bf16.msra.mxu0 0
        %1539 = vmatpush.bf16.msra.mxu0 %v1463
        %1540 = vmatpush.bf16.msra.mxu0 %v1462
        %1541 = vmatmul.bf16.gmra.mxu0 %v1531
        %v1542 = vpop.f32.mrf.mxu0
        %v1543 = vadd.f32 0.0, %v1542
        %v1544 = vpop.f32.mrf.mxu0
        %1545 = vdwg.mxu0
        %v1547 = vrot.slane %v1543, 7
        %v1549 = vadd.f32 %v1451, %v1547
        %v1550 = vsub.f32 0.0, %v1549
        %v1551 = vmul.f32 %v1550, 1.442695
        %v1552 = vpow.pop %v1551
        %v1553 = vadd.f32 %v1552, 1.0
        %v1554 = vrcp.pop %v1553
        %v1555 = vmul.f32 %v1553, %v1554
        %v1556 = vsub.f32 1.0, %v1555
        %v1557 = vmul.f32 %v1554, %v1556
        %v1558 = vadd.f32 %v1554, %v1557
        %vm1559 = vweird.f32 %v1553
        %vm1560 = vweird.f32 %v1554
        %vm1561 = vmor %vm1559, %vm1560
        %v1562 = vsel %vm1561, %v1554, %v1558
        %v1563 = vand.u32 2147483647, %v1553
        %vm1564 = vcmp.eq.f32.partialorder %v1563, 8.507059e+37
        %v1565 = vand.u32 %v1553, 2147483648
        %v1566 = vor.u32 1.1754944e-38, %v1565
        %v1567 = vsel %vm1564, %v1566, %v1562
        %v1568 = vmul.f32 1.0, %v1567
        %v1569 = vtanh.pop %v1549
        %v1571 = vrot.slane %v1513, 7
        %v1573 = vmul.f32 %v1568, %v1571
        %1575 = vrot.lane.b32.xlu0 %v1569, 64
        %v1576 = vpop.permute.xlu0 %1575
        %v1578 = vmul.f32 %v1568, %v1576
        %1580 = vrot.lane.b32.xlu0 %v1578, 32
        %v1581 = vpop.permute.xlu0 %1580
        %v1583 = vadd.f32 %v1573, %v1581
        %v1584 = vtanh.pop %v1583
        %1586 = vrot.lane.b32.xlu0 %v1584, 64
        %v1587 = vpop.permute.xlu0 %1586
        %v1589 = vmul.f32 %v1568, %v1587
        %1591 = vrot.lane.b32.xlu0 %v1589, 32
        %v1592 = vpop.permute.xlu0 %1591
        %vm1594 = vcmask 254977
        %1595 = vst.msk [vmem:[#allocation2] sm:$0x2] %vm1594, %v1592
        %v1596 = vpack.c.bf16 %v1589, %v1589
        %v1598 = vshrl.u32 %v1596, 16
        %1600 = vrot.lane.b32.xlu0 %v1598, 32
        %v1601 = vpop.permute.xlu0 %1600
        %v1603 = vsel %vm612, %v1601, 0
        %1605 = vmatpush.bf16.msra.mxu0 0
        %1606 = vmatpush.bf16.msra.mxu0 0
        %1607 = vmatpush.bf16.msra.mxu0 0
        %1608 = vmatpush.bf16.msra.mxu0 0
        %1609 = vmatpush.bf16.msra.mxu0 0
        %1610 = vmatpush.bf16.msra.mxu0 0
        %1611 = vmatpush.bf16.msra.mxu0 %v1463
        %1612 = vmatpush.bf16.msra.mxu0 %v1462
        %1613 = vmatmul.bf16.gmra.mxu0 %v1603
        %v1614 = vpop.f32.mrf.mxu0
        %v1615 = vadd.f32 0.0, %v1614
        %v1616 = vpop.f32.mrf.mxu0
        %1617 = vdwg.mxu0
        %v1619 = vrot.slane %v1615, 6
        %v1621 = vadd.f32 %v1451, %v1619
        %v1622 = vsub.f32 0.0, %v1621
        %v1623 = vmul.f32 %v1622, 1.442695
        %v1624 = vpow.pop %v1623
        %v1625 = vadd.f32 %v1624, 1.0
        %v1626 = vrcp.pop %v1625
        %v1627 = vmul.f32 %v1625, %v1626
        %v1628 = vsub.f32 1.0, %v1627
        %v1629 = vmul.f32 %v1626, %v1628
        %v1630 = vadd.f32 %v1626, %v1629
        %vm1631 = vweird.f32 %v1625
        %vm1632 = vweird.f32 %v1626
        %vm1633 = vmor %vm1631, %vm1632
        %v1634 = vsel %vm1633, %v1626, %v1630
        %v1635 = vand.u32 2147483647, %v1625
        %vm1636 = vcmp.eq.f32.partialorder %v1635, 8.507059e+37
        %v1637 = vand.u32 %v1625, 2147483648
        %v1638 = vor.u32 1.1754944e-38, %v1637
        %v1639 = vsel %vm1636, %v1638, %v1634
        %v1640 = vmul.f32 1.0, %v1639
        %v1641 = vtanh.pop %v1621
        %v1643 = vrot.slane %v1583, 7
        %v1645 = vmul.f32 %v1640, %v1643
        %1647 = vrot.lane.b32.xlu0 %v1641, 64
        %v1648 = vpop.permute.xlu0 %1647
        %v1650 = vmul.f32 %v1640, %v1648
        %1652 = vrot.lane.b32.xlu0 %v1650, 32
        %v1653 = vpop.permute.xlu0 %1652
        %v1655 = vadd.f32 %v1645, %v1653
        %v1656 = vtanh.pop %v1655
        %1658 = vrot.lane.b32.xlu0 %v1656, 64
        %v1659 = vpop.permute.xlu0 %1658
        %v1661 = vmul.f32 %v1640, %v1659
        %1663 = vrot.lane.b32.xlu0 %v1661, 32
        %v1664 = vpop.permute.xlu0 %1663
        %vm1666 = vcmask 256002
        %1667 = vst.msk [vmem:[#allocation2] sm:$0x4] %vm1666, %v1664
        %v1668 = vpack.c.bf16 %v1661, %v1661
        %v1670 = vrot.slane %v1668, 1
        %1671 = vrot.lane.b32.xlu0 %v1670, 32
        %v1672 = vpop.permute.xlu0 %1671
        %v1674 = vsel %vm612, %v1672, 0
        %1676 = vmatpush.bf16.msra.mxu0 0
        %1677 = vmatpush.bf16.msra.mxu0 0
        %1678 = vmatpush.bf16.msra.mxu0 0
        %1679 = vmatpush.bf16.msra.mxu0 0
        %1680 = vmatpush.bf16.msra.mxu0 0
        %1681 = vmatpush.bf16.msra.mxu0 0
        %1682 = vmatpush.bf16.msra.mxu0 %v1463
        %1683 = vmatpush.bf16.msra.mxu0 %v1462
        %1684 = vmatmul.bf16.gmra.mxu0 %v1674
        %v1685 = vpop.f32.mrf.mxu0
        %v1686 = vadd.f32 0.0, %v1685
        %v1687 = vpop.f32.mrf.mxu0
        %1688 = vdwg.mxu0
        %v1690 = vrot.slane %v1686, 5
        %v1692 = vadd.f32 %v1451, %v1690
        %v1693 = vsub.f32 0.0, %v1692
        %v1694 = vmul.f32 %v1693, 1.442695
        %v1695 = vpow.pop %v1694
        %v1696 = vadd.f32 %v1695, 1.0
        %v1697 = vrcp.pop %v1696
        %v1698 = vmul.f32 %v1696, %v1697
        %v1699 = vsub.f32 1.0, %v1698
        %v1700 = vmul.f32 %v1697, %v1699
        %v1701 = vadd.f32 %v1697, %v1700
        %vm1702 = vweird.f32 %v1696
        %vm1703 = vweird.f32 %v1697
        %vm1704 = vmor %vm1702, %vm1703
        %v1705 = vsel %vm1704, %v1697, %v1701
        %v1706 = vand.u32 2147483647, %v1696
        %vm1707 = vcmp.eq.f32.partialorder %v1706, 8.507059e+37
        %v1708 = vand.u32 %v1696, 2147483648
        %v1709 = vor.u32 1.1754944e-38, %v1708
        %v1710 = vsel %vm1707, %v1709, %v1705
        %v1711 = vmul.f32 1.0, %v1710
        %v1712 = vtanh.pop %v1692
        %v1714 = vrot.slane %v1655, 7
        %v1716 = vmul.f32 %v1711, %v1714
        %1718 = vrot.lane.b32.xlu0 %v1712, 64
        %v1719 = vpop.permute.xlu0 %1718
        %v1721 = vmul.f32 %v1711, %v1719
        %1723 = vrot.lane.b32.xlu0 %v1721, 32
        %v1724 = vpop.permute.xlu0 %1723
        %v1726 = vadd.f32 %v1716, %v1724
        %v1727 = vtanh.pop %v1726
        %1729 = vrot.lane.b32.xlu0 %v1727, 64
        %v1730 = vpop.permute.xlu0 %1729
        %v1732 = vmul.f32 %v1711, %v1730
        %1734 = vrot.lane.b32.xlu0 %v1732, 32
        %v1735 = vpop.permute.xlu0 %1734
        %vm1737 = vcmask 257027
        %1738 = vst.msk [vmem:[#allocation2] sm:$0x8] %vm1737, %v1735
        %v1739 = vpack.c.bf16 %v1732, %v1732
        %v1741 = vshrl.u32 %v1739, 16
        %v1743 = vrot.slane %v1741, 1
        %1744 = vrot.lane.b32.xlu0 %v1743, 32
        %v1745 = vpop.permute.xlu0 %1744
        %v1747 = vsel %vm612, %v1745, 0
        %1749 = vmatpush.bf16.msra.mxu0 0
        %1750 = vmatpush.bf16.msra.mxu0 0
        %1751 = vmatpush.bf16.msra.mxu0 0
        %1752 = vmatpush.bf16.msra.mxu0 0
        %1753 = vmatpush.bf16.msra.mxu0 0
        %1754 = vmatpush.bf16.msra.mxu0 0
        %1755 = vmatpush.bf16.msra.mxu0 %v1463
        %1756 = vmatpush.bf16.msra.mxu0 %v1462
        %1757 = vmatmul.bf16.gmra.mxu0 %v1747
        %v1758 = vpop.f32.mrf.mxu0
        %v1759 = vadd.f32 0.0, %v1758
        %v1760 = vpop.f32.mrf.mxu0
        %1761 = vdwg.mxu0
        %v1763 = vrot.slane %v1759, 4
        %v1765 = vadd.f32 %v1451, %v1763
        %v1766 = vsub.f32 0.0, %v1765
        %v1767 = vmul.f32 %v1766, 1.442695
        %v1768 = vpow.pop %v1767
        %v1769 = vadd.f32 %v1768, 1.0
        %v1770 = vrcp.pop %v1769
        %v1771 = vmul.f32 %v1769, %v1770
        %v1772 = vsub.f32 1.0, %v1771
        %v1773 = vmul.f32 %v1770, %v1772
        %v1774 = vadd.f32 %v1770, %v1773
        %vm1775 = vweird.f32 %v1769
        %vm1776 = vweird.f32 %v1770
        %vm1777 = vmor %vm1775, %vm1776
        %v1778 = vsel %vm1777, %v1770, %v1774
        %v1779 = vand.u32 2147483647, %v1769
        %vm1780 = vcmp.eq.f32.partialorder %v1779, 8.507059e+37
        %v1781 = vand.u32 %v1769, 2147483648
        %v1782 = vor.u32 1.1754944e-38, %v1781
        %v1783 = vsel %vm1780, %v1782, %v1778
        %v1784 = vmul.f32 1.0, %v1783
        %v1785 = vtanh.pop %v1765
        %v1787 = vrot.slane %v1726, 7
        %v1789 = vmul.f32 %v1784, %v1787
        %1791 = vrot.lane.b32.xlu0 %v1785, 64
        %v1792 = vpop.permute.xlu0 %1791
        %v1794 = vmul.f32 %v1784, %v1792
        %1796 = vrot.lane.b32.xlu0 %v1794, 32
        %v1797 = vpop.permute.xlu0 %1796
        %v1799 = vadd.f32 %v1789, %v1797
        %v1800 = vtanh.pop %v1799
        %1802 = vrot.lane.b32.xlu0 %v1800, 64
        %v1803 = vpop.permute.xlu0 %1802
        %v1805 = vmul.f32 %v1784, %v1803
        %1807 = vrot.lane.b32.xlu0 %v1805, 32
        %v1808 = vpop.permute.xlu0 %1807
        %vm1810 = vcmask 258052
        %1811 = vst.msk [vmem:[#allocation2] sm:$0x10] %vm1810, %v1808
        %v1812 = vpack.c.bf16 %v1805, %v1805
        %v1814 = vrot.slane %v1812, 2
        %1815 = vrot.lane.b32.xlu0 %v1814, 32
        %v1816 = vpop.permute.xlu0 %1815
        %v1818 = vsel %vm612, %v1816, 0
        %1820 = vmatpush.bf16.msra.mxu0 0
        %1821 = vmatpush.bf16.msra.mxu0 0
        %1822 = vmatpush.bf16.msra.mxu0 0
        %1823 = vmatpush.bf16.msra.mxu0 0
        %1824 = vmatpush.bf16.msra.mxu0 0
        %1825 = vmatpush.bf16.msra.mxu0 0
        %1826 = vmatpush.bf16.msra.mxu0 %v1463
        %1827 = vmatpush.bf16.msra.mxu0 %v1462
        %1828 = vmatmul.bf16.gmra.mxu0 %v1818
        %v1829 = vpop.f32.mrf.mxu0
        %v1830 = vadd.f32 0.0, %v1829
        %v1831 = vpop.f32.mrf.mxu0
        %1832 = vdwg.mxu0
        %v1834 = vrot.slane %v1830, 3
        %v1836 = vadd.f32 %v1451, %v1834
        %v1837 = vsub.f32 0.0, %v1836
        %v1838 = vmul.f32 %v1837, 1.442695
        %v1839 = vpow.pop %v1838
        %v1840 = vadd.f32 %v1839, 1.0
        %v1841 = vrcp.pop %v1840
        %v1842 = vmul.f32 %v1840, %v1841
        %v1843 = vsub.f32 1.0, %v1842
        %v1844 = vmul.f32 %v1841, %v1843
        %v1845 = vadd.f32 %v1841, %v1844
        %vm1846 = vweird.f32 %v1840
        %vm1847 = vweird.f32 %v1841
        %vm1848 = vmor %vm1846, %vm1847
        %v1849 = vsel %vm1848, %v1841, %v1845
        %v1850 = vand.u32 2147483647, %v1840
        %vm1851 = vcmp.eq.f32.partialorder %v1850, 8.507059e+37
        %v1852 = vand.u32 %v1840, 2147483648
        %v1853 = vor.u32 1.1754944e-38, %v1852
        %v1854 = vsel %vm1851, %v1853, %v1849
        %v1855 = vmul.f32 1.0, %v1854
        %v1856 = vtanh.pop %v1836
        %v1858 = vrot.slane %v1799, 7
        %v1860 = vmul.f32 %v1855, %v1858
        %1862 = vrot.lane.b32.xlu0 %v1856, 64
        %v1863 = vpop.permute.xlu0 %1862
        %v1865 = vmul.f32 %v1855, %v1863
        %1867 = vrot.lane.b32.xlu0 %v1865, 32
        %v1868 = vpop.permute.xlu0 %1867
        %v1870 = vadd.f32 %v1860, %v1868
        %v1871 = vtanh.pop %v1870
        %1873 = vrot.lane.b32.xlu0 %v1871, 64
        %v1874 = vpop.permute.xlu0 %1873
        %v1876 = vmul.f32 %v1855, %v1874
        %1878 = vrot.lane.b32.xlu0 %v1876, 32
        %v1879 = vpop.permute.xlu0 %1878
        %vm1881 = vcmask 259077
        %1882 = vst.msk [vmem:[#allocation2] sm:$0x20] %vm1881, %v1879
        %v1883 = vpack.c.bf16 %v1876, %v1876
        %v1885 = vshrl.u32 %v1883, 16
        %v1887 = vrot.slane %v1885, 2
        %1888 = vrot.lane.b32.xlu0 %v1887, 32
        %v1889 = vpop.permute.xlu0 %1888
        %v1891 = vsel %vm612, %v1889, 0
        %1893 = vmatpush.bf16.msra.mxu0 0
        %1894 = vmatpush.bf16.msra.mxu0 0
        %1895 = vmatpush.bf16.msra.mxu0 0
        %1896 = vmatpush.bf16.msra.mxu0 0
        %1897 = vmatpush.bf16.msra.mxu0 0
        %1898 = vmatpush.bf16.msra.mxu0 0
        %1899 = vmatpush.bf16.msra.mxu0 %v1463
        %1900 = vmatpush.bf16.msra.mxu0 %v1462
        %1901 = vmatmul.bf16.gmra.mxu0 %v1891
        %v1902 = vpop.f32.mrf.mxu0
        %v1903 = vadd.f32 0.0, %v1902
        %v1904 = vpop.f32.mrf.mxu0
        %1905 = vdwg.mxu0
        %v1907 = vrot.slane %v1903, 2
        %v1909 = vadd.f32 %v1451, %v1907
        %v1910 = vsub.f32 0.0, %v1909
        %v1911 = vmul.f32 %v1910, 1.442695
        %v1912 = vpow.pop %v1911
        %v1913 = vadd.f32 %v1912, 1.0
        %v1914 = vrcp.pop %v1913
        %v1915 = vmul.f32 %v1913, %v1914
        %v1916 = vsub.f32 1.0, %v1915
        %v1917 = vmul.f32 %v1914, %v1916
        %v1918 = vadd.f32 %v1914, %v1917
        %vm1919 = vweird.f32 %v1913
        %vm1920 = vweird.f32 %v1914
        %vm1921 = vmor %vm1919, %vm1920
        %v1922 = vsel %vm1921, %v1914, %v1918
        %v1923 = vand.u32 2147483647, %v1913
        %vm1924 = vcmp.eq.f32.partialorder %v1923, 8.507059e+37
        %v1925 = vand.u32 %v1913, 2147483648
        %v1926 = vor.u32 1.1754944e-38, %v1925
        %v1927 = vsel %vm1924, %v1926, %v1922
        %v1928 = vmul.f32 1.0, %v1927
        %v1929 = vtanh.pop %v1909
        %v1931 = vrot.slane %v1870, 7
        %v1933 = vmul.f32 %v1928, %v1931
        %1935 = vrot.lane.b32.xlu0 %v1929, 64
        %v1936 = vpop.permute.xlu0 %1935
        %v1938 = vmul.f32 %v1928, %v1936
        %1940 = vrot.lane.b32.xlu0 %v1938, 32
        %v1941 = vpop.permute.xlu0 %1940
        %v1943 = vadd.f32 %v1933, %v1941
        %v1944 = vtanh.pop %v1943
        %1946 = vrot.lane.b32.xlu0 %v1944, 64
        %v1947 = vpop.permute.xlu0 %1946
        %v1949 = vmul.f32 %v1928, %v1947
        %1951 = vrot.lane.b32.xlu0 %v1949, 32
        %v1952 = vpop.permute.xlu0 %1951
        %vm1954 = vcmask 260102
        %1955 = vst.msk [vmem:[#allocation2] sm:$0x40] %vm1954, %v1952
        %v1956 = vpack.c.bf16 %v1949, %v1949
        %v1958 = vrot.slane %v1956, 3
        %1959 = vrot.lane.b32.xlu0 %v1958, 32
        %v1960 = vpop.permute.xlu0 %1959
        %v1962 = vsel %vm612, %v1960, 0
        %1964 = vmatpush.bf16.msra.mxu0 0
        %1965 = vmatpush.bf16.msra.mxu0 0
        %1966 = vmatpush.bf16.msra.mxu0 0
        %1967 = vmatpush.bf16.msra.mxu0 0
        %1968 = vmatpush.bf16.msra.mxu0 0
        %1969 = vmatpush.bf16.msra.mxu0 0
        %1970 = vmatpush.bf16.msra.mxu0 %v1463
        %1971 = vmatpush.bf16.msra.mxu0 %v1462
        %1972 = vmatmul.bf16.gmra.mxu0 %v1962
        %v1973 = vpop.f32.mrf.mxu0
        %v1974 = vadd.f32 0.0, %v1973
        %v1975 = vpop.f32.mrf.mxu0
        %1976 = vdwg.mxu0
        %v1978 = vrot.slane %v1974, 1
        %v1980 = vadd.f32 %v1451, %v1978
        %v1981 = vsub.f32 0.0, %v1980
        %v1982 = vmul.f32 %v1981, 1.442695
        %v1983 = vpow.pop %v1982
        %v1984 = vadd.f32 %v1983, 1.0
        %v1985 = vrcp.pop %v1984
        %v1986 = vmul.f32 %v1984, %v1985
        %v1987 = vsub.f32 1.0, %v1986
        %v1988 = vmul.f32 %v1985, %v1987
        %v1989 = vadd.f32 %v1985, %v1988
        %vm1990 = vweird.f32 %v1984
        %vm1991 = vweird.f32 %v1985
        %vm1992 = vmor %vm1990, %vm1991
        %v1993 = vsel %vm1992, %v1985, %v1989
        %v1994 = vand.u32 2147483647, %v1984
        %vm1995 = vcmp.eq.f32.partialorder %v1994, 8.507059e+37
        %v1996 = vand.u32 %v1984, 2147483648
        %v1997 = vor.u32 1.1754944e-38, %v1996
        %v1998 = vsel %vm1995, %v1997, %v1993
        %v1999 = vmul.f32 1.0, %v1998
        %v2000 = vtanh.pop %v1980
        %v2002 = vrot.slane %v1943, 7
        %v2004 = vmul.f32 %v1999, %v2002
        %2006 = vrot.lane.b32.xlu0 %v2000, 64
        %v2007 = vpop.permute.xlu0 %2006
        %v2009 = vmul.f32 %v1999, %v2007
        %2011 = vrot.lane.b32.xlu0 %v2009, 32
        %v2012 = vpop.permute.xlu0 %2011
        %v2014 = vadd.f32 %v2004, %v2012
        %v2015 = vtanh.pop %v2014
        %2017 = vrot.lane.b32.xlu0 %v2015, 64
        %v2018 = vpop.permute.xlu0 %2017
        %v2020 = vmul.f32 %v1999, %v2018
        %2022 = vrot.lane.b32.xlu0 %v2020, 32
        %v2023 = vpop.permute.xlu0 %2022
        %vm2025 = vcmask 261127
        %2026 = vst.msk [vmem:[#allocation2] sm:$0x80] %vm2025, %v2023
        %v2027 = vld [vmem:[#allocation2] sm:$0xff]
        %s2028 = scalar_lea.vmem %s11, 16
        %v2029 = vld [vmem:[%s2028] sm:$0xf]
        %v2030 = vld [vmem:[%s2028 + $0x4] sm:$0xf]
        %v2031 = vld [vmem:[%s2028 + $0x8] sm:$0xf]
        %v2032 = vld [vmem:[%s2028 + $0xc] sm:$0xf]
        %s2033 = scalar_lea.vmem %s12, 16
        %v2034 = vld [vmem:[%s2033] sm:$0xf]
        %v2035 = vld [vmem:[%s2033 + $0x4] sm:$0xf]
        %v2036 = vld [vmem:[%s2033 + $0x8] sm:$0xf]
        %v2037 = vld [vmem:[%s2033 + $0xc] sm:$0xf]
        %v2038 = vld [vmem:[%s1276] sm:$0x3]
        %v2039 = vpack.c.bf16 %v2027, %v2027
        %v2040 = vperm.slane %v2038, 1
        %v2045 = vunpack.c.l.b16 %v2029
        %v2046 = vunpack.c.l.b16 %v2030
        %v2047 = vunpack.c.l.b16 %v2031
        %v2048 = vunpack.c.l.b16 %v2032
        %v2049 = vpack.c.b16 %v2046, %v2045
        %v2050 = vpack.c.b16 %v2048, %v2047
        %v2054 = vsel %vm612, %v2039, 0
        %2056 = vmatpush.bf16.msra.mxu0 0
        %2057 = vmatpush.bf16.msra.mxu0 0
        %2058 = vmatpush.bf16.msra.mxu0 0
        %2059 = vmatpush.bf16.msra.mxu0 0
        %2060 = vmatpush.bf16.msra.mxu0 0
        %2061 = vmatpush.bf16.msra.mxu0 0
        %2062 = vmatpush.bf16.msra.mxu0 %v2050
        %2063 = vmatpush.bf16.msra.mxu0 %v2049
        %2064 = vmatmul.bf16.gmra.mxu0 %v2054
        %v2065 = vpop.f32.mrf.mxu0
        %v2066 = vadd.f32 %v2040, %v2065
        %v2067 = vpop.f32.mrf.mxu0
        %2068 = vdwg.mxu0
        %v2073 = vunpack.c.l.b16 %v2034
        %v2074 = vunpack.c.l.b16 %v2035
        %v2075 = vunpack.c.l.b16 %v2036
        %v2076 = vunpack.c.l.b16 %v2037
        %v2077 = vpack.c.b16 %v2074, %v2073
        %v2078 = vpack.c.b16 %v2076, %v2075
        %2081 = vmatpush.bf16.msra.mxu0 0
        %2082 = vmatpush.bf16.msra.mxu0 0
        %2083 = vmatpush.bf16.msra.mxu0 0
        %2084 = vmatpush.bf16.msra.mxu0 0
        %2085 = vmatpush.bf16.msra.mxu0 0
        %2086 = vmatpush.bf16.msra.mxu0 0
        %2087 = vmatpush.bf16.msra.mxu0 %v2078
        %2088 = vmatpush.bf16.msra.mxu0 %v2077
        %2089 = vmatmul.bf16.gmra.mxu0 %v1467
        %v2090 = vpop.f32.mrf.mxu0
        %v2091 = vadd.f32 0.0, %v2090
        %v2092 = vpop.f32.mrf.mxu0
        %2093 = vdwg.mxu0
        %v2094 = vadd.f32 %v2066, %v2091
        %v2095 = vsub.f32 0.0, %v2094
        %v2096 = vmul.f32 %v2095, 1.442695
        %v2097 = vpow.pop %v2096
        %v2098 = vadd.f32 %v2097, 1.0
        %v2099 = vrcp.pop %v2098
        %v2100 = vmul.f32 %v2098, %v2099
        %v2101 = vsub.f32 1.0, %v2100
        %v2102 = vmul.f32 %v2099, %v2101
        %v2103 = vadd.f32 %v2099, %v2102
        %vm2104 = vweird.f32 %v2098
        %vm2105 = vweird.f32 %v2099
        %vm2106 = vmor %vm2104, %vm2105
        %v2107 = vsel %vm2106, %v2099, %v2103
        %v2108 = vand.u32 2147483647, %v2098
        %vm2109 = vcmp.eq.f32.partialorder %v2108, 8.507059e+37
        %v2110 = vand.u32 %v2098, 2147483648
        %v2111 = vor.u32 1.1754944e-38, %v2110
        %v2112 = vsel %vm2109, %v2111, %v2107
        %v2113 = vmul.f32 1.0, %v2112
        %v2114 = vtanh.pop %v2094
        %v2115 = vmul.f32 %v2113, 0.0
        %2117 = vrot.lane.b32.xlu0 %v2114, 64
        %v2118 = vpop.permute.xlu0 %2117
        %v2120 = vmul.f32 %v2113, %v2118
        %2122 = vrot.lane.b32.xlu0 %v2120, 32
        %v2123 = vpop.permute.xlu0 %2122
        %v2125 = vadd.f32 %v2115, %v2123
        %v2126 = vtanh.pop %v2125
        %2128 = vrot.lane.b32.xlu0 %v2126, 64
        %v2129 = vpop.permute.xlu0 %2128
        %v2131 = vmul.f32 %v2113, %v2129
        %v2132 = vpack.c.bf16 %v2131, %v2131
        %2134 = vrot.lane.b32.xlu0 %v2132, 32
        %v2135 = vpop.permute.xlu0 %2134
        %v2137 = vsel %vm612, %v2135, 0
        %2139 = vmatpush.bf16.msra.mxu0 0
        %2140 = vmatpush.bf16.msra.mxu0 0
        %2141 = vmatpush.bf16.msra.mxu0 0
        %2142 = vmatpush.bf16.msra.mxu0 0
        %2143 = vmatpush.bf16.msra.mxu0 0
        %2144 = vmatpush.bf16.msra.mxu0 0
        %2145 = vmatpush.bf16.msra.mxu0 %v2078
        %2146 = vmatpush.bf16.msra.mxu0 %v2077
        %2147 = vmatmul.bf16.gmra.mxu0 %v2137
        %v2148 = vpop.f32.mrf.mxu0
        %v2149 = vadd.f32 0.0, %v2148
        %v2150 = vpop.f32.mrf.mxu0
        %2151 = vdwg.mxu0
        %v2153 = vrot.slane %v2149, 7
        %v2155 = vadd.f32 %v2066, %v2153
        %v2156 = vsub.f32 0.0, %v2155
        %v2157 = vmul.f32 %v2156, 1.442695
        %v2158 = vpow.pop %v2157
        %v2159 = vadd.f32 %v2158, 1.0
        %v2160 = vrcp.pop %v2159
        %v2161 = vmul.f32 %v2159, %v2160
        %v2162 = vsub.f32 1.0, %v2161
        %v2163 = vmul.f32 %v2160, %v2162
        %v2164 = vadd.f32 %v2160, %v2163
        %vm2165 = vweird.f32 %v2159
        %vm2166 = vweird.f32 %v2160
        %vm2167 = vmor %vm2165, %vm2166
        %v2168 = vsel %vm2167, %v2160, %v2164
        %v2169 = vand.u32 2147483647, %v2159
        %vm2170 = vcmp.eq.f32.partialorder %v2169, 8.507059e+37
        %v2171 = vand.u32 %v2159, 2147483648
        %v2172 = vor.u32 1.1754944e-38, %v2171
        %v2173 = vsel %vm2170, %v2172, %v2168
        %v2174 = vmul.f32 1.0, %v2173
        %v2175 = vtanh.pop %v2155
        %v2177 = vrot.slane %v2125, 7
        %v2179 = vmul.f32 %v2174, %v2177
        %2181 = vrot.lane.b32.xlu0 %v2175, 64
        %v2182 = vpop.permute.xlu0 %2181
        %v2184 = vmul.f32 %v2174, %v2182
        %2186 = vrot.lane.b32.xlu0 %v2184, 32
        %v2187 = vpop.permute.xlu0 %2186
        %v2189 = vadd.f32 %v2179, %v2187
        %v2190 = vtanh.pop %v2189
        %2192 = vrot.lane.b32.xlu0 %v2190, 64
        %v2193 = vpop.permute.xlu0 %2192
        %v2195 = vmul.f32 %v2174, %v2193
        %v2196 = vpack.c.bf16 %v2195, %v2195
        %v2198 = vshrl.u32 %v2196, 16
        %2200 = vrot.lane.b32.xlu0 %v2198, 32
        %v2201 = vpop.permute.xlu0 %2200
        %v2203 = vsel %vm612, %v2201, 0
        %2205 = vmatpush.bf16.msra.mxu0 0
        %2206 = vmatpush.bf16.msra.mxu0 0
        %2207 = vmatpush.bf16.msra.mxu0 0
        %2208 = vmatpush.bf16.msra.mxu0 0
        %2209 = vmatpush.bf16.msra.mxu0 0
        %2210 = vmatpush.bf16.msra.mxu0 0
        %2211 = vmatpush.bf16.msra.mxu0 %v2078
        %2212 = vmatpush.bf16.msra.mxu0 %v2077
        %2213 = vmatmul.bf16.gmra.mxu0 %v2203
        %v2214 = vpop.f32.mrf.mxu0
        %v2215 = vadd.f32 0.0, %v2214
        %v2216 = vpop.f32.mrf.mxu0
        %2217 = vdwg.mxu0
        %v2219 = vrot.slane %v2215, 6
        %v2221 = vadd.f32 %v2066, %v2219
        %v2222 = vsub.f32 0.0, %v2221
        %v2223 = vmul.f32 %v2222, 1.442695
        %v2224 = vpow.pop %v2223
        %v2225 = vadd.f32 %v2224, 1.0
        %v2226 = vrcp.pop %v2225
        %v2227 = vmul.f32 %v2225, %v2226
        %v2228 = vsub.f32 1.0, %v2227
        %v2229 = vmul.f32 %v2226, %v2228
        %v2230 = vadd.f32 %v2226, %v2229
        %vm2231 = vweird.f32 %v2225
        %vm2232 = vweird.f32 %v2226
        %vm2233 = vmor %vm2231, %vm2232
        %v2234 = vsel %vm2233, %v2226, %v2230
        %v2235 = vand.u32 2147483647, %v2225
        %vm2236 = vcmp.eq.f32.partialorder %v2235, 8.507059e+37
        %v2237 = vand.u32 %v2225, 2147483648
        %v2238 = vor.u32 1.1754944e-38, %v2237
        %v2239 = vsel %vm2236, %v2238, %v2234
        %v2240 = vmul.f32 1.0, %v2239
        %v2241 = vtanh.pop %v2221
        %v2243 = vrot.slane %v2189, 7
        %v2245 = vmul.f32 %v2240, %v2243
        %2247 = vrot.lane.b32.xlu0 %v2241, 64
        %v2248 = vpop.permute.xlu0 %2247
        %v2250 = vmul.f32 %v2240, %v2248
        %2252 = vrot.lane.b32.xlu0 %v2250, 32
        %v2253 = vpop.permute.xlu0 %2252
        %v2255 = vadd.f32 %v2245, %v2253
        %v2256 = vtanh.pop %v2255
        %2258 = vrot.lane.b32.xlu0 %v2256, 64
        %v2259 = vpop.permute.xlu0 %2258
        %v2261 = vmul.f32 %v2240, %v2259
        %v2262 = vpack.c.bf16 %v2261, %v2261
        %v2264 = vrot.slane %v2262, 1
        %2265 = vrot.lane.b32.xlu0 %v2264, 32
        %v2266 = vpop.permute.xlu0 %2265
        %v2268 = vsel %vm612, %v2266, 0
        %2270 = vmatpush.bf16.msra.mxu0 0
        %2271 = vmatpush.bf16.msra.mxu0 0
        %2272 = vmatpush.bf16.msra.mxu0 0
        %2273 = vmatpush.bf16.msra.mxu0 0
        %2274 = vmatpush.bf16.msra.mxu0 0
        %2275 = vmatpush.bf16.msra.mxu0 0
        %2276 = vmatpush.bf16.msra.mxu0 %v2078
        %2277 = vmatpush.bf16.msra.mxu0 %v2077
        %2278 = vmatmul.bf16.gmra.mxu0 %v2268
        %v2279 = vpop.f32.mrf.mxu0
        %v2280 = vadd.f32 0.0, %v2279
        %v2281 = vpop.f32.mrf.mxu0
        %2282 = vdwg.mxu0
        %v2284 = vrot.slane %v2280, 5
        %v2286 = vadd.f32 %v2066, %v2284
        %v2287 = vsub.f32 0.0, %v2286
        %v2288 = vmul.f32 %v2287, 1.442695
        %v2289 = vpow.pop %v2288
        %v2290 = vadd.f32 %v2289, 1.0
        %v2291 = vrcp.pop %v2290
        %v2292 = vmul.f32 %v2290, %v2291
        %v2293 = vsub.f32 1.0, %v2292
        %v2294 = vmul.f32 %v2291, %v2293
        %v2295 = vadd.f32 %v2291, %v2294
        %vm2296 = vweird.f32 %v2290
        %vm2297 = vweird.f32 %v2291
        %vm2298 = vmor %vm2296, %vm2297
        %v2299 = vsel %vm2298, %v2291, %v2295
        %v2300 = vand.u32 2147483647, %v2290
        %vm2301 = vcmp.eq.f32.partialorder %v2300, 8.507059e+37
        %v2302 = vand.u32 %v2290, 2147483648
        %v2303 = vor.u32 1.1754944e-38, %v2302
        %v2304 = vsel %vm2301, %v2303, %v2299
        %v2305 = vmul.f32 1.0, %v2304
        %v2306 = vtanh.pop %v2286
        %v2308 = vrot.slane %v2255, 7
        %v2310 = vmul.f32 %v2305, %v2308
        %2312 = vrot.lane.b32.xlu0 %v2306, 64
        %v2313 = vpop.permute.xlu0 %2312
        %v2315 = vmul.f32 %v2305, %v2313
        %2317 = vrot.lane.b32.xlu0 %v2315, 32
        %v2318 = vpop.permute.xlu0 %2317
        %v2320 = vadd.f32 %v2310, %v2318
        %v2321 = vtanh.pop %v2320
        %2323 = vrot.lane.b32.xlu0 %v2321, 64
        %v2324 = vpop.permute.xlu0 %2323
        %v2326 = vmul.f32 %v2305, %v2324
        %v2327 = vpack.c.bf16 %v2326, %v2326
        %v2329 = vshrl.u32 %v2327, 16
        %v2331 = vrot.slane %v2329, 1
        %2332 = vrot.lane.b32.xlu0 %v2331, 32
        %v2333 = vpop.permute.xlu0 %2332
        %v2335 = vsel %vm612, %v2333, 0
        %2337 = vmatpush.bf16.msra.mxu0 0
        %2338 = vmatpush.bf16.msra.mxu0 0
        %2339 = vmatpush.bf16.msra.mxu0 0
        %2340 = vmatpush.bf16.msra.mxu0 0
        %2341 = vmatpush.bf16.msra.mxu0 0
        %2342 = vmatpush.bf16.msra.mxu0 0
        %2343 = vmatpush.bf16.msra.mxu0 %v2078
        %2344 = vmatpush.bf16.msra.mxu0 %v2077
        %2345 = vmatmul.bf16.gmra.mxu0 %v2335
        %v2346 = vpop.f32.mrf.mxu0
        %v2347 = vadd.f32 0.0, %v2346
        %v2348 = vpop.f32.mrf.mxu0
        %2349 = vdwg.mxu0
        %v2351 = vrot.slane %v2347, 4
        %v2353 = vadd.f32 %v2066, %v2351
        %v2354 = vsub.f32 0.0, %v2353
        %v2355 = vmul.f32 %v2354, 1.442695
        %v2356 = vpow.pop %v2355
        %v2357 = vadd.f32 %v2356, 1.0
        %v2358 = vrcp.pop %v2357
        %v2359 = vmul.f32 %v2357, %v2358
        %v2360 = vsub.f32 1.0, %v2359
        %v2361 = vmul.f32 %v2358, %v2360
        %v2362 = vadd.f32 %v2358, %v2361
        %vm2363 = vweird.f32 %v2357
        %vm2364 = vweird.f32 %v2358
        %vm2365 = vmor %vm2363, %vm2364
        %v2366 = vsel %vm2365, %v2358, %v2362
        %v2367 = vand.u32 2147483647, %v2357
        %vm2368 = vcmp.eq.f32.partialorder %v2367, 8.507059e+37
        %v2369 = vand.u32 %v2357, 2147483648
        %v2370 = vor.u32 1.1754944e-38, %v2369
        %v2371 = vsel %vm2368, %v2370, %v2366
        %v2372 = vmul.f32 1.0, %v2371
        %v2373 = vtanh.pop %v2353
        %v2375 = vrot.slane %v2320, 7
        %v2377 = vmul.f32 %v2372, %v2375
        %2379 = vrot.lane.b32.xlu0 %v2373, 64
        %v2380 = vpop.permute.xlu0 %2379
        %v2382 = vmul.f32 %v2372, %v2380
        %2384 = vrot.lane.b32.xlu0 %v2382, 32
        %v2385 = vpop.permute.xlu0 %2384
        %v2387 = vadd.f32 %v2377, %v2385
        %v2388 = vtanh.pop %v2387
        %2390 = vrot.lane.b32.xlu0 %v2388, 64
        %v2391 = vpop.permute.xlu0 %2390
        %v2393 = vmul.f32 %v2372, %v2391
        %v2394 = vpack.c.bf16 %v2393, %v2393
        %v2396 = vrot.slane %v2394, 2
        %2397 = vrot.lane.b32.xlu0 %v2396, 32
        %v2398 = vpop.permute.xlu0 %2397
        %v2400 = vsel %vm612, %v2398, 0
        %2402 = vmatpush.bf16.msra.mxu0 0
        %2403 = vmatpush.bf16.msra.mxu0 0
        %2404 = vmatpush.bf16.msra.mxu0 0
        %2405 = vmatpush.bf16.msra.mxu0 0
        %2406 = vmatpush.bf16.msra.mxu0 0
        %2407 = vmatpush.bf16.msra.mxu0 0
        %2408 = vmatpush.bf16.msra.mxu0 %v2078
        %2409 = vmatpush.bf16.msra.mxu0 %v2077
        %2410 = vmatmul.bf16.gmra.mxu0 %v2400
        %v2411 = vpop.f32.mrf.mxu0
        %v2412 = vadd.f32 0.0, %v2411
        %v2413 = vpop.f32.mrf.mxu0
        %2414 = vdwg.mxu0
        %v2416 = vrot.slane %v2412, 3
        %v2418 = vadd.f32 %v2066, %v2416
        %v2419 = vsub.f32 0.0, %v2418
        %v2420 = vmul.f32 %v2419, 1.442695
        %v2421 = vpow.pop %v2420
        %v2422 = vadd.f32 %v2421, 1.0
        %v2423 = vrcp.pop %v2422
        %v2424 = vmul.f32 %v2422, %v2423
        %v2425 = vsub.f32 1.0, %v2424
        %v2426 = vmul.f32 %v2423, %v2425
        %v2427 = vadd.f32 %v2423, %v2426
        %vm2428 = vweird.f32 %v2422
        %vm2429 = vweird.f32 %v2423
        %vm2430 = vmor %vm2428, %vm2429
        %v2431 = vsel %vm2430, %v2423, %v2427
        %v2432 = vand.u32 2147483647, %v2422
        %vm2433 = vcmp.eq.f32.partialorder %v2432, 8.507059e+37
        %v2434 = vand.u32 %v2422, 2147483648
        %v2435 = vor.u32 1.1754944e-38, %v2434
        %v2436 = vsel %vm2433, %v2435, %v2431
        %v2437 = vmul.f32 1.0, %v2436
        %v2438 = vtanh.pop %v2418
        %v2440 = vrot.slane %v2387, 7
        %v2442 = vmul.f32 %v2437, %v2440
        %2444 = vrot.lane.b32.xlu0 %v2438, 64
        %v2445 = vpop.permute.xlu0 %2444
        %v2447 = vmul.f32 %v2437, %v2445
        %2449 = vrot.lane.b32.xlu0 %v2447, 32
        %v2450 = vpop.permute.xlu0 %2449
        %v2452 = vadd.f32 %v2442, %v2450
        %v2453 = vtanh.pop %v2452
        %2455 = vrot.lane.b32.xlu0 %v2453, 64
        %v2456 = vpop.permute.xlu0 %2455
        %v2458 = vmul.f32 %v2437, %v2456
        %v2459 = vpack.c.bf16 %v2458, %v2458
        %v2461 = vshrl.u32 %v2459, 16
        %v2463 = vrot.slane %v2461, 2
        %2464 = vrot.lane.b32.xlu0 %v2463, 32
        %v2465 = vpop.permute.xlu0 %2464
        %v2467 = vsel %vm612, %v2465, 0
        %2469 = vmatpush.bf16.msra.mxu0 0
        %2470 = vmatpush.bf16.msra.mxu0 0
        %2471 = vmatpush.bf16.msra.mxu0 0
        %2472 = vmatpush.bf16.msra.mxu0 0
        %2473 = vmatpush.bf16.msra.mxu0 0
        %2474 = vmatpush.bf16.msra.mxu0 0
        %2475 = vmatpush.bf16.msra.mxu0 %v2078
        %2476 = vmatpush.bf16.msra.mxu0 %v2077
        %2477 = vmatmul.bf16.gmra.mxu0 %v2467
        %v2478 = vpop.f32.mrf.mxu0
        %v2479 = vadd.f32 0.0, %v2478
        %v2480 = vpop.f32.mrf.mxu0
        %2481 = vdwg.mxu0
        %v2483 = vrot.slane %v2479, 2
        %v2485 = vadd.f32 %v2066, %v2483
        %v2486 = vsub.f32 0.0, %v2485
        %v2487 = vmul.f32 %v2486, 1.442695
        %v2488 = vpow.pop %v2487
        %v2489 = vadd.f32 %v2488, 1.0
        %v2490 = vrcp.pop %v2489
        %v2491 = vmul.f32 %v2489, %v2490
        %v2492 = vsub.f32 1.0, %v2491
        %v2493 = vmul.f32 %v2490, %v2492
        %v2494 = vadd.f32 %v2490, %v2493
        %vm2495 = vweird.f32 %v2489
        %vm2496 = vweird.f32 %v2490
        %vm2497 = vmor %vm2495, %vm2496
        %v2498 = vsel %vm2497, %v2490, %v2494
        %v2499 = vand.u32 2147483647, %v2489
        %vm2500 = vcmp.eq.f32.partialorder %v2499, 8.507059e+37
        %v2501 = vand.u32 %v2489, 2147483648
        %v2502 = vor.u32 1.1754944e-38, %v2501
        %v2503 = vsel %vm2500, %v2502, %v2498
        %v2504 = vmul.f32 1.0, %v2503
        %v2505 = vtanh.pop %v2485
        %v2507 = vrot.slane %v2452, 7
        %v2509 = vmul.f32 %v2504, %v2507
        %2511 = vrot.lane.b32.xlu0 %v2505, 64
        %v2512 = vpop.permute.xlu0 %2511
        %v2514 = vmul.f32 %v2504, %v2512
        %2516 = vrot.lane.b32.xlu0 %v2514, 32
        %v2517 = vpop.permute.xlu0 %2516
        %v2519 = vadd.f32 %v2509, %v2517
        %v2520 = vtanh.pop %v2519
        %2522 = vrot.lane.b32.xlu0 %v2520, 64
        %v2523 = vpop.permute.xlu0 %2522
        %v2525 = vmul.f32 %v2504, %v2523
        %v2526 = vpack.c.bf16 %v2525, %v2525
        %v2528 = vrot.slane %v2526, 3
        %2529 = vrot.lane.b32.xlu0 %v2528, 32
        %v2530 = vpop.permute.xlu0 %2529
        %v2532 = vsel %vm612, %v2530, 0
        %2534 = vmatpush.bf16.msra.mxu0 0
        %2535 = vmatpush.bf16.msra.mxu0 0
        %2536 = vmatpush.bf16.msra.mxu0 0
        %2537 = vmatpush.bf16.msra.mxu0 0
        %2538 = vmatpush.bf16.msra.mxu0 0
        %2539 = vmatpush.bf16.msra.mxu0 0
        %2540 = vmatpush.bf16.msra.mxu0 %v2078
        %2541 = vmatpush.bf16.msra.mxu0 %v2077
        %2542 = vmatmul.bf16.gmra.mxu0 %v2532
        %v2543 = vpop.f32.mrf.mxu0
        %v2544 = vadd.f32 0.0, %v2543
        %v2545 = vpop.f32.mrf.mxu0
        %2546 = vdwg.mxu0
        %v2548 = vrot.slane %v2544, 1
        %v2550 = vadd.f32 %v2066, %v2548
        %v2551 = vsub.f32 0.0, %v2550
        %v2552 = vmul.f32 %v2551, 1.442695
        %v2553 = vpow.pop %v2552
        %v2554 = vadd.f32 %v2553, 1.0
        %v2555 = vrcp.pop %v2554
        %v2556 = vmul.f32 %v2554, %v2555
        %v2557 = vsub.f32 1.0, %v2556
        %v2558 = vmul.f32 %v2555, %v2557
        %v2559 = vadd.f32 %v2555, %v2558
        %vm2560 = vweird.f32 %v2554
        %vm2561 = vweird.f32 %v2555
        %vm2562 = vmor %vm2560, %vm2561
        %v2563 = vsel %vm2562, %v2555, %v2559
        %v2564 = vand.u32 2147483647, %v2554
        %vm2565 = vcmp.eq.f32.partialorder %v2564, 8.507059e+37
        %v2566 = vand.u32 %v2554, 2147483648
        %v2567 = vor.u32 1.1754944e-38, %v2566
        %v2568 = vsel %vm2565, %v2567, %v2563
        %v2569 = vmul.f32 1.0, %v2568
        %v2570 = vtanh.pop %v2550
        %v2572 = vrot.slane %v2519, 7
        %v2574 = vmul.f32 %v2569, %v2572
        %2576 = vrot.lane.b32.xlu0 %v2570, 64
        %v2577 = vpop.permute.xlu0 %2576
        %v2579 = vmul.f32 %v2569, %v2577
        %2581 = vrot.lane.b32.xlu0 %v2579, 32
        %v2582 = vpop.permute.xlu0 %2581
        %v2584 = vadd.f32 %v2574, %v2582
        %v2585 = vtanh.pop %v2584
        %2587 = vrot.lane.b32.xlu0 %v2585, 64
        %v2588 = vpop.permute.xlu0 %2587
        %v2590 = vmul.f32 %v2569, %v2588
        %v2591 = vpack.c.bf16 %v2590, %v2590
        %v2592 = vld [vmem:[%s13] sm:$0xf]
        %v2593 = vld [vmem:[%s13 + $0x4] sm:$0xf]
        %v2594 = vld [vmem:[%s13 + $0x8] sm:$0xf]
        %v2595 = vld [vmem:[%s13 + $0xc] sm:$0xf]
        %v2596 = vld [vmem:[%s14] sm:$0x1]
        %v2598 = vshrl.u32 %v2591, 16
        %v2600 = vrot.slane %v2598, 3
        %2601 = vrot.lane.b32.xlu0 %v2600, 32
        %v2602 = vpop.permute.xlu0 %2601
        %v2607 = vunpack.c.l.b16 %v2592
        %v2608 = vunpack.c.l.b16 %v2593
        %v2609 = vunpack.c.l.b16 %v2594
        %v2610 = vunpack.c.l.b16 %v2595
        %v2611 = vpack.c.b16 %v2608, %v2607
        %v2612 = vpack.c.b16 %v2610, %v2609
        %v2616 = vsel %vm612, %v2602, 0
        %2618 = vmatpush.bf16.msra.mxu0 0
        %2619 = vmatpush.bf16.msra.mxu0 0
        %2620 = vmatpush.bf16.msra.mxu0 0
        %2621 = vmatpush.bf16.msra.mxu0 0
        %2622 = vmatpush.bf16.msra.mxu0 0
        %2623 = vmatpush.bf16.msra.mxu0 0
        %2624 = vmatpush.bf16.msra.mxu0 %v2612
        %2625 = vmatpush.bf16.msra.mxu0 %v2611
        %2626 = vmatmul.bf16.gmra.mxu0 %v2616
        %v2627 = vpop.f32.mrf.mxu0
        %v2628 = vadd.f32 %v2596, %v2627
        %v2629 = vpop.f32.mrf.mxu0
        %2630 = vdwg.mxu0
        %2631 = vst [vmem:[%s554] sm:$0x1] %v2628
        %s2632 = sand.u32 %s366, 1
        %s2633 = scalar_lea.sflag [#allocation5], %s2632
        %s2634 = sand.u32 %s366, 1
        %s2635 = scalar_lea.vmem [#allocation9], %s2634
        // Predicated region
        $region93: #{tpu_custom_call.1} parent=79 // pred_check
          %p2636 = pneg %p376
        $region94: #{tpu_custom_call.1} parent=79 // pred_check_branch
          %2638 = sbr.rel (%p2636) target = $region96
        $region95: #{tpu_custom_call.1} parent=79 // pred_region
          %2640 = vsyncadd %s2633, 0
          %s2641 = scalar_lea.hbm %s15, %s33
          %s2643 = sshll.u32 %s2635, 4
          %s2644 = int_to_ptr.vmem [resolvable:$true] %s2643
          %s2645 = sshll.u32 %s2641, 4
          %s2646 = int_to_ptr.hbm [resolvable:$true] %s2645
          %2648 = dma.vmem_to_hbm [thread:$0]  %s2644, 16, %s2646, %s2633
        $region96: #{tpu_custom_call.1} parent=79 // pred_fallthru
          _
      $region80: #{tpu_custom_call.1} parent=5 // pred_fallthru
        _
      %p2649 = scmp.le.s32.totalorder 2, %s28
      // Predicated region
      $region97: #{tpu_custom_call.1} parent=5 // pred_check
        %p2650 = pneg %p2649
      $region98: #{tpu_custom_call.1} parent=5 // pred_check_branch
        %2652 = sbr.rel (%p2650) target = $region100
      $region99: #{tpu_custom_call.1} parent=5 // pred_region
        %s2653 = ssub.s32 %s28, 2
        // Predicated region
        $region101: #{tpu_custom_call.1} parent=99 // pred_check
          %p2654 = pneg %p382
        $region102: #{tpu_custom_call.1} parent=99 // pred_check_branch
          %2656 = sbr.rel (%p2654) target = $region104
        $region103: #{tpu_custom_call.1} parent=99 // pred_region
          %s2657 = sand.u32 %s367, 1
          %s2658 = scalar_lea.sflag [#allocation5], %s2657
          %s2659 = sand.u32 %s367, 1
          %s2660 = scalar_lea.vmem [#allocation9], %s2659
          %2662 = dma.done %s2658, 16
        $region104: #{tpu_custom_call.1} parent=99 // pred_fallthru
          _
      $region100: #{tpu_custom_call.1} parent=5 // pred_fallthru
        _
    $region6: #{tpu_custom_call.1} parent=1 // loop_footer
      %s32 = sadd.s32 1, %s28
    $region7: #{tpu_custom_call.1} parent=1 // loop_footer_branch
      %27 = sbr.rel target = $region3
    $region8: #{tpu_custom_call.1} parent=1 // loop_exit
      _
    %2663 = vsyncpa [#allocation4], 1
    %s2664 = scalar_lea.sflag [#allocation4], 1
    %2665 = vsyncpa %s2664, 1
    %2666 = vsyncpa [#allocation7], 1
    %2667 = vsyncpa [#allocation5], 1
    %s2668 = scalar_lea.sflag [#allocation5], 1
    %2669 = vsyncpa %s2668, 1

</llo_original>
